<compile_context>
chip_gen: v7x
topology: tpu7x:2x2x1
jax: 0.10.0
libtpu: 0.0.40
codegen_flags: <defaults>
</compile_context>

<pallas_src>
import functools

import jax
import jax.numpy as jnp
from jax import lax
from jax.experimental import pallas as pl
from jax.experimental.pallas import tpu as pltpu


# ---------------------------------------------------------------------------
# generation-aware VMEM budgets (review: raise on v5e/v6e 128MiB, tighten v7x)
# ---------------------------------------------------------------------------
def _vmem_budgets():
    cap = 64 * 1024 * 1024
    try:
        info = pltpu.get_tpu_info()
        cap = int(getattr(info, "vmem_capacity_bytes", cap)) or cap
    except Exception:
        pass
    limit = min(max(cap * 3 // 4, 32 * 1024 * 1024), 112 * 1024 * 1024)
    return limit, limit // 2


def _largest_divisor_leq(n, cap):
    cap = max(1, min(n, int(cap)))
    for d in range(cap, 0, -1):
        if n % d == 0:
            return d
    return 1


# ---------------------------------------------------------------------------
# with_conv=True : nearest 2x upsample + 3x3 'same' conv (sub-pixel / phase form)
# ---------------------------------------------------------------------------
def _make_plan():
    """Static plan for the 9 taps of the (TH+2, W+2) padded window.

    For window tap (a, b) the valid output phases are py in pys (dy = a - py)
    and px in pxs (dx = b - px); the phase-combined weights for this tap are
    stored as len(pys)*len(pxs) consecutive C-wide column blocks of the big
    weight matrix, starting at column block `off` (py-major, px-minor order).
    """
    plan, off = [], 0
    for a in range(3):
        for b in range(3):
            pys = tuple(py for py in (0, 1) if 0 <= a - py <= 1)
            pxs = tuple(px for px in (0, 1) if 0 <= b - px <= 1)
            plan.append((a, b, off, pys, pxs))
            off += len(pys) * len(pxs)
    return tuple(plan)


def _phase_weights(weight_oihw, plan, dtype):
    """Fold the 2x nearest upsample into the 3x3 conv -> (Cin, 16*Cout)."""
    w = jnp.asarray(weight_oihw, jnp.float32)                 # (Co, Ci, 3, 3)
    w_hwio = jnp.transpose(w, (2, 3, 1, 0))                   # (ky, kx, Ci, Co)
    # R[py, dy, ky] == 1 iff original row-tap ky folds into sub-tap dy for phase py
    R = jnp.array([[[1., 0., 0.], [0., 1., 1.]],
                   [[1., 1., 0.], [0., 0., 1.]]], jnp.float32)
    wc = jnp.einsum('pak,qbl,klio->pqabio', R, R, w_hwio)      # (py,px,dy,dx,Ci,Co)
    blocks = []
    for (a, b, _off, pys, pxs) in plan:
        for py in pys:
            for px in pxs:
                blocks.append(wc[py, px, a - py, b - px])      # (Ci, Co)
    return jnp.concatenate(blocks, axis=1).astype(dtype)       # (Ci, 16*Co)


def _upsample_conv_kernel(body_ref, top_ref, bot_ref, w_ref, b_ref, o_ref,
                          pad_ref, acc0_ref, acc1_ref, *, plan, lhs_dtype):
    """One (batch, row-tile) step.

    body_ref : (TH, W, C)      unpadded input rows [t*TH, t*TH+TH)
    top_ref  : (1,  W, C)      input row t*TH-1 (clamped; zeroed when t == 0)
    bot_ref  : (1,  W, C)      input row t*TH+TH (clamped; zeroed on last tile)
    w_ref    : (C, 16*C)       phase-combined weights, column blocks per plan
    b_ref    : (1, 2*C)        bias duplicated for the two column phases (f32)
    o_ref    : (TH, 2, W, 2C)  phase-major output; reshape outside is free
    pad_ref  : (TH+2, W+2, C)  VMEM scratch: zero-padded window
    acc*_ref : (TH*W, 2C) f32  per-row-phase accumulators
    """
    TH, W, C = body_ref.shape
    t = pl.program_id(1)
    n_t = pl.num_programs(1)
    dt = body_ref.dtype

    # ---- assemble the zero-padded window (VMEM only; no HBM pad pass) ------
    pad_ref[:, 0:1, :] = jnp.zeros((TH + 2, 1, C), dt)           # left pad col
    pad_ref[:, W + 1:W + 2, :] = jnp.zeros((TH + 2, 1, C), dt)   # right pad col
    pad_ref[1:TH + 1, 1:W + 1, :] = body_ref[...]
    pad_ref[0:1, 1:W + 1, :] = top_ref[...]
    pad_ref[TH + 1:TH + 2, 1:W + 1, :] = bot_ref[...]

    @pl.when(t == 0)                      # image top: halo row is zero padding
    def _():
        pad_ref[0:1, 1:W + 1, :] = jnp.zeros((1, W, C), dt)

    @pl.when(t == n_t - 1)                # image bottom: halo row is zero padding
    def _():
        pad_ref[TH + 1:TH + 2, 1:W + 1, :] = jnp.zeros((1, W, C), dt)

    def tap(a, b):
        v = pad_ref[a:a + TH, b:b + W, :].reshape(TH * W, C)
        return v.astype(lhs_dtype)

    def mm(x, off, ncol):                 # one wide-N matmul per tap
        return jnp.dot(x, w_ref[:, off * C:(off + ncol) * C],
                       preferred_element_type=jnp.float32)

    bias2 = b_ref[...]                    # (1, 2C) f32
    accs = (acc0_ref, acc1_ref)

    # ---- centre tap first: initialises both accumulators (folds zeros+bias)
    off_c = next(p[2] for p in plan if p[0] == 1 and p[1] == 1)
    res_c = mm(tap(1, 1), off_c, 4)                             # (TH*W, 4C)
    acc0_ref[...] = res_c[:, 0:2 * C] + bias2
    acc1_ref[...] = res_c[:, 2 * C:4 * C] + bias2

    # ---- remaining 8 taps: one matmul each, N = {1,2}*C concatenated phases
    for (a, b, off, pys, pxs) in plan:
        if a == 1 and b == 1:
            continue
        n_px = len(pxs)
        res = mm(tap(a, b), off, len(pys) * n_px)               # (TH*W, n*C)
        c0 = pxs[0] * C
        for ip, py in enumerate(pys):
            accs[py][:, c0:c0 + n_px * C] += \
                res[:, ip * n_px * C:(ip + 1) * n_px * C]

    # ---- store per row-phase; the (H, 2, W, 2C) layout makes the wrapper's
    #      reshape to NHWC free (no interleave stacks, lane-dense stores)
    o_ref[:, 0, :, :] = acc0_ref[...].reshape(TH, W, 2 * C).astype(o_ref.dtype)
    o_ref[:, 1, :, :] = acc1_ref[...].reshape(TH, W, 2 * C).astype(o_ref.dtype)


def _pick_conv_row_tile(N, H, W, C, isz, block_budget, row_cap):
    def blk_bytes(th):
        return (2 * th * W * C * isz              # body block (double buffered)
                + 4 * W * C * isz                 # halo blocks
                + 8 * th * W * C * isz            # output block (double buffered)
                + (th + 2) * (W + 2) * C * isz    # padded window scratch
                + 16 * th * W * C                 # f32 phase accumulators
                + 2 * th * W * C * isz            # tap slice temporaries
                + 28 * th * W * C)                # f32 matmul result / add / cast
    fixed = 2 * 16 * C * C * isz + 16 * C         # weights (x2 buffers) + bias
    cap = min(row_cap, H)
    if N == 1 and H >= 2:
        cap = min(cap, H // 2)                    # >=2 grid steps for v7x's 2 TCs
    best = 1
    for th in range(1, max(cap, 1) + 1):
        if H % th == 0 and fixed + blk_bytes(th) <= block_budget:
            best = th
    return best


def upsample_conv_nhwc(x_nhwc, weight_oihw, bias, *, row_tile=None,
                       prefer_bf16_matmul=False):
    """nearest-2x upsample + 3x3 'same' conv.  NHWC in / NHWC out."""
    N, H, W, C = x_nhwc.shape
    dt = x_nhwc.dtype
    isz = dt.itemsize
    vmem_limit, block_budget = _vmem_budgets()
    row_cap = 64 if vmem_limit >= 90 * 1024 * 1024 else 32

    if row_tile is None:
        TH = _pick_conv_row_tile(N, H, W, C, isz, block_budget, row_cap)
    else:
        if H % int(row_tile) != 0:
            raise ValueError("row_tile must divide H")
        TH = int(row_tile)
    n_t = H // TH

    # MXU operands stay in the activation dtype; optional bf16 LHS for f32 nets
    lhs_dtype = jnp.bfloat16 if (prefer_bf16_matmul and dt == jnp.float32) else dt

    plan = _make_plan()
    w_big = _phase_weights(weight_oihw, plan, lhs_dtype)                # (C, 16C)
    b2 = jnp.tile(jnp.asarray(bias, jnp.float32).reshape(1, C), (1, 2))  # (1, 2C)

    kernel = functools.partial(_upsample_conv_kernel, plan=plan,
                               lhs_dtype=lhs_dtype)

    out5 = pl.pallas_call(
        kernel,
        out_shape=jax.ShapeDtypeStruct((N, H, 2, W, 2 * C), dt),
        grid=(N, n_t),
        in_specs=[
            # body rows [t*TH, t*TH+TH)
            pl.BlockSpec((None, TH, W, C), lambda n, t: (n, t, 0, 0)),
            # one-row halos, clamped at the image boundary (zeroed in-kernel)
            pl.BlockSpec((None, 1, W, C),
                         lambda n, t: (n, jnp.maximum(t * TH - 1, 0), 0, 0)),
            pl.BlockSpec((None, 1, W, C),
                         lambda n, t: (n, jnp.minimum(t * TH + TH, H - 1), 0, 0)),
            pl.BlockSpec((C, 16 * C), lambda n, t: (0, 0)),
            pl.BlockSpec((1, 2 * C), lambda n, t: (0, 0)),
        ],
        out_specs=pl.BlockSpec((None, TH, 2, W, 2 * C),
                               lambda n, t: (n, t, 0, 0, 0)),
        scratch_shapes=[pltpu.VMEM((TH + 2, W + 2, C), dt),
                        pltpu.VMEM((TH * W, 2 * C), jnp.float32),
                        pltpu.VMEM((TH * W, 2 * C), jnp.float32)],
        compiler_params=pltpu.CompilerParams(
            dimension_semantics=("parallel", "parallel"),
            vmem_limit_bytes=vmem_limit),
    )(x_nhwc, x_nhwc, x_nhwc, w_big, b2)

    # (N, H, 2, W, 2C) is element-for-element the interleaved NHWC result.
    return out5.reshape(N, 2 * H, 2 * W, C)


# ---------------------------------------------------------------------------
# with_conv=False : pure nearest 2x upsample, NCHW end to end (no transposes)
# ---------------------------------------------------------------------------
def _upsample_only_kernel(x_ref, dup_ref, o_ref):
    """(BC, TH, W) -> (BC, TH, 4W); 4W columns hold [row-phase0 | row-phase1],
    each a column-duplicated copy, so the final (NC, 2H, 2W) is a free reshape.
    The column duplication uses the otherwise-idle MXU with a one-hot matrix
    (passed in as a constant input) so stores stay lane-dense."""
    BC, TH, W = x_ref.shape
    y = jnp.dot(x_ref[...].reshape(BC * TH, W), dup_ref[...],
                preferred_element_type=jnp.float32)
    o_ref[...] = y.reshape(BC, TH, 4 * W).astype(o_ref.dtype)


def _upsample_nearest_nchw(x_nchw):
    N, C, H, W = x_nchw.shape
    NC = N * C
    dt = x_nchw.dtype
    isz = dt.itemsize
    vmem_limit, block_budget = _vmem_budgets()
    xf = x_nchw.reshape(NC, H, W)

    # one-hot duplication matrix: D[j, q] = 1 iff (q mod 2W)//2 == j  -> (W, 4W)
    q = jnp.arange(4 * W, dtype=jnp.int32)
    dup = (jnp.arange(W, dtype=jnp.int32)[:, None]
           == ((q[None, :] % (2 * W)) // 2)).astype(dt)

    def blk_bytes(bc, th):                 # incl. f32 matmul temp + cast temp
        return bc * th * W * (2 * isz + 8 * isz + 16 + 4 * isz)
    fixed = 2 * 4 * W * W * isz
    budget = max(block_budget - fixed, blk_bytes(1, min(H, 8)))

    th_cap = max(1, budget // blk_bytes(1, 1))
    TH = H if H <= th_cap else _largest_divisor_leq(H, th_cap)
    if TH != H and TH % 8 != 0:            # partial row tiles must be 8-aligned
        cands = [d for d in range(8, min(H, th_cap) + 1, 8) if H % d == 0]
        TH = max(cands) if cands else H
    BC = _largest_divisor_leq(NC, max(1, budget // blk_bytes(1, TH)))
    if (NC // BC) * (H // TH) < 2 and NC >= 2:   # keep both v7x cores busy
        BC = _largest_divisor_leq(NC, NC // 2)

    out3 = pl.pallas_call(
        _upsample_only_kernel,
        out_shape=jax.ShapeDtypeStruct((NC, H, 4 * W), dt),
        grid=(NC // BC, H // TH),
        in_specs=[pl.BlockSpec((BC, TH, W), lambda i, t: (i, t, 0)),
                  pl.BlockSpec((W, 4 * W), lambda i, t: (0, 0))],
        out_specs=pl.BlockSpec((BC, TH, 4 * W), lambda i, t: (i, t, 0)),
        compiler_params=pltpu.CompilerParams(
            dimension_semantics=("parallel", "parallel"),
            vmem_limit_bytes=vmem_limit),
    )(xf, dup)
    # (NC, H, 4W) row-major == (N, C, 2H, 2W) row-major: reshape is free.
    return out3.reshape(N, C, 2 * H, 2 * W)


# ---------------------------------------------------------------------------
# Public entry point (matches the PyTorch module: NCHW in / NCHW out)
# ---------------------------------------------------------------------------
def upsample_forward(x_nchw, weight_oihw=None, bias=None, *, with_conv=True,
                     row_tile=None, prefer_bf16_matmul=False):
    if not with_conv:
        return _upsample_nearest_nchw(x_nchw)
    out_nhwc = upsample_conv_nhwc(
        jnp.transpose(x_nchw, (0, 2, 3, 1)), weight_oihw, bias,
        row_tile=row_tile, prefer_bf16_matmul=prefer_bf16_matmul)
    return jnp.transpose(out_nhwc, (0, 3, 1, 2))


# ---------------------------------------------------------------------------
# Pure-JAX reference (correctness check only)
# ---------------------------------------------------------------------------
def _reference(x_nchw, weight_oihw, bias, with_conv=True):
    up = jnp.repeat(jnp.repeat(x_nchw, 2, axis=2), 2, axis=3)
    if not with_conv:
        return up
    y = lax.conv_general_dilated(
        up, weight_oihw, window_strides=(1, 1), padding=((1, 1), (1, 1)),
        dimension_numbers=("NCHW", "OIHW", "NCHW"),
        precision=lax.Precision.HIGHEST)
    return y + bias.reshape(1, -1, 1, 1)


# ---------------------------------------------------------------------------
if __name__ == "__main__":
    key = jax.random.PRNGKey(0)
    kx, kw, kb = jax.random.split(key, 3)

    N, C, H, W = 2, 4, 16, 16
    x = jax.random.normal(kx, (N, C, H, W), dtype=jnp.float32)

    # Deterministic Conv2d(C, C, 3, padding=1) parameters (PyTorch OIHW layout).
    fan_in = C * 3 * 3
    bound = 1.0 / (fan_in ** 0.5)
    weight = jax.random.uniform(kw, (C, C, 3, 3), jnp.float32, -bound, bound)
    bias = jax.random.uniform(kb, (C,), jnp.float32, -bound, bound)

    # Tolerances are loose enough to cover any MXU precision mode while still
    # catching structural/indexing bugs (those produce O(0.1..1) errors).
    ref = _reference(x, weight, bias, with_conv=True)

    # with_conv=True, default row tile (whole image at this size)
    out = jax.block_until_ready(upsample_forward(x, weight, bias, with_conv=True))
    assert out.shape == (N, C, 2 * H, 2 * W)
    assert jnp.allclose(out, ref, rtol=1e-2, atol=1e-2)

    # with_conv=True, explicit small row tile (exercises halo rows + boundaries)
    out_t = jax.block_until_ready(
        upsample_forward(x, weight, bias, with_conv=True, row_tile=8))
    assert jnp.allclose(out_t, ref, rtol=1e-2, atol=1e-2)

    # with_conv=False (pure nearest upsample, NCHW end to end, no transposes)
    out_u = jax.block_until_ready(upsample_forward(x, with_conv=False))
    ref_u = _reference(x, weight, bias, with_conv=False)
    assert out_u.shape == (N, C, 2 * H, 2 * W)
    assert jnp.allclose(out_u, ref_u, rtol=1e-2, atol=1e-2)

    print("KERNEL_OK")
</pallas_src>

<mosaic_0001>
module attributes {stable_mosaic.version = 11 : i64} {
  func.func @_upsample_conv_kernel(%arg0: i32, %arg1: i32, %arg2: memref<1x16x16x4xf32, #tpu.memory_space<vmem>>, %arg3: memref<1x1x16x4xf32, #tpu.memory_space<vmem>>, %arg4: memref<1x1x16x4xf32, #tpu.memory_space<vmem>>, %arg5: memref<4x64xf32, #tpu.memory_space<vmem>>, %arg6: memref<1x8xf32, #tpu.memory_space<vmem>>, %arg7: memref<1x16x2x16x8xf32, #tpu.memory_space<vmem>>, %arg8: memref<18x18x4xf32, #tpu.memory_space<vmem>>, %arg9: memref<256x8xf32, #tpu.memory_space<vmem>>, %arg10: memref<256x8xf32, #tpu.memory_space<vmem>>) attributes {dimension_semantics = [#tpu.dimension_semantics<parallel>, #tpu.dimension_semantics<parallel>], iteration_bounds = array<i64: 2, 1>, scalar_prefetch = 0 : i64, scratch_operands = 3 : i64, tpu.core_type = #tpu.core_type<tc>, window_params = [{transform_indices = @transform_0, window_bounds = array<i64: 1, 16, 16, 4>}, {transform_indices = @transform_1, window_bounds = array<i64: 1, 1, 16, 4>}, {transform_indices = @transform_2, window_bounds = array<i64: 1, 1, 16, 4>}, {pipeline_mode = #tpu.pipeline_mode<synchronous>, transform_indices = @transform_3, window_bounds = array<i64: 4, 64>}, {pipeline_mode = #tpu.pipeline_mode<synchronous>, transform_indices = @transform_4, window_bounds = array<i64: 1, 8>}, {transform_indices = @transform_5, window_bounds = array<i64: 1, 16, 2, 16, 8>}]} {
    %cst = arith.constant 0.000000e+00 : f32
    %0 = vector.broadcast %cst : f32 to vector<18x1x4xf32>
    %c0 = arith.constant 0 : index
    %c0_0 = arith.constant 0 : index
    %c0_1 = arith.constant 0 : index
    %1 = vector.load %arg8[%c0, %c0_0, %c0_1] : memref<18x18x4xf32, #tpu.memory_space<vmem>>, vector<18x1x4xf32>
    tpu.vector_store %arg8[%c0, %c0_0, %c0_1], %0 {strides = array<i32>} : memref<18x18x4xf32, #tpu.memory_space<vmem>>, vector<18x1x4xf32>,
    %cst_2 = arith.constant 0.000000e+00 : f32
    %2 = vector.broadcast %cst_2 : f32 to vector<18x1x4xf32>
    %c0_3 = arith.constant 0 : index
    %c17 = arith.constant 17 : index
    %c0_4 = arith.constant 0 : index
    %3 = vector.load %arg8[%c0_3, %c17, %c0_4] : memref<18x18x4xf32, #tpu.memory_space<vmem>>, vector<18x1x4xf32>
    tpu.vector_store %arg8[%c0_3, %c17, %c0_4], %2 {strides = array<i32>} : memref<18x18x4xf32, #tpu.memory_space<vmem>>, vector<18x1x4xf32>,
    %c0_5 = arith.constant 0 : index
    %c0_6 = arith.constant 0 : index
    %c0_7 = arith.constant 0 : index
    %c0_8 = arith.constant 0 : index
    %4 = vector.load %arg2[%c0_5, %c0_6, %c0_7, %c0_8] : memref<1x16x16x4xf32, #tpu.memory_space<vmem>>, vector<1x16x16x4xf32>
    %5 = vector.shape_cast %4 : vector<1x16x16x4xf32> to vector<16x16x4xf32>
    %c1 = arith.constant 1 : index
    %c1_9 = arith.constant 1 : index
    %c0_10 = arith.constant 0 : index
    %6 = vector.load %arg8[%c1, %c1_9, %c0_10] : memref<18x18x4xf32, #tpu.memory_space<vmem>>, vector<16x16x4xf32>
    tpu.vector_store %arg8[%c1, %c1_9, %c0_10], %5 {strides = array<i32>} : memref<18x18x4xf32, #tpu.memory_space<vmem>>, vector<16x16x4xf32>,
    %c0_11 = arith.constant 0 : index
    %c0_12 = arith.constant 0 : index
    %c0_13 = arith.constant 0 : index
    %c0_14 = arith.constant 0 : index
    %7 = vector.load %arg3[%c0_11, %c0_12, %c0_13, %c0_14] : memref<1x1x16x4xf32, #tpu.memory_space<vmem>>, vector<1x1x16x4xf32>
    %8 = vector.shape_cast %7 : vector<1x1x16x4xf32> to vector<1x16x4xf32>
    %c0_15 = arith.constant 0 : index
    %c1_16 = arith.constant 1 : index
    %c0_17 = arith.constant 0 : index
    %9 = vector.load %arg8[%c0_15, %c1_16, %c0_17] : memref<18x18x4xf32, #tpu.memory_space<vmem>>, vector<1x16x4xf32>
    tpu.vector_store %arg8[%c0_15, %c1_16, %c0_17], %8 {strides = array<i32>} : memref<18x18x4xf32, #tpu.memory_space<vmem>>, vector<1x16x4xf32>,
    %c0_18 = arith.constant 0 : index
    %c0_19 = arith.constant 0 : index
    %c0_20 = arith.constant 0 : index
    %c0_21 = arith.constant 0 : index
    %10 = vector.load %arg4[%c0_18, %c0_19, %c0_20, %c0_21] : memref<1x1x16x4xf32, #tpu.memory_space<vmem>>, vector<1x1x16x4xf32>
    %11 = vector.shape_cast %10 : vector<1x1x16x4xf32> to vector<1x16x4xf32>
    %c17_22 = arith.constant 17 : index
    %c1_23 = arith.constant 1 : index
    %c0_24 = arith.constant 0 : index
    %12 = vector.load %arg8[%c17_22, %c1_23, %c0_24] : memref<18x18x4xf32, #tpu.memory_space<vmem>>, vector<1x16x4xf32>
    tpu.vector_store %arg8[%c17_22, %c1_23, %c0_24], %11 {strides = array<i32>} : memref<18x18x4xf32, #tpu.memory_space<vmem>>, vector<1x16x4xf32>,
    %c0_i32 = arith.constant 0 : i32
    %13 = arith.cmpi eq, %arg1, %c0_i32 : i32
    %14 = arith.extui %13 : i1 to i32
    %c0_i32_25 = arith.constant 0 : i32
    %15 = arith.cmpi ne, %14, %c0_i32_25 : i32
    scf.if %15 {
      %cst_133 = arith.constant 0.000000e+00 : f32
      %108 = vector.broadcast %cst_133 : f32 to vector<1x16x4xf32>
      %c0_134 = arith.constant 0 : index
      %c1_135 = arith.constant 1 : index
      %c0_136 = arith.constant 0 : index
      %109 = vector.load %arg8[%c0_134, %c1_135, %c0_136] : memref<18x18x4xf32, #tpu.memory_space<vmem>>, vector<1x16x4xf32>
      tpu.vector_store %arg8[%c0_134, %c1_135, %c0_136], %108 {strides = array<i32>} : memref<18x18x4xf32, #tpu.memory_space<vmem>>, vector<1x16x4xf32>,
    } else {
    }
    %c0_i32_26 = arith.constant 0 : i32
    %16 = arith.cmpi eq, %arg1, %c0_i32_26 : i32
    %17 = arith.extui %16 : i1 to i32
    %c0_i32_27 = arith.constant 0 : i32
    %18 = arith.cmpi ne, %17, %c0_i32_27 : i32
    scf.if %18 {
      %cst_133 = arith.constant 0.000000e+00 : f32
      %108 = vector.broadcast %cst_133 : f32 to vector<1x16x4xf32>
      %c17_134 = arith.constant 17 : index
      %c1_135 = arith.constant 1 : index
      %c0_136 = arith.constant 0 : index
      %109 = vector.load %arg8[%c17_134, %c1_135, %c0_136] : memref<18x18x4xf32, #tpu.memory_space<vmem>>, vector<1x16x4xf32>
      tpu.vector_store %arg8[%c17_134, %c1_135, %c0_136], %108 {strides = array<i32>} : memref<18x18x4xf32, #tpu.memory_space<vmem>>, vector<1x16x4xf32>,
    } else {
    }
    %c0_28 = arith.constant 0 : index
    %c0_29 = arith.constant 0 : index
    %19 = vector.load %arg6[%c0_28, %c0_29] : memref<1x8xf32, #tpu.memory_space<vmem>>, vector<1x8xf32>
    %c1_30 = arith.constant 1 : index
    %c1_31 = arith.constant 1 : index
    %c0_32 = arith.constant 0 : index
    %20 = vector.load %arg8[%c1_30, %c1_31, %c0_32] : memref<18x18x4xf32, #tpu.memory_space<vmem>>, vector<16x16x4xf32>
    %21 = vector.shape_cast %20 : vector<16x16x4xf32> to vector<256x4xf32>
    %c0_33 = arith.constant 0 : index
    %c24 = arith.constant 24 : index
    %22 = vector.load %arg5[%c0_33, %c24] : memref<4x64xf32, #tpu.memory_space<vmem>>, vector<4x16xf32>
    %cst_34 = arith.constant dense<0.000000e+00> : vector<256x16xf32>
    %23 = tpu.matmul %21, %22, %cst_34 {dimension_numbers = #tpu.dot_dimension_numbers<[1], [0], [0], [1], [0, 0, 1, 1], [], []>} : vector<256x4xf32>, vector<4x16xf32>, vector<256x16xf32> -> vector<256x16xf32>
    %24 = vector.extract_strided_slice %23 {offsets = [0, 0], sizes = [256, 8], strides = [1, 1]} : vector<256x16xf32> to vector<256x8xf32>
    %25 = vector.broadcast %19 : vector<1x8xf32> to vector<256x8xf32>
    %26 = arith.addf %24, %25 : vector<256x8xf32>
    %c0_35 = arith.constant 0 : index
    %c0_36 = arith.constant 0 : index
    %27 = vector.load %arg9[%c0_35, %c0_36] : memref<256x8xf32, #tpu.memory_space<vmem>>, vector<256x8xf32>
    tpu.vector_store %arg9[%c0_35, %c0_36], %26 {strides = array<i32>} : memref<256x8xf32, #tpu.memory_space<vmem>>, vector<256x8xf32>,
    %28 = vector.extract_strided_slice %23 {offsets = [0, 8], sizes = [256, 8], strides = [1, 1]} : vector<256x16xf32> to vector<256x8xf32>
    %29 = vector.broadcast %19 : vector<1x8xf32> to vector<256x8xf32>
    %30 = arith.addf %28, %29 : vector<256x8xf32>
    %c0_37 = arith.constant 0 : index
    %c0_38 = arith.constant 0 : index
    %31 = vector.load %arg10[%c0_37, %c0_38] : memref<256x8xf32, #tpu.memory_space<vmem>>, vector<256x8xf32>
    tpu.vector_store %arg10[%c0_37, %c0_38], %30 {strides = array<i32>} : memref<256x8xf32, #tpu.memory_space<vmem>>, vector<256x8xf32>,
    %c0_39 = arith.constant 0 : index
    %c0_40 = arith.constant 0 : index
    %c0_41 = arith.constant 0 : index
    %32 = vector.load %arg8[%c0_39, %c0_40, %c0_41] : memref<18x18x4xf32, #tpu.memory_space<vmem>>, vector<16x16x4xf32>
    %33 = vector.shape_cast %32 : vector<16x16x4xf32> to vector<256x4xf32>
    %c0_42 = arith.constant 0 : index
    %c0_43 = arith.constant 0 : index
    %34 = vector.load %arg5[%c0_42, %c0_43] : memref<4x64xf32, #tpu.memory_space<vmem>>, vector<4x4xf32>
    %cst_44 = arith.constant dense<0.000000e+00> : vector<256x4xf32>
    %35 = tpu.matmul %33, %34, %cst_44 {dimension_numbers = #tpu.dot_dimension_numbers<[1], [0], [0], [1], [0, 0, 1, 1], [], []>} : vector<256x4xf32>, vector<4x4xf32>, vector<256x4xf32> -> vector<256x4xf32>
    %c0_45 = arith.constant 0 : index
    %c0_46 = arith.constant 0 : index
    %36 = vector.load %arg9[%c0_45, %c0_46] : memref<256x8xf32, #tpu.memory_space<vmem>>, vector<256x4xf32>
    %37 = arith.addf %36, %35 : vector<256x4xf32>
    %c0_47 = arith.constant 0 : index
    %c0_48 = arith.constant 0 : index
    %38 = vector.load %arg9[%c0_47, %c0_48] : memref<256x8xf32, #tpu.memory_space<vmem>>, vector<256x4xf32>
    tpu.vector_store %arg9[%c0_47, %c0_48], %37 {strides = array<i32>} : memref<256x8xf32, #tpu.memory_space<vmem>>, vector<256x4xf32>,
    %c0_49 = arith.constant 0 : index
    %c1_50 = arith.constant 1 : index
    %c0_51 = arith.constant 0 : index
    %39 = vector.load %arg8[%c0_49, %c1_50, %c0_51] : memref<18x18x4xf32, #tpu.memory_space<vmem>>, vector<16x16x4xf32>
    %40 = vector.shape_cast %39 : vector<16x16x4xf32> to vector<256x4xf32>
    %c0_52 = arith.constant 0 : index
    %c4 = arith.constant 4 : index
    %41 = vector.load %arg5[%c0_52, %c4] : memref<4x64xf32, #tpu.memory_space<vmem>>, vector<4x8xf32>
    %cst_53 = arith.constant dense<0.000000e+00> : vector<256x8xf32>
    %42 = tpu.matmul %40, %41, %cst_53 {dimension_numbers = #tpu.dot_dimension_numbers<[1], [0], [0], [1], [0, 0, 1, 1], [], []>} : vector<256x4xf32>, vector<4x8xf32>, vector<256x8xf32> -> vector<256x8xf32>
    %c0_54 = arith.constant 0 : index
    %c0_55 = arith.constant 0 : index
    %43 = vector.load %arg9[%c0_54, %c0_55] : memref<256x8xf32, #tpu.memory_space<vmem>>, vector<256x8xf32>
    %44 = arith.addf %43, %42 : vector<256x8xf32>
    %c0_56 = arith.constant 0 : index
    %c0_57 = arith.constant 0 : index
    %45 = vector.load %arg9[%c0_56, %c0_57] : memref<256x8xf32, #tpu.memory_space<vmem>>, vector<256x8xf32>
    tpu.vector_store %arg9[%c0_56, %c0_57], %44 {strides = array<i32>} : memref<256x8xf32, #tpu.memory_space<vmem>>, vector<256x8xf32>,
    %c0_58 = arith.constant 0 : index
    %c2 = arith.constant 2 : index
    %c0_59 = arith.constant 0 : index
    %46 = vector.load %arg8[%c0_58, %c2, %c0_59] : memref<18x18x4xf32, #tpu.memory_space<vmem>>, vector<16x16x4xf32>
    %47 = vector.shape_cast %46 : vector<16x16x4xf32> to vector<256x4xf32>
    %c0_60 = arith.constant 0 : index
    %c12 = arith.constant 12 : index
    %48 = vector.load %arg5[%c0_60, %c12] : memref<4x64xf32, #tpu.memory_space<vmem>>, vector<4x4xf32>
    %cst_61 = arith.constant dense<0.000000e+00> : vector<256x4xf32>
    %49 = tpu.matmul %47, %48, %cst_61 {dimension_numbers = #tpu.dot_dimension_numbers<[1], [0], [0], [1], [0, 0, 1, 1], [], []>} : vector<256x4xf32>, vector<4x4xf32>, vector<256x4xf32> -> vector<256x4xf32>
    %c0_62 = arith.constant 0 : index
    %c4_63 = arith.constant 4 : index
    %50 = vector.load %arg9[%c0_62, %c4_63] : memref<256x8xf32, #tpu.memory_space<vmem>>, vector<256x4xf32>
    %51 = arith.addf %50, %49 : vector<256x4xf32>
    %c0_64 = arith.constant 0 : index
    %c4_65 = arith.constant 4 : index
    %52 = vector.load %arg9[%c0_64, %c4_65] : memref<256x8xf32, #tpu.memory_space<vmem>>, vector<256x4xf32>
    tpu.vector_store %arg9[%c0_64, %c4_65], %51 {strides = array<i32>} : memref<256x8xf32, #tpu.memory_space<vmem>>, vector<256x4xf32>,
    %c1_66 = arith.constant 1 : index
    %c0_67 = arith.constant 0 : index
    %c0_68 = arith.constant 0 : index
    %53 = vector.load %arg8[%c1_66, %c0_67, %c0_68] : memref<18x18x4xf32, #tpu.memory_space<vmem>>, vector<16x16x4xf32>
    %54 = vector.shape_cast %53 : vector<16x16x4xf32> to vector<256x4xf32>
    %c0_69 = arith.constant 0 : index
    %c16 = arith.constant 16 : index
    %55 = vector.load %arg5[%c0_69, %c16] : memref<4x64xf32, #tpu.memory_space<vmem>>, vector<4x8xf32>
    %cst_70 = arith.constant dense<0.000000e+00> : vector<256x8xf32>
    %56 = tpu.matmul %54, %55, %cst_70 {dimension_numbers = #tpu.dot_dimension_numbers<[1], [0], [0], [1], [0, 0, 1, 1], [], []>} : vector<256x4xf32>, vector<4x8xf32>, vector<256x8xf32> -> vector<256x8xf32>
    %c0_71 = arith.constant 0 : index
    %c0_72 = arith.constant 0 : index
    %57 = vector.load %arg9[%c0_71, %c0_72] : memref<256x8xf32, #tpu.memory_space<vmem>>, vector<256x4xf32>
    %58 = vector.extract_strided_slice %56 {offsets = [0, 0], sizes = [256, 4], strides = [1, 1]} : vector<256x8xf32> to vector<256x4xf32>
    %59 = arith.addf %57, %58 : vector<256x4xf32>
    %c0_73 = arith.constant 0 : index
    %c0_74 = arith.constant 0 : index
    %60 = vector.load %arg9[%c0_73, %c0_74] : memref<256x8xf32, #tpu.memory_space<vmem>>, vector<256x4xf32>
    tpu.vector_store %arg9[%c0_73, %c0_74], %59 {strides = array<i32>} : memref<256x8xf32, #tpu.memory_space<vmem>>, vector<256x4xf32>,
    %c0_75 = arith.constant 0 : index
    %c0_76 = arith.constant 0 : index
    %61 = vector.load %arg10[%c0_75, %c0_76] : memref<256x8xf32, #tpu.memory_space<vmem>>, vector<256x4xf32>
    %62 = vector.extract_strided_slice %56 {offsets = [0, 4], sizes = [256, 4], strides = [1, 1]} : vector<256x8xf32> to vector<256x4xf32>
    %63 = arith.addf %61, %62 : vector<256x4xf32>
    %c0_77 = arith.constant 0 : index
    %c0_78 = arith.constant 0 : index
    %64 = vector.load %arg10[%c0_77, %c0_78] : memref<256x8xf32, #tpu.memory_space<vmem>>, vector<256x4xf32>
    tpu.vector_store %arg10[%c0_77, %c0_78], %63 {strides = array<i32>} : memref<256x8xf32, #tpu.memory_space<vmem>>, vector<256x4xf32>,
    %c1_79 = arith.constant 1 : index
    %c2_80 = arith.constant 2 : index
    %c0_81 = arith.constant 0 : index
    %65 = vector.load %arg8[%c1_79, %c2_80, %c0_81] : memref<18x18x4xf32, #tpu.memory_space<vmem>>, vector<16x16x4xf32>
    %66 = vector.shape_cast %65 : vector<16x16x4xf32> to vector<256x4xf32>
    %c0_82 = arith.constant 0 : index
    %c40 = arith.constant 40 : index
    %67 = vector.load %arg5[%c0_82, %c40] : memref<4x64xf32, #tpu.memory_space<vmem>>, vector<4x8xf32>
    %cst_83 = arith.constant dense<0.000000e+00> : vector<256x8xf32>
    %68 = tpu.matmul %66, %67, %cst_83 {dimension_numbers = #tpu.dot_dimension_numbers<[1], [0], [0], [1], [0, 0, 1, 1], [], []>} : vector<256x4xf32>, vector<4x8xf32>, vector<256x8xf32> -> vector<256x8xf32>
    %c0_84 = arith.constant 0 : index
    %c4_85 = arith.constant 4 : index
    %69 = vector.load %arg9[%c0_84, %c4_85] : memref<256x8xf32, #tpu.memory_space<vmem>>, vector<256x4xf32>
    %70 = vector.extract_strided_slice %68 {offsets = [0, 0], sizes = [256, 4], strides = [1, 1]} : vector<256x8xf32> to vector<256x4xf32>
    %71 = arith.addf %69, %70 : vector<256x4xf32>
    %c0_86 = arith.constant 0 : index
    %c4_87 = arith.constant 4 : index
    %72 = vector.load %arg9[%c0_86, %c4_87] : memref<256x8xf32, #tpu.memory_space<vmem>>, vector<256x4xf32>
    tpu.vector_store %arg9[%c0_86, %c4_87], %71 {strides = array<i32>} : memref<256x8xf32, #tpu.memory_space<vmem>>, vector<256x4xf32>,
    %c0_88 = arith.constant 0 : index
    %c4_89 = arith.constant 4 : index
    %73 = vector.load %arg10[%c0_88, %c4_89] : memref<256x8xf32, #tpu.memory_space<vmem>>, vector<256x4xf32>
    %74 = vector.extract_strided_slice %68 {offsets = [0, 4], sizes = [256, 4], strides = [1, 1]} : vector<256x8xf32> to vector<256x4xf32>
    %75 = arith.addf %73, %74 : vector<256x4xf32>
    %c0_90 = arith.constant 0 : index
    %c4_91 = arith.constant 4 : index
    %76 = vector.load %arg10[%c0_90, %c4_91] : memref<256x8xf32, #tpu.memory_space<vmem>>, vector<256x4xf32>
    tpu.vector_store %arg10[%c0_90, %c4_91], %75 {strides = array<i32>} : memref<256x8xf32, #tpu.memory_space<vmem>>, vector<256x4xf32>,
    %c2_92 = arith.constant 2 : index
    %c0_93 = arith.constant 0 : index
    %c0_94 = arith.constant 0 : index
    %77 = vector.load %arg8[%c2_92, %c0_93, %c0_94] : memref<18x18x4xf32, #tpu.memory_space<vmem>>, vector<16x16x4xf32>
    %78 = vector.shape_cast %77 : vector<16x16x4xf32> to vector<256x4xf32>
    %c0_95 = arith.constant 0 : index
    %c48 = arith.constant 48 : index
    %79 = vector.load %arg5[%c0_95, %c48] : memref<4x64xf32, #tpu.memory_space<vmem>>, vector<4x4xf32>
    %cst_96 = arith.constant dense<0.000000e+00> : vector<256x4xf32>
    %80 = tpu.matmul %78, %79, %cst_96 {dimension_numbers = #tpu.dot_dimension_numbers<[1], [0], [0], [1], [0, 0, 1, 1], [], []>} : vector<256x4xf32>, vector<4x4xf32>, vector<256x4xf32> -> vector<256x4xf32>
    %c0_97 = arith.constant 0 : index
    %c0_98 = arith.constant 0 : index
    %81 = vector.load %arg10[%c0_97, %c0_98] : memref<256x8xf32, #tpu.memory_space<vmem>>, vector<256x4xf32>
    %82 = arith.addf %81, %80 : vector<256x4xf32>
    %c0_99 = arith.constant 0 : index
    %c0_100 = arith.constant 0 : index
    %83 = vector.load %arg10[%c0_99, %c0_100] : memref<256x8xf32, #tpu.memory_space<vmem>>, vector<256x4xf32>
    tpu.vector_store %arg10[%c0_99, %c0_100], %82 {strides = array<i32>} : memref<256x8xf32, #tpu.memory_space<vmem>>, vector<256x4xf32>,
    %c2_101 = arith.constant 2 : index
    %c1_102 = arith.constant 1 : index
    %c0_103 = arith.constant 0 : index
    %84 = vector.load %arg8[%c2_101, %c1_102, %c0_103] : memref<18x18x4xf32, #tpu.memory_space<vmem>>, vector<16x16x4xf32>
    %85 = vector.shape_cast %84 : vector<16x16x4xf32> to vector<256x4xf32>
    %c0_104 = arith.constant 0 : index
    %c52 = arith.constant 52 : index
    %86 = vector.load %arg5[%c0_104, %c52] : memref<4x64xf32, #tpu.memory_space<vmem>>, vector<4x8xf32>
    %cst_105 = arith.constant dense<0.000000e+00> : vector<256x8xf32>
    %87 = tpu.matmul %85, %86, %cst_105 {dimension_numbers = #tpu.dot_dimension_numbers<[1], [0], [0], [1], [0, 0, 1, 1], [], []>} : vector<256x4xf32>, vector<4x8xf32>, vector<256x8xf32> -> vector<256x8xf32>
    %c0_106 = arith.constant 0 : index
    %c0_107 = arith.constant 0 : index
    %88 = vector.load %arg10[%c0_106, %c0_107] : memref<256x8xf32, #tpu.memory_space<vmem>>, vector<256x8xf32>
    %89 = arith.addf %88, %87 : vector<256x8xf32>
    %c0_108 = arith.constant 0 : index
    %c0_109 = arith.constant 0 : index
    %90 = vector.load %arg10[%c0_108, %c0_109] : memref<256x8xf32, #tpu.memory_space<vmem>>, vector<256x8xf32>
    tpu.vector_store %arg10[%c0_108, %c0_109], %89 {strides = array<i32>} : memref<256x8xf32, #tpu.memory_space<vmem>>, vector<256x8xf32>,
    %c2_110 = arith.constant 2 : index
    %c2_111 = arith.constant 2 : index
    %c0_112 = arith.constant 0 : index
    %91 = vector.load %arg8[%c2_110, %c2_111, %c0_112] : memref<18x18x4xf32, #tpu.memory_space<vmem>>, vector<16x16x4xf32>
    %92 = vector.shape_cast %91 : vector<16x16x4xf32> to vector<256x4xf32>
    %c0_113 = arith.constant 0 : index
    %c60 = arith.constant 60 : index
    %93 = vector.load %arg5[%c0_113, %c60] : memref<4x64xf32, #tpu.memory_space<vmem>>, vector<4x4xf32>
    %cst_114 = arith.constant dense<0.000000e+00> : vector<256x4xf32>
    %94 = tpu.matmul %92, %93, %cst_114 {dimension_numbers = #tpu.dot_dimension_numbers<[1], [0], [0], [1], [0, 0, 1, 1], [], []>} : vector<256x4xf32>, vector<4x4xf32>, vector<256x4xf32> -> vector<256x4xf32>
    %c0_115 = arith.constant 0 : index
    %c4_116 = arith.constant 4 : index
    %95 = vector.load %arg10[%c0_115, %c4_116] : memref<256x8xf32, #tpu.memory_space<vmem>>, vector<256x4xf32>
    %96 = arith.addf %95, %94 : vector<256x4xf32>
    %c0_117 = arith.constant 0 : index
    %c4_118 = arith.constant 4 : index
    %97 = vector.load %arg10[%c0_117, %c4_118] : memref<256x8xf32, #tpu.memory_space<vmem>>, vector<256x4xf32>
    tpu.vector_store %arg10[%c0_117, %c4_118], %96 {strides = array<i32>} : memref<256x8xf32, #tpu.memory_space<vmem>>, vector<256x4xf32>,
    %c0_119 = arith.constant 0 : index
    %c0_120 = arith.constant 0 : index
    %98 = vector.load %arg9[%c0_119, %c0_120] : memref<256x8xf32, #tpu.memory_space<vmem>>, vector<256x8xf32>
    %99 = vector.shape_cast %98 : vector<256x8xf32> to vector<16x16x8xf32>
    %c0_121 = arith.constant 0 : index
    %c0_122 = arith.constant 0 : index
    %c0_123 = arith.constant 0 : index
    %c0_124 = arith.constant 0 : index
    %c0_125 = arith.constant 0 : index
    %100 = vector.load %arg7[%c0_121, %c0_122, %c0_123, %c0_124, %c0_125] : memref<1x16x2x16x8xf32, #tpu.memory_space<vmem>>, vector<1x16x1x16x8xf32>
    %101 = vector.shape_cast %100 : vector<1x16x1x16x8xf32> to vector<16x16x8xf32>
    %102 = vector.shape_cast %99 : vector<16x16x8xf32> to vector<1x16x1x16x8xf32>
    tpu.vector_store %arg7[%c0_121, %c0_122, %c0_123, %c0_124, %c0_125], %102 {strides = array<i32>} : memref<1x16x2x16x8xf32, #tpu.memory_space<vmem>>, vector<1x16x1x16x8xf32>,
    %c0_126 = arith.constant 0 : index
    %c0_127 = arith.constant 0 : index
    %103 = vector.load %arg10[%c0_126, %c0_127] : memref<256x8xf32, #tpu.memory_space<vmem>>, vector<256x8xf32>
    %104 = vector.shape_cast %103 : vector<256x8xf32> to vector<16x16x8xf32>
    %c0_128 = arith.constant 0 : index
    %c0_129 = arith.constant 0 : index
    %c1_130 = arith.constant 1 : index
    %c0_131 = arith.constant 0 : index
    %c0_132 = arith.constant 0 : index
    %105 = vector.load %arg7[%c0_128, %c0_129, %c1_130, %c0_131, %c0_132] : memref<1x16x2x16x8xf32, #tpu.memory_space<vmem>>, vector<1x16x1x16x8xf32>
    %106 = vector.shape_cast %105 : vector<1x16x1x16x8xf32> to vector<16x16x8xf32>
    %107 = vector.shape_cast %104 : vector<16x16x8xf32> to vector<1x16x1x16x8xf32>
    tpu.vector_store %arg7[%c0_128, %c0_129, %c1_130, %c0_131, %c0_132], %107 {strides = array<i32>} : memref<1x16x2x16x8xf32, #tpu.memory_space<vmem>>, vector<1x16x1x16x8xf32>,
    return
  }
  func.func @transform_0(%arg0: i32, %arg1: i32) -> (i32, i32, i32, i32) {
    %c0_i32 = arith.constant 0 : i32
    %c0_i32_0 = arith.constant 0 : i32
    %c0_i32_1 = arith.constant 0 : i32
    return %arg0, %arg1, %c0_i32, %c0_i32_0 : i32, i32, i32, i32
  }
  func.func @transform_1(%arg0: i32, %arg1: i32) -> (i32, i32, i32, i32) {
    %c16_i32 = arith.constant 16 : i32
    %0 = arith.muli %arg1, %c16_i32 : i32
    %c1_i32 = arith.constant 1 : i32
    %1 = arith.subi %0, %c1_i32 : i32
    %c0_i32 = arith.constant 0 : i32
    %2 = arith.maxsi %1, %c0_i32 : i32
    %c0_i32_0 = arith.constant 0 : i32
    %c0_i32_1 = arith.constant 0 : i32
    %c0_i32_2 = arith.constant 0 : i32
    return %arg0, %2, %c0_i32_0, %c0_i32_1 : i32, i32, i32, i32
  }
  func.func @transform_2(%arg0: i32, %arg1: i32) -> (i32, i32, i32, i32) {
    %c16_i32 = arith.constant 16 : i32
    %0 = arith.muli %arg1, %c16_i32 : i32
    %c16_i32_0 = arith.constant 16 : i32
    %1 = arith.addi %0, %c16_i32_0 : i32
    %c15_i32 = arith.constant 15 : i32
    %2 = arith.minsi %1, %c15_i32 : i32
    %c0_i32 = arith.constant 0 : i32
    %c0_i32_1 = arith.constant 0 : i32
    %c0_i32_2 = arith.constant 0 : i32
    return %arg0, %2, %c0_i32, %c0_i32_1 : i32, i32, i32, i32
  }
  func.func @transform_3(%arg0: i32, %arg1: i32) -> (i32, i32) {
    %c0_i32 = arith.constant 0 : i32
    %c0_i32_0 = arith.constant 0 : i32
    %c0_i32_1 = arith.constant 0 : i32
    return %c0_i32, %c0_i32_0 : i32, i32
  }
  func.func @transform_4(%arg0: i32, %arg1: i32) -> (i32, i32) {
    %c0_i32 = arith.constant 0 : i32
    %c0_i32_0 = arith.constant 0 : i32
    %c0_i32_1 = arith.constant 0 : i32
    return %c0_i32, %c0_i32_0 : i32, i32
  }
  func.func @transform_5(%arg0: i32, %arg1: i32) -> (i32, i32, i32, i32, i32) {
    %c0_i32 = arith.constant 0 : i32
    %c0_i32_0 = arith.constant 0 : i32
    %c0_i32_1 = arith.constant 0 : i32
    %c0_i32_2 = arith.constant 0 : i32
    return %arg0, %arg1, %c0_i32, %c0_i32_0, %c0_i32_1 : i32, i32, i32, i32, i32
  }
}

</mosaic_0001>

<llo_original>
// kernel: tpu_custom_call.1
$region0: #{tpu_custom_call.1}
  #allocation0 [shape = 'u32[]', space=smem, size = 0x4, offset = 0x4, fixed_abs, tag = 'smem constant byte address 0x4 - core index']
  #allocation1 [shape = 'u32[144,128]{1,0:T(1,128)}', space=vmem, size = 0x12000, scoped, tag = 'internal scratch']
  #allocation2 [shape = 'f32[18,18,4]{2,1,0:T(8,128)}', space=vmem, size = 0x36000, scoped, tag = 'scratch operand']
  #allocation3 [shape = 'f32[256,8]{1,0:T(8,128)}', space=vmem, size = 0x20000, scoped, tag = 'scratch operand']
  #allocation4 [shape = 'f32[256,8]{1,0:T(8,128)}', space=vmem, size = 0x20000, scoped, tag = 'scratch operand']
  %s0 = inlined_call_operand.vmem [shape: f32[2,16,16,4], index: 0, kind: input, shape index: {}]
  %s1 = inlined_call_operand.vmem [shape: f32[2,16,16,4], index: 1, kind: input, shape index: {}]
  %s2 = inlined_call_operand.vmem [shape: f32[2,16,16,4], index: 2, kind: input, shape index: {}]
  %s3 = inlined_call_operand.vmem [shape: f32[4,64], index: 3, kind: input, shape index: {}]
  %s4 = inlined_call_operand.vmem [shape: f32[1,8], index: 4, kind: input, shape index: {}]
  %s5 = inlined_call_operand.vmem [shape: f32[2,16,2,16,8], index: 5, kind: output, shape index: {}]
  %s6 = sld [smem:[#allocation0]]
  $region57: #{tpu_custom_call.1} parent=0
    _
  %s8 = ssub.s32 1, %s6
  %s9 = scalar_select 0, %s8, %s6
  loop: start=0, step=1, limit=4
  $region2: #{tpu_custom_call.1} parent=0 // loop_pre_header
    _
  $region3: #{tpu_custom_call.1} parent=0 // loop_header
    %s11 = sphi 0, %s15
    %p12 = scmp.ge.s32.totalorder %s11, 4
    %s18 = sphi 0, %s30
    %s19 = sphi 0, %s26
    %s20 = sphi 0, %s18
    %s21 = sphi 0, %s19
    %s22 = sphi 0, %s20
    %s23 = sphi 0, %s21
    %s35 = sphi 0, %s37
    %s38 = sphi 0, %s35
    %s39 = sphi 0, %s38
    %s55 = sphi 0, %s39
    %s71 = sphi 0, %s73
    %s74 = sphi 0, %s71
    %s75 = sphi 0, %s74
    %s91 = sphi 0, %s75
    %s107 = sphi 0, %s109
    %s110 = sphi 0, %s107
    %s111 = sphi 0, %s110
    %s127 = sphi 0, %s111
    %s131 = sphi 0, %s131
    %s133 = sphi 0, %s131
    %s134 = sphi 0, %s133
    %s148 = sphi 0, %s134
    %s152 = sphi 0, %s152
    %s154 = sphi 0, %s152
    %s155 = sphi 0, %s154
    %s169 = sphi 0, %s155
    %s177 = sphi 0, %s179
    %s180 = sphi 0, %s177
    %s181 = sphi 0, %s180
    %s197 = sphi 0, %s181
  $region4: #{tpu_custom_call.1} parent=0 // loop_header_branch
    %14 = sbr.rel (%p12) target = $region8
  $region5: #{tpu_custom_call.1} parent=0 // loop_body
    %s16 = ssub.s32 %s11, 1
    %s17 = ssub.s32 %s11, 2
    %s24 = sadd.s32 1, %s19
    %p25 = scmp.ge.s32.totalorder %s24, 1
    %s26 = scalar_select %p25, 0, %s24
    %s27 = sadd.s32 1, %s18
    %s28 = scalar_select %p25, %s27, %s18
    %p29 = scmp.ge.s32.totalorder %s28, 2
    %s30 = scalar_select %p29, 0, %s28
    %s31 = ssub.s32 %s18, %s30
    %s32 = ssub.s32 %s19, %s26
    %s33 = sor.u32 %s31, %s32
    %p34 = scmp.eq.s32.totalorder %s33, 0
    %s36 = sadd.s32 %s35, 1
    %s37 = scalar_select %p34, %s35, %s36
    %p40 = pneg %p34
    %p41 = scmp.eq.s32.totalorder %s11, 1
    %p42 = por %p40, %p41
    %p43 = scmp.ne.s32.totalorder %s35, %s38
    %p44 = scmp.eq.s32.totalorder %s11, 0
    %p45 = por %p43, %p44
    %p46 = scmp.ne.s32.totalorder %s35, %s38
    %p47 = scmp.eq.s32.totalorder %s16, 1
    %p48 = por %p46, %p47
    %p49 = scmp.ne.s32.totalorder %s38, %s39
    %p50 = scmp.eq.s32.totalorder %s16, 0
    %p51 = por %p49, %p50
    %p52 = scmp.ne.s32.totalorder %s38, %s39
    %p53 = scmp.eq.s32.totalorder %s17, 1
    %p54 = por %p52, %p53
    %p56 = scmp.ne.s32.totalorder %s39, %s55
    %p57 = scmp.eq.s32.totalorder %s17, 0
    %p58 = por %p56, %p57
    %s59 = smul.u32 %s19, 16
    %s60 = ssub.s32 %s59, 1
    %p61 = scmp.gt.s32.totalorder %s60, 0
    %s62 = scalar_select %p61, %s60, 0
    %s63 = smul.u32 %s26, 16
    %s64 = ssub.s32 %s63, 1
    %p65 = scmp.gt.s32.totalorder %s64, 0
    %s66 = scalar_select %p65, %s64, 0
    %s67 = ssub.s32 %s18, %s30
    %s68 = ssub.s32 %s62, %s66
    %s69 = sor.u32 %s67, %s68
    %p70 = scmp.eq.s32.totalorder %s69, 0
    %s72 = sadd.s32 %s71, 1
    %s73 = scalar_select %p70, %s71, %s72
    %p76 = pneg %p70
    %p77 = scmp.eq.s32.totalorder %s11, 1
    %p78 = por %p76, %p77
    %p79 = scmp.ne.s32.totalorder %s71, %s74
    %p80 = scmp.eq.s32.totalorder %s11, 0
    %p81 = por %p79, %p80
    %p82 = scmp.ne.s32.totalorder %s71, %s74
    %p83 = scmp.eq.s32.totalorder %s16, 1
    %p84 = por %p82, %p83
    %p85 = scmp.ne.s32.totalorder %s74, %s75
    %p86 = scmp.eq.s32.totalorder %s16, 0
    %p87 = por %p85, %p86
    %p88 = scmp.ne.s32.totalorder %s74, %s75
    %p89 = scmp.eq.s32.totalorder %s17, 1
    %p90 = por %p88, %p89
    %p92 = scmp.ne.s32.totalorder %s75, %s91
    %p93 = scmp.eq.s32.totalorder %s17, 0
    %p94 = por %p92, %p93
    %s95 = smul.u32 %s19, 16
    %s96 = sadd.s32 %s95, 16
    %p97 = scmp.lt.s32.totalorder %s96, 15
    %s98 = scalar_select %p97, %s96, 15
    %s99 = smul.u32 %s26, 16
    %s100 = sadd.s32 %s99, 16
    %p101 = scmp.lt.s32.totalorder %s100, 15
    %s102 = scalar_select %p101, %s100, 15
    %s103 = ssub.s32 %s18, %s30
    %s104 = ssub.s32 %s98, %s102
    %s105 = sor.u32 %s103, %s104
    %p106 = scmp.eq.s32.totalorder %s105, 0
    %s108 = sadd.s32 %s107, 1
    %s109 = scalar_select %p106, %s107, %s108
    %p112 = pneg %p106
    %p113 = scmp.eq.s32.totalorder %s11, 1
    %p114 = por %p112, %p113
    %p115 = scmp.ne.s32.totalorder %s107, %s110
    %p116 = scmp.eq.s32.totalorder %s11, 0
    %p117 = por %p115, %p116
    %p118 = scmp.ne.s32.totalorder %s107, %s110
    %p119 = scmp.eq.s32.totalorder %s16, 1
    %p120 = por %p118, %p119
    %p121 = scmp.ne.s32.totalorder %s110, %s111
    %p122 = scmp.eq.s32.totalorder %s16, 0
    %p123 = por %p121, %p122
    %p124 = scmp.ne.s32.totalorder %s110, %s111
    %p125 = scmp.eq.s32.totalorder %s17, 1
    %p126 = por %p124, %p125
    %p128 = scmp.ne.s32.totalorder %s111, %s127
    %p129 = scmp.eq.s32.totalorder %s17, 0
    %p130 = por %p128, %p129
    %s132 = sadd.s32 %s131, 1
    %p135 = scmp.eq.s32.totalorder %s11, 1
    %p136 = scmp.ne.s32.totalorder %s131, %s133
    %p137 = scmp.eq.s32.totalorder %s11, 0
    %p138 = por %p136, %p137
    %p139 = scmp.ne.s32.totalorder %s131, %s133
    %p140 = scmp.eq.s32.totalorder %s16, 1
    %p141 = por %p139, %p140
    %p142 = scmp.ne.s32.totalorder %s133, %s134
    %p143 = scmp.eq.s32.totalorder %s16, 0
    %p144 = por %p142, %p143
    %p145 = scmp.ne.s32.totalorder %s133, %s134
    %p146 = scmp.eq.s32.totalorder %s17, 1
    %p147 = por %p145, %p146
    %p149 = scmp.ne.s32.totalorder %s134, %s148
    %p150 = scmp.eq.s32.totalorder %s17, 0
    %p151 = por %p149, %p150
    %s153 = sadd.s32 %s152, 1
    %p156 = scmp.eq.s32.totalorder %s11, 1
    %p157 = scmp.ne.s32.totalorder %s152, %s154
    %p158 = scmp.eq.s32.totalorder %s11, 0
    %p159 = por %p157, %p158
    %p160 = scmp.ne.s32.totalorder %s152, %s154
    %p161 = scmp.eq.s32.totalorder %s16, 1
    %p162 = por %p160, %p161
    %p163 = scmp.ne.s32.totalorder %s154, %s155
    %p164 = scmp.eq.s32.totalorder %s16, 0
    %p165 = por %p163, %p164
    %p166 = scmp.ne.s32.totalorder %s154, %s155
    %p167 = scmp.eq.s32.totalorder %s17, 1
    %p168 = por %p166, %p167
    %p170 = scmp.ne.s32.totalorder %s155, %s169
    %p171 = scmp.eq.s32.totalorder %s17, 0
    %p172 = por %p170, %p171
    %s173 = ssub.s32 %s18, %s30
    %s174 = ssub.s32 %s19, %s26
    %s175 = sor.u32 %s173, %s174
    %p176 = scmp.eq.s32.totalorder %s175, 0
    %s178 = sadd.s32 %s177, 1
    %s179 = scalar_select %p176, %s177, %s178
    %p182 = pneg %p176
    %p183 = scmp.eq.s32.totalorder %s11, 1
    %p184 = por %p182, %p183
    %p185 = scmp.ne.s32.totalorder %s177, %s180
    %p186 = scmp.eq.s32.totalorder %s11, 0
    %p187 = por %p185, %p186
    %p188 = scmp.ne.s32.totalorder %s177, %s180
    %p189 = scmp.eq.s32.totalorder %s16, 1
    %p190 = por %p188, %p189
    %p191 = scmp.ne.s32.totalorder %s180, %s181
    %p192 = scmp.eq.s32.totalorder %s16, 0
    %p193 = por %p191, %p192
    %p194 = scmp.ne.s32.totalorder %s180, %s181
    %p195 = scmp.eq.s32.totalorder %s17, 1
    %p196 = por %p194, %p195
    %p198 = scmp.ne.s32.totalorder %s181, %s197
    %p199 = scmp.eq.s32.totalorder %s17, 0
    %p200 = por %p198, %p199
    %p201 = scmp.le.s32.totalorder 1, %s11
    %p202 = scmp.lt.s32.totalorder %s11, 3
    %p203 = pnand %p201, %p202
    %p204 = pneg %p203
    // Predicated region
    $region9: #{tpu_custom_call.1} parent=5 // pred_check
      _
    $region10: #{tpu_custom_call.1} parent=5 // pred_check_branch
      %206 = sbr.rel (%p203) target = $region12
    $region11: #{tpu_custom_call.1} parent=5 // pred_region
      %s207 = ssub.s32 %s11, 1
      // Predicated region
      $region13: #{tpu_custom_call.1} parent=11 // pred_check
        %p208 = pneg %p144
      $region14: #{tpu_custom_call.1} parent=11 // pred_check_branch
        %210 = sbr.rel (%p208) target = $region16
      $region15: #{tpu_custom_call.1} parent=11 // pred_region
        _
      $region16: #{tpu_custom_call.1} parent=11 // pred_fallthru
        _
      // Predicated region
      $region17: #{tpu_custom_call.1} parent=11 // pred_check
        %p211 = pneg %p165
      $region18: #{tpu_custom_call.1} parent=11 // pred_check_branch
        %213 = sbr.rel (%p211) target = $region20
      $region19: #{tpu_custom_call.1} parent=11 // pred_region
        _
      $region20: #{tpu_custom_call.1} parent=11 // pred_fallthru
        _
    $region12: #{tpu_custom_call.1} parent=5 // pred_fallthru
      _
    %p214 = scmp.lt.s32.totalorder %s11, 2
    // Predicated region
    $region21: #{tpu_custom_call.1} parent=5 // pred_check
      %p215 = pneg %p214
    $region22: #{tpu_custom_call.1} parent=5 // pred_check_branch
      %217 = sbr.rel (%p215) target = $region24
    $region23: #{tpu_custom_call.1} parent=5 // pred_region
      // Predicated region
      $region25: #{tpu_custom_call.1} parent=23 // pred_check
        %p218 = pneg %p45
      $region26: #{tpu_custom_call.1} parent=23 // pred_check_branch
        %220 = sbr.rel (%p218) target = $region28
      $region27: #{tpu_custom_call.1} parent=23 // pred_region
        %s221 = smul.u32 16, %s19
        %p222 = scmp.lt.s32.totalorder %s18, 1
        %s223 = scalar_select %p222, %s18, 1
        %p224 = scmp.lt.s32.totalorder %s221, 15
        %s225 = scalar_select %p224, %s221, 15
        %s226 = smul.addr %s225, 2
        %s227 = smul.addr %s223, 32
        %s228 = sadd.s32 %s226, %s227
        %s229 = smul.addr %s228, 8
        %s230 = scalar_lea.vmem %s0, %s229
        %s231 = smul.u32 16, %s19
      $region28: #{tpu_custom_call.1} parent=23 // pred_fallthru
        _
      // Predicated region
      $region29: #{tpu_custom_call.1} parent=23 // pred_check
        %p232 = pneg %p81
      $region30: #{tpu_custom_call.1} parent=23 // pred_check_branch
        %234 = sbr.rel (%p232) target = $region32
      $region31: #{tpu_custom_call.1} parent=23 // pred_region
        %s235 = smul.u32 %s19, 16
        %s236 = ssub.s32 %s235, 1
        %p237 = scmp.gt.s32.totalorder %s236, 0
        %s238 = scalar_select %p237, %s236, 0
        %p239 = scmp.lt.s32.totalorder %s18, 1
        %s240 = scalar_select %p239, %s18, 1
        %p241 = scmp.lt.s32.totalorder %s238, 15
        %s242 = scalar_select %p241, %s238, 15
        %s243 = smul.addr %s242, 2
        %s244 = smul.addr %s240, 32
        %s245 = sadd.s32 %s243, %s244
        %s246 = smul.addr %s245, 8
        %s247 = scalar_lea.vmem %s1, %s246
        %s248 = smul.u32 %s19, 16
        %s249 = ssub.s32 %s248, 1
        %p250 = scmp.gt.s32.totalorder %s249, 0
        %s251 = scalar_select %p250, %s249, 0
      $region32: #{tpu_custom_call.1} parent=23 // pred_fallthru
        _
      // Predicated region
      $region33: #{tpu_custom_call.1} parent=23 // pred_check
        %p252 = pneg %p117
      $region34: #{tpu_custom_call.1} parent=23 // pred_check_branch
        %254 = sbr.rel (%p252) target = $region36
      $region35: #{tpu_custom_call.1} parent=23 // pred_region
        %s255 = smul.u32 %s19, 16
        %s256 = sadd.s32 %s255, 16
        %p257 = scmp.lt.s32.totalorder %s256, 15
        %s258 = scalar_select %p257, %s256, 15
        %p259 = scmp.lt.s32.totalorder %s18, 1
        %s260 = scalar_select %p259, %s18, 1
        %p261 = scmp.lt.s32.totalorder %s258, 15
        %s262 = scalar_select %p261, %s258, 15
        %s263 = smul.addr %s262, 2
        %s264 = smul.addr %s260, 32
        %s265 = sadd.s32 %s263, %s264
        %s266 = smul.addr %s265, 8
        %s267 = scalar_lea.vmem %s2, %s266
        %s268 = smul.u32 %s19, 16
        %s269 = sadd.s32 %s268, 16
        %p270 = scmp.lt.s32.totalorder %s269, 15
        %s271 = scalar_select %p270, %s269, 15
      $region36: #{tpu_custom_call.1} parent=23 // pred_fallthru
        _
    $region24: #{tpu_custom_call.1} parent=5 // pred_fallthru
      _
    %p272 = scmp.le.s32.totalorder 1, %s11
    %p273 = scmp.lt.s32.totalorder %s11, 3
    %p274 = pnand %p272, %p273
    %p275 = pneg %p274
    // Predicated region
    $region37: #{tpu_custom_call.1} parent=5 // pred_check
      _
    $region38: #{tpu_custom_call.1} parent=5 // pred_check_branch
      %277 = sbr.rel (%p274) target = $region40
    $region39: #{tpu_custom_call.1} parent=5 // pred_region
      %s278 = ssub.s32 %s11, 1
      %s279 = smul.u32 16, %s21
      %p280 = scmp.lt.s32.totalorder %s20, 1
      %s281 = scalar_select %p280, %s20, 1
      %p282 = scmp.lt.s32.totalorder %s279, 15
      %s283 = scalar_select %p282, %s279, 15
      %s284 = smul.addr %s283, 2
      %s285 = smul.addr %s281, 32
      %s286 = sadd.s32 %s284, %s285
      %s287 = smul.addr %s286, 8
      %s288 = scalar_lea.vmem %s0, %s287
      %p289 = pneg %p51
      %p290 = pneg %p48
      %s291 = smul.u32 %s21, 16
      %s292 = ssub.s32 %s291, 1
      %p293 = scmp.gt.s32.totalorder %s292, 0
      %s294 = scalar_select %p293, %s292, 0
      %p295 = scmp.lt.s32.totalorder %s20, 1
      %s296 = scalar_select %p295, %s20, 1
      %p297 = scmp.lt.s32.totalorder %s294, 15
      %s298 = scalar_select %p297, %s294, 15
      %s299 = smul.addr %s298, 2
      %s300 = smul.addr %s296, 32
      %s301 = sadd.s32 %s299, %s300
      %s302 = smul.addr %s301, 8
      %s303 = scalar_lea.vmem %s1, %s302
      %p304 = pneg %p87
      %p305 = pneg %p84
      %s306 = smul.u32 %s21, 16
      %s307 = sadd.s32 %s306, 16
      %p308 = scmp.lt.s32.totalorder %s307, 15
      %s309 = scalar_select %p308, %s307, 15
      %p310 = scmp.lt.s32.totalorder %s20, 1
      %s311 = scalar_select %p310, %s20, 1
      %p312 = scmp.lt.s32.totalorder %s309, 15
      %s313 = scalar_select %p312, %s309, 15
      %s314 = smul.addr %s313, 2
      %s315 = smul.addr %s311, 32
      %s316 = sadd.s32 %s314, %s315
      %s317 = smul.addr %s316, 8
      %s318 = scalar_lea.vmem %s2, %s317
      %p319 = pneg %p123
      %p320 = pneg %p120
      %p321 = pneg %p144
      %p322 = pneg %p141
      %p323 = pneg %p165
      %p324 = pneg %p162
      %p325 = pneg %p193
      %p326 = pneg %p190
      %s327 = smul.u32 16, %s21
      %p328 = scmp.lt.s32.totalorder %s20, 1
      %s329 = scalar_select %p328, %s20, 1
      %p330 = scmp.lt.s32.totalorder %s327, 15
      %s331 = scalar_select %p330, %s327, 15
      %s332 = smul.addr %s331, 4
      %s333 = smul.addr %s329, 64
      %s334 = sadd.s32 %s332, %s333
      %s335 = smul.addr %s334, 8
      %s336 = scalar_lea.vmem %s5, %s335
      %s337 = smul.u32 16, %s21
      %p338 = scmp.lt.s32.totalorder %s20, 1
      %s339 = scalar_select %p338, %s20, 1
      %p340 = scmp.lt.s32.totalorder %s337, 15
      %s341 = scalar_select %p340, %s337, 15
      %s342 = smul.addr %s341, 2
      %s343 = smul.addr %s339, 32
      %s344 = sadd.s32 %s342, %s343
      %s345 = smul.addr %s344, 8
      %s346 = scalar_lea.vmem %s0, %s345
      %s347 = smul.u32 16, %s21
      %s348 = smul.u32 %s21, 16
      %s349 = ssub.s32 %s348, 1
      %p350 = scmp.gt.s32.totalorder %s349, 0
      %s351 = scalar_select %p350, %s349, 0
      %p352 = scmp.lt.s32.totalorder %s20, 1
      %s353 = scalar_select %p352, %s20, 1
      %p354 = scmp.lt.s32.totalorder %s351, 15
      %s355 = scalar_select %p354, %s351, 15
      %s356 = smul.addr %s355, 2
      %s357 = smul.addr %s353, 32
      %s358 = sadd.s32 %s356, %s357
      %s359 = smul.addr %s358, 8
      %s360 = scalar_lea.vmem %s1, %s359
      %s361 = smul.u32 %s21, 16
      %s362 = ssub.s32 %s361, 1
      %p363 = scmp.gt.s32.totalorder %s362, 0
      %s364 = scalar_select %p363, %s362, 0
      %s365 = smul.u32 %s21, 16
      %s366 = sadd.s32 %s365, 16
      %p367 = scmp.lt.s32.totalorder %s366, 15
      %s368 = scalar_select %p367, %s366, 15
      %p369 = scmp.lt.s32.totalorder %s20, 1
      %s370 = scalar_select %p369, %s20, 1
      %p371 = scmp.lt.s32.totalorder %s368, 15
      %s372 = scalar_select %p371, %s368, 15
      %s373 = smul.addr %s372, 2
      %s374 = smul.addr %s370, 32
      %s375 = sadd.s32 %s373, %s374
      %s376 = smul.addr %s375, 8
      %s377 = scalar_lea.vmem %s2, %s376
      %s378 = smul.u32 %s21, 16
      %s379 = sadd.s32 %s378, 16
      %p380 = scmp.lt.s32.totalorder %s379, 15
      %s381 = scalar_select %p380, %s379, 15
      %s382 = smul.u32 16, %s21
      %p383 = scmp.lt.s32.totalorder %s20, 1
      %s384 = scalar_select %p383, %s20, 1
      %p385 = scmp.lt.s32.totalorder %s382, 15
      %s386 = scalar_select %p385, %s382, 15
      %s387 = smul.addr %s386, 4
      %s388 = smul.addr %s384, 64
      %s389 = sadd.s32 %s387, %s388
      %s390 = smul.addr %s389, 8
      %s391 = scalar_lea.vmem %s5, %s390
      %s392 = smul.u32 16, %s21
      %vm393 = vcmask 24576
      %394 = vst.msk [vmem:[#allocation2] sm:$0x1] %vm393, 0.0
      %395 = vst.msk [vmem:[#allocation2 + $0x18] sm:$0x1] %vm393, 0.0
      %396 = vst.msk [vmem:[#allocation2 + $0x30] sm:$0x1] %vm393, 0.0
      %397 = vst.msk [vmem:[#allocation2 + $0x48] sm:$0x1] %vm393, 0.0
      %398 = vst.msk [vmem:[#allocation2 + $0x60] sm:$0x1] %vm393, 0.0
      %399 = vst.msk [vmem:[#allocation2 + $0x78] sm:$0x1] %vm393, 0.0
      %400 = vst.msk [vmem:[#allocation2 + $0x90] sm:$0x1] %vm393, 0.0
      %401 = vst.msk [vmem:[#allocation2 + $0xa8] sm:$0x1] %vm393, 0.0
      %402 = vst.msk [vmem:[#allocation2 + $0xc0] sm:$0x1] %vm393, 0.0
      %403 = vst.msk [vmem:[#allocation2 + $0xd8] sm:$0x1] %vm393, 0.0
      %404 = vst.msk [vmem:[#allocation2 + $0xf0] sm:$0x1] %vm393, 0.0
      %405 = vst.msk [vmem:[#allocation2 + $0x108] sm:$0x1] %vm393, 0.0
      %406 = vst.msk [vmem:[#allocation2 + $0x120] sm:$0x1] %vm393, 0.0
      %407 = vst.msk [vmem:[#allocation2 + $0x138] sm:$0x1] %vm393, 0.0
      %408 = vst.msk [vmem:[#allocation2 + $0x150] sm:$0x1] %vm393, 0.0
      %409 = vst.msk [vmem:[#allocation2 + $0x168] sm:$0x1] %vm393, 0.0
      %410 = vst.msk [vmem:[#allocation2 + $0x180] sm:$0x1] %vm393, 0.0
      %411 = vst.msk [vmem:[#allocation2 + $0x198] sm:$0x1] %vm393, 0.0
      %412 = vst.msk [vmem:[#allocation2 + $0x11] sm:$0x1] %vm393, 0.0
      %413 = vst.msk [vmem:[#allocation2 + $0x29] sm:$0x1] %vm393, 0.0
      %414 = vst.msk [vmem:[#allocation2 + $0x41] sm:$0x1] %vm393, 0.0
      %415 = vst.msk [vmem:[#allocation2 + $0x59] sm:$0x1] %vm393, 0.0
      %416 = vst.msk [vmem:[#allocation2 + $0x71] sm:$0x1] %vm393, 0.0
      %417 = vst.msk [vmem:[#allocation2 + $0x89] sm:$0x1] %vm393, 0.0
      %418 = vst.msk [vmem:[#allocation2 + $0xa1] sm:$0x1] %vm393, 0.0
      %419 = vst.msk [vmem:[#allocation2 + $0xb9] sm:$0x1] %vm393, 0.0
      %420 = vst.msk [vmem:[#allocation2 + $0xd1] sm:$0x1] %vm393, 0.0
      %421 = vst.msk [vmem:[#allocation2 + $0xe9] sm:$0x1] %vm393, 0.0
      %422 = vst.msk [vmem:[#allocation2 + $0x101] sm:$0x1] %vm393, 0.0
      %423 = vst.msk [vmem:[#allocation2 + $0x119] sm:$0x1] %vm393, 0.0
      %424 = vst.msk [vmem:[#allocation2 + $0x131] sm:$0x1] %vm393, 0.0
      %425 = vst.msk [vmem:[#allocation2 + $0x149] sm:$0x1] %vm393, 0.0
      %426 = vst.msk [vmem:[#allocation2 + $0x161] sm:$0x1] %vm393, 0.0
      %427 = vst.msk [vmem:[#allocation2 + $0x179] sm:$0x1] %vm393, 0.0
      %428 = vst.msk [vmem:[#allocation2 + $0x191] sm:$0x1] %vm393, 0.0
      %429 = vst.msk [vmem:[#allocation2 + $0x1a9] sm:$0x1] %vm393, 0.0
      %v430 = vld [vmem:[%s346] sm:$0xff]
      %v431 = vld [vmem:[%s346 + $0x8] sm:$0xff]
      %v432 = vld [vmem:[%s346 + $0x10] sm:$0xff]
      %v433 = vld [vmem:[%s346 + $0x18] sm:$0xff]
      %v434 = vld [vmem:[%s346 + $0x20] sm:$0xff]
      %v435 = vld [vmem:[%s346 + $0x28] sm:$0xff]
      %v436 = vld [vmem:[%s346 + $0x30] sm:$0xff]
      %v437 = vld [vmem:[%s346 + $0x38] sm:$0xff]
      %v438 = vld [vmem:[%s346 + $0x40] sm:$0xff]
      %v439 = vld [vmem:[%s346 + $0x48] sm:$0xff]
      %v440 = vld [vmem:[%s346 + $0x50] sm:$0xff]
      %v441 = vld [vmem:[%s346 + $0x58] sm:$0xff]
      %v442 = vld [vmem:[%s346 + $0x60] sm:$0xff]
      %v443 = vld [vmem:[%s346 + $0x68] sm:$0xff]
      %v444 = vld [vmem:[%s346 + $0x70] sm:$0xff]
      %v445 = vld [vmem:[%s346 + $0x78] sm:$0xff]
      %v446 = vld [vmem:[%s346 + $0x80] sm:$0xff]
      %v447 = vld [vmem:[%s346 + $0x88] sm:$0xff]
      %v448 = vld [vmem:[%s346 + $0x90] sm:$0xff]
      %v449 = vld [vmem:[%s346 + $0x98] sm:$0xff]
      %v450 = vld [vmem:[%s346 + $0xa0] sm:$0xff]
      %v451 = vld [vmem:[%s346 + $0xa8] sm:$0xff]
      %v452 = vld [vmem:[%s346 + $0xb0] sm:$0xff]
      %v453 = vld [vmem:[%s346 + $0xb8] sm:$0xff]
      %v454 = vld [vmem:[%s346 + $0xc0] sm:$0xff]
      %v455 = vld [vmem:[%s346 + $0xc8] sm:$0xff]
      %v456 = vld [vmem:[%s346 + $0xd0] sm:$0xff]
      %v457 = vld [vmem:[%s346 + $0xd8] sm:$0xff]
      %v458 = vld [vmem:[%s346 + $0xe0] sm:$0xff]
      %v459 = vld [vmem:[%s346 + $0xe8] sm:$0xff]
      %v460 = vld [vmem:[%s346 + $0xf0] sm:$0xff]
      %v461 = vld [vmem:[%s346 + $0xf8] sm:$0xff]
      %s462 = scalar_lea.vmem [#allocation2], 24
      %vm463 = vcmask 31744
      %464 = vst.msk [vmem:[%s462 + $0x1] sm:$0xff] %vm463, %v430
      %465 = vst.msk [vmem:[%s462 + $0x9] sm:$0xff] %vm463, %v431
      %466 = vst.msk [vmem:[%s462 + $0x19] sm:$0xff] %vm463, %v432
      %467 = vst.msk [vmem:[%s462 + $0x21] sm:$0xff] %vm463, %v433
      %468 = vst.msk [vmem:[%s462 + $0x31] sm:$0xff] %vm463, %v434
      %469 = vst.msk [vmem:[%s462 + $0x39] sm:$0xff] %vm463, %v435
      %470 = vst.msk [vmem:[%s462 + $0x49] sm:$0xff] %vm463, %v436
      %471 = vst.msk [vmem:[%s462 + $0x51] sm:$0xff] %vm463, %v437
      %472 = vst.msk [vmem:[%s462 + $0x61] sm:$0xff] %vm463, %v438
      %473 = vst.msk [vmem:[%s462 + $0x69] sm:$0xff] %vm463, %v439
      %474 = vst.msk [vmem:[%s462 + $0x79] sm:$0xff] %vm463, %v440
      %475 = vst.msk [vmem:[%s462 + $0x81] sm:$0xff] %vm463, %v441
      %476 = vst.msk [vmem:[%s462 + $0x91] sm:$0xff] %vm463, %v442
      %477 = vst.msk [vmem:[%s462 + $0x99] sm:$0xff] %vm463, %v443
      %478 = vst.msk [vmem:[%s462 + $0xa9] sm:$0xff] %vm463, %v444
      %479 = vst.msk [vmem:[%s462 + $0xb1] sm:$0xff] %vm463, %v445
      %480 = vst.msk [vmem:[%s462 + $0xc1] sm:$0xff] %vm463, %v446
      %481 = vst.msk [vmem:[%s462 + $0xc9] sm:$0xff] %vm463, %v447
      %482 = vst.msk [vmem:[%s462 + $0xd9] sm:$0xff] %vm463, %v448
      %483 = vst.msk [vmem:[%s462 + $0xe1] sm:$0xff] %vm463, %v449
      %484 = vst.msk [vmem:[%s462 + $0xf1] sm:$0xff] %vm463, %v450
      %485 = vst.msk [vmem:[%s462 + $0xf9] sm:$0xff] %vm463, %v451
      %486 = vst.msk [vmem:[%s462 + $0x109] sm:$0xff] %vm463, %v452
      %487 = vst.msk [vmem:[%s462 + $0x111] sm:$0xff] %vm463, %v453
      %488 = vst.msk [vmem:[%s462 + $0x121] sm:$0xff] %vm463, %v454
      %489 = vst.msk [vmem:[%s462 + $0x129] sm:$0xff] %vm463, %v455
      %490 = vst.msk [vmem:[%s462 + $0x139] sm:$0xff] %vm463, %v456
      %491 = vst.msk [vmem:[%s462 + $0x141] sm:$0xff] %vm463, %v457
      %492 = vst.msk [vmem:[%s462 + $0x151] sm:$0xff] %vm463, %v458
      %493 = vst.msk [vmem:[%s462 + $0x159] sm:$0xff] %vm463, %v459
      %494 = vst.msk [vmem:[%s462 + $0x169] sm:$0xff] %vm463, %v460
      %495 = vst.msk [vmem:[%s462 + $0x171] sm:$0xff] %vm463, %v461
      %v496 = vld [vmem:[%s360] sm:$0xff]
      %v497 = vld [vmem:[%s360 + $0x8] sm:$0xff]
      %498 = vst.msk [vmem:[#allocation2 + $0x1] sm:$0xff] %vm463, %v496
      %499 = vst.msk [vmem:[#allocation2 + $0x9] sm:$0xff] %vm463, %v497
      %v500 = vld [vmem:[%s377] sm:$0xff]
      %v501 = vld [vmem:[%s377 + $0x8] sm:$0xff]
      %s502 = scalar_lea.vmem [#allocation2], 408
      %503 = vst.msk [vmem:[%s502 + $0x1] sm:$0xff] %vm463, %v500
      %504 = vst.msk [vmem:[%s502 + $0x9] sm:$0xff] %vm463, %v501
      %p505 = scmp.eq.s32.totalorder %s21, 0
      // Predicated region
      $region41: #{tpu_custom_call.1} parent=39 // pred_check
        %p506 = pneg %p505
      $region42: #{tpu_custom_call.1} parent=39 // pred_check_branch
        %508 = sbr.rel (%p506) target = $region44
      $region43: #{tpu_custom_call.1} parent=39 // pred_region
        %509 = vst.msk [vmem:[#allocation2 + $0x1] sm:$0xff] %vm463, 0.0
        %510 = vst.msk [vmem:[#allocation2 + $0x9] sm:$0xff] %vm463, 0.0
        %511 = vst.msk [vmem:[%s502 + $0x1] sm:$0xff] %vm463, 0.0
        %512 = vst.msk [vmem:[%s502 + $0x9] sm:$0xff] %vm463, 0.0
      $region44: #{tpu_custom_call.1} parent=39 // pred_fallthru
        _
      %v513 = vld [vmem:[%s4] sm:$0x1]
      %v514 = vld [vmem:[%s462 + $0x1] sm:$0xff]
      %v515 = vld [vmem:[%s462 + $0x9] sm:$0xff]
      %v516 = vld [vmem:[%s462 + $0x19] sm:$0xff]
      %v517 = vld [vmem:[%s462 + $0x21] sm:$0xff]
      %v518 = vld [vmem:[%s462 + $0x31] sm:$0xff]
      %v519 = vld [vmem:[%s462 + $0x39] sm:$0xff]
      %v520 = vld [vmem:[%s462 + $0x49] sm:$0xff]
      %v521 = vld [vmem:[%s462 + $0x51] sm:$0xff]
      %v522 = vld [vmem:[%s462 + $0x61] sm:$0xff]
      %v523 = vld [vmem:[%s462 + $0x69] sm:$0xff]
      %v524 = vld [vmem:[%s462 + $0x79] sm:$0xff]
      %v525 = vld [vmem:[%s462 + $0x81] sm:$0xff]
      %v526 = vld [vmem:[%s462 + $0x91] sm:$0xff]
      %v527 = vld [vmem:[%s462 + $0x99] sm:$0xff]
      %v528 = vld [vmem:[%s462 + $0xa9] sm:$0xff]
      %v529 = vld [vmem:[%s462 + $0xb1] sm:$0xff]
      %v530 = vld [vmem:[%s462 + $0xc1] sm:$0xff]
      %v531 = vld [vmem:[%s462 + $0xc9] sm:$0xff]
      %v532 = vld [vmem:[%s462 + $0xd9] sm:$0xff]
      %v533 = vld [vmem:[%s462 + $0xe1] sm:$0xff]
      %v534 = vld [vmem:[%s462 + $0xf1] sm:$0xff]
      %v535 = vld [vmem:[%s462 + $0xf9] sm:$0xff]
      %v536 = vld [vmem:[%s462 + $0x109] sm:$0xff]
      %v537 = vld [vmem:[%s462 + $0x111] sm:$0xff]
      %v538 = vld [vmem:[%s462 + $0x121] sm:$0xff]
      %v539 = vld [vmem:[%s462 + $0x129] sm:$0xff]
      %v540 = vld [vmem:[%s462 + $0x139] sm:$0xff]
      %v541 = vld [vmem:[%s462 + $0x141] sm:$0xff]
      %v542 = vld [vmem:[%s462 + $0x151] sm:$0xff]
      %v543 = vld [vmem:[%s462 + $0x159] sm:$0xff]
      %v544 = vld [vmem:[%s462 + $0x169] sm:$0xff]
      %v545 = vld [vmem:[%s462 + $0x171] sm:$0xff]
      %v546 = vld [vmem:[%s3] sm:$0xf]
      %548 = vrot.lane.b32.xlu0 %v546, 104
      %v549 = vpop.permute.xlu0 %548
      %v551 = vsel %vm463, %v514, 0
      %v554 = vsel %vm463, %v515, 0
      %v557 = vsel %vm463, %v516, 0
      %v560 = vsel %vm463, %v517, 0
      %v563 = vsel %vm463, %v518, 0
      %v566 = vsel %vm463, %v519, 0
      %v569 = vsel %vm463, %v520, 0
      %v572 = vsel %vm463, %v521, 0
      %v575 = vsel %vm463, %v522, 0
      %v578 = vsel %vm463, %v523, 0
      %v581 = vsel %vm463, %v524, 0
      %v584 = vsel %vm463, %v525, 0
      %v587 = vsel %vm463, %v526, 0
      %v590 = vsel %vm463, %v527, 0
      %v593 = vsel %vm463, %v528, 0
      %v596 = vsel %vm463, %v529, 0
      %v599 = vsel %vm463, %v530, 0
      %v602 = vsel %vm463, %v531, 0
      %v605 = vsel %vm463, %v532, 0
      %v608 = vsel %vm463, %v533, 0
      %v611 = vsel %vm463, %v534, 0
      %v614 = vsel %vm463, %v535, 0
      %v617 = vsel %vm463, %v536, 0
      %v620 = vsel %vm463, %v537, 0
      %v623 = vsel %vm463, %v538, 0
      %v626 = vsel %vm463, %v539, 0
      %v629 = vsel %vm463, %v540, 0
      %v632 = vsel %vm463, %v541, 0
      %v635 = vsel %vm463, %v542, 0
      %v638 = vsel %vm463, %v543, 0
      %v641 = vsel %vm463, %v544, 0
      %v644 = vsel %vm463, %v545, 0
      %vm646 = vcmask 1043456
      %v647 = vsel %vm646, %v549, 0
      %649 = vmatprep.subr.mxu0 0.0
      %650 = vmatpush1.msra.mxu0 %v647
      %651 = vmatprep.subr.mxu0 0.0
      %652 = vmatpush1.msra.mxu0 0.0
      %653 = vmatprep.subr.mxu0 0.0
      %654 = vmatpush1.msra.mxu0 0.0
      %655 = vmatprep.subr.mxu0 0.0
      %656 = vmatpush1.msra.mxu0 0.0
      %657 = vmatprep.subr.mxu0 0.0
      %658 = vmatpush1.msra.mxu0 0.0
      %659 = vmatprep.subr.mxu0 0.0
      %660 = vmatpush1.msra.mxu0 0.0
      %661 = vmatprep.subr.mxu0 0.0
      %662 = vmatpush1.msra.mxu0 0.0
      %663 = vmatprep.subr.mxu0 0.0
      %664 = vmatpush1.msra.mxu0 0.0
      %665 = vmatprep.subr.mxu0 0.0
      %666 = vmatpush1.msra.mxu0 0.0
      %667 = vmatprep.subr.mxu0 0.0
      %668 = vmatpush1.msra.mxu0 0.0
      %669 = vmatprep.subr.mxu0 0.0
      %670 = vmatpush1.msra.mxu0 0.0
      %671 = vmatprep.subr.mxu0 0.0
      %672 = vmatpush1.msra.mxu0 0.0
      %673 = vmatprep.subr.mxu0 0.0
      %674 = vmatpush1.msra.mxu0 0.0
      %675 = vmatprep.subr.mxu0 0.0
      %676 = vmatpush1.msra.mxu0 0.0
      %677 = vmatprep.subr.mxu0 0.0
      %678 = vmatpush1.msra.mxu0 0.0
      %679 = vmatprep.subr.mxu0 0.0
      %680 = vmatpush1.msra.mxu0 0.0
      %681 = vmatprep.subr.mxu0 0.0
      %682 = vmatpush1.msra.mxu0 0.0
      %683 = vmatprep.subr.mxu0 0.0
      %684 = vmatpush1.msra.mxu0 0.0
      %685 = vmatprep.subr.mxu0 0.0
      %686 = vmatpush1.msra.mxu0 0.0
      %687 = vmatprep.subr.mxu0 0.0
      %688 = vmatpush1.msra.mxu0 0.0
      %689 = vmatprep.subr.mxu0 0.0
      %690 = vmatpush1.msra.mxu0 0.0
      %691 = vmatprep.subr.mxu0 0.0
      %692 = vmatpush1.msra.mxu0 0.0
      %693 = vmatprep.subr.mxu0 0.0
      %694 = vmatpush1.msra.mxu0 0.0
      %695 = vmatprep.subr.mxu0 0.0
      %696 = vmatpush1.msra.mxu0 0.0
      %697 = vmatprep.subr.mxu0 0.0
      %698 = vmatpush1.msra.mxu0 0.0
      %699 = vmatprep.subr.mxu0 0.0
      %700 = vmatpush1.msra.mxu0 0.0
      %701 = vmatprep.subr.mxu0 0.0
      %702 = vmatpush1.msra.mxu0 0.0
      %703 = vmatprep.subr.mxu0 0.0
      %704 = vmatpush1.msra.mxu0 0.0
      %705 = vmatprep.subr.mxu0 0.0
      %706 = vmatpush1.msra.mxu0 0.0
      %707 = vmatprep.subr.mxu0 0.0
      %708 = vmatpush1.msra.mxu0 0.0
      %709 = vmatprep.subr.mxu0 0.0
      %710 = vmatpush1.msra.mxu0 0.0
      %711 = vmatprep.subr.mxu0 0.0
      %712 = vmatpush1.msra.mxu0 0.0
      %713 = vmatprep.mubr.f32.mxu0 0.0
      %714 = vmatmul.mubr.f32.gmra.mrb[0].mxu0 %v551
      %v715 = vpop.f32.mrb[0].mxu0
      %v716 = vadd.f32 0.0, %v715
      %v717 = vpop.f32.mrb[0].mxu0
      %718 = vmatprep.mubr.f32.mxu0 0.0
      %719 = vmatmul.mubr.f32.gmra.mrb[0].mxu0 %v554
      %v720 = vpop.f32.mrb[0].mxu0
      %v721 = vadd.f32 0.0, %v720
      %v722 = vpop.f32.mrb[0].mxu0
      %723 = vmatprep.mubr.f32.mxu0 0.0
      %724 = vmatmul.mubr.f32.gmra.mrb[0].mxu0 %v557
      %v725 = vpop.f32.mrb[0].mxu0
      %v726 = vadd.f32 0.0, %v725
      %v727 = vpop.f32.mrb[0].mxu0
      %728 = vmatprep.mubr.f32.mxu0 0.0
      %729 = vmatmul.mubr.f32.gmra.mrb[0].mxu0 %v560
      %v730 = vpop.f32.mrb[0].mxu0
      %v731 = vadd.f32 0.0, %v730
      %v732 = vpop.f32.mrb[0].mxu0
      %733 = vmatprep.mubr.f32.mxu0 0.0
      %734 = vmatmul.mubr.f32.gmra.mrb[0].mxu0 %v563
      %v735 = vpop.f32.mrb[0].mxu0
      %v736 = vadd.f32 0.0, %v735
      %v737 = vpop.f32.mrb[0].mxu0
      %738 = vmatprep.mubr.f32.mxu0 0.0
      %739 = vmatmul.mubr.f32.gmra.mrb[0].mxu0 %v566
      %v740 = vpop.f32.mrb[0].mxu0
      %v741 = vadd.f32 0.0, %v740
      %v742 = vpop.f32.mrb[0].mxu0
      %743 = vmatprep.mubr.f32.mxu0 0.0
      %744 = vmatmul.mubr.f32.gmra.mrb[0].mxu0 %v569
      %v745 = vpop.f32.mrb[0].mxu0
      %v746 = vadd.f32 0.0, %v745
      %v747 = vpop.f32.mrb[0].mxu0
      %748 = vmatprep.mubr.f32.mxu0 0.0
      %749 = vmatmul.mubr.f32.gmra.mrb[0].mxu0 %v572
      %v750 = vpop.f32.mrb[0].mxu0
      %v751 = vadd.f32 0.0, %v750
      %v752 = vpop.f32.mrb[0].mxu0
      %753 = vmatprep.mubr.f32.mxu0 0.0
      %754 = vmatmul.mubr.f32.gmra.mrb[0].mxu0 %v575
      %v755 = vpop.f32.mrb[0].mxu0
      %v756 = vadd.f32 0.0, %v755
      %v757 = vpop.f32.mrb[0].mxu0
      %758 = vmatprep.mubr.f32.mxu0 0.0
      %759 = vmatmul.mubr.f32.gmra.mrb[0].mxu0 %v578
      %v760 = vpop.f32.mrb[0].mxu0
      %v761 = vadd.f32 0.0, %v760
      %v762 = vpop.f32.mrb[0].mxu0
      %763 = vmatprep.mubr.f32.mxu0 0.0
      %764 = vmatmul.mubr.f32.gmra.mrb[0].mxu0 %v581
      %v765 = vpop.f32.mrb[0].mxu0
      %v766 = vadd.f32 0.0, %v765
      %v767 = vpop.f32.mrb[0].mxu0
      %768 = vmatprep.mubr.f32.mxu0 0.0
      %769 = vmatmul.mubr.f32.gmra.mrb[0].mxu0 %v584
      %v770 = vpop.f32.mrb[0].mxu0
      %v771 = vadd.f32 0.0, %v770
      %v772 = vpop.f32.mrb[0].mxu0
      %773 = vmatprep.mubr.f32.mxu0 0.0
      %774 = vmatmul.mubr.f32.gmra.mrb[0].mxu0 %v587
      %v775 = vpop.f32.mrb[0].mxu0
      %v776 = vadd.f32 0.0, %v775
      %v777 = vpop.f32.mrb[0].mxu0
      %778 = vmatprep.mubr.f32.mxu0 0.0
      %779 = vmatmul.mubr.f32.gmra.mrb[0].mxu0 %v590
      %v780 = vpop.f32.mrb[0].mxu0
      %v781 = vadd.f32 0.0, %v780
      %v782 = vpop.f32.mrb[0].mxu0
      %783 = vmatprep.mubr.f32.mxu0 0.0
      %784 = vmatmul.mubr.f32.gmra.mrb[0].mxu0 %v593
      %v785 = vpop.f32.mrb[0].mxu0
      %v786 = vadd.f32 0.0, %v785
      %v787 = vpop.f32.mrb[0].mxu0
      %788 = vmatprep.mubr.f32.mxu0 0.0
      %789 = vmatmul.mubr.f32.gmra.mrb[0].mxu0 %v596
      %v790 = vpop.f32.mrb[0].mxu0
      %v791 = vadd.f32 0.0, %v790
      %v792 = vpop.f32.mrb[0].mxu0
      %793 = vmatprep.mubr.f32.mxu0 0.0
      %794 = vmatmul.mubr.f32.gmra.mrb[0].mxu0 %v599
      %v795 = vpop.f32.mrb[0].mxu0
      %v796 = vadd.f32 0.0, %v795
      %v797 = vpop.f32.mrb[0].mxu0
      %798 = vmatprep.mubr.f32.mxu0 0.0
      %799 = vmatmul.mubr.f32.gmra.mrb[0].mxu0 %v602
      %v800 = vpop.f32.mrb[0].mxu0
      %v801 = vadd.f32 0.0, %v800
      %v802 = vpop.f32.mrb[0].mxu0
      %803 = vmatprep.mubr.f32.mxu0 0.0
      %804 = vmatmul.mubr.f32.gmra.mrb[0].mxu0 %v605
      %v805 = vpop.f32.mrb[0].mxu0
      %v806 = vadd.f32 0.0, %v805
      %v807 = vpop.f32.mrb[0].mxu0
      %808 = vmatprep.mubr.f32.mxu0 0.0
      %809 = vmatmul.mubr.f32.gmra.mrb[0].mxu0 %v608
      %v810 = vpop.f32.mrb[0].mxu0
      %v811 = vadd.f32 0.0, %v810
      %v812 = vpop.f32.mrb[0].mxu0
      %813 = vmatprep.mubr.f32.mxu0 0.0
      %814 = vmatmul.mubr.f32.gmra.mrb[0].mxu0 %v611
      %v815 = vpop.f32.mrb[0].mxu0
      %v816 = vadd.f32 0.0, %v815
      %v817 = vpop.f32.mrb[0].mxu0
      %818 = vmatprep.mubr.f32.mxu0 0.0
      %819 = vmatmul.mubr.f32.gmra.mrb[0].mxu0 %v614
      %v820 = vpop.f32.mrb[0].mxu0
      %v821 = vadd.f32 0.0, %v820
      %v822 = vpop.f32.mrb[0].mxu0
      %823 = vmatprep.mubr.f32.mxu0 0.0
      %824 = vmatmul.mubr.f32.gmra.mrb[0].mxu0 %v617
      %v825 = vpop.f32.mrb[0].mxu0
      %v826 = vadd.f32 0.0, %v825
      %v827 = vpop.f32.mrb[0].mxu0
      %828 = vmatprep.mubr.f32.mxu0 0.0
      %829 = vmatmul.mubr.f32.gmra.mrb[0].mxu0 %v620
      %v830 = vpop.f32.mrb[0].mxu0
      %v831 = vadd.f32 0.0, %v830
      %v832 = vpop.f32.mrb[0].mxu0
      %833 = vmatprep.mubr.f32.mxu0 0.0
      %834 = vmatmul.mubr.f32.gmra.mrb[0].mxu0 %v623
      %v835 = vpop.f32.mrb[0].mxu0
      %v836 = vadd.f32 0.0, %v835
      %v837 = vpop.f32.mrb[0].mxu0
      %838 = vmatprep.mubr.f32.mxu0 0.0
      %839 = vmatmul.mubr.f32.gmra.mrb[0].mxu0 %v626
      %v840 = vpop.f32.mrb[0].mxu0
      %v841 = vadd.f32 0.0, %v840
      %v842 = vpop.f32.mrb[0].mxu0
      %843 = vmatprep.mubr.f32.mxu0 0.0
      %844 = vmatmul.mubr.f32.gmra.mrb[0].mxu0 %v629
      %v845 = vpop.f32.mrb[0].mxu0
      %v846 = vadd.f32 0.0, %v845
      %v847 = vpop.f32.mrb[0].mxu0
      %848 = vmatprep.mubr.f32.mxu0 0.0
      %849 = vmatmul.mubr.f32.gmra.mrb[0].mxu0 %v632
      %v850 = vpop.f32.mrb[0].mxu0
      %v851 = vadd.f32 0.0, %v850
      %v852 = vpop.f32.mrb[0].mxu0
      %853 = vmatprep.mubr.f32.mxu0 0.0
      %854 = vmatmul.mubr.f32.gmra.mrb[0].mxu0 %v635
      %v855 = vpop.f32.mrb[0].mxu0
      %v856 = vadd.f32 0.0, %v855
      %v857 = vpop.f32.mrb[0].mxu0
      %858 = vmatprep.mubr.f32.mxu0 0.0
      %859 = vmatmul.mubr.f32.gmra.mrb[0].mxu0 %v638
      %v860 = vpop.f32.mrb[0].mxu0
      %v861 = vadd.f32 0.0, %v860
      %v862 = vpop.f32.mrb[0].mxu0
      %863 = vmatprep.mubr.f32.mxu0 0.0
      %864 = vmatmul.mubr.f32.gmra.mrb[0].mxu0 %v641
      %v865 = vpop.f32.mrb[0].mxu0
      %v866 = vadd.f32 0.0, %v865
      %v867 = vpop.f32.mrb[0].mxu0
      %868 = vmatprep.mubr.f32.mxu0 0.0
      %869 = vmatmul.mubr.f32.gmra.mrb[0].mxu0 %v644
      %v870 = vpop.f32.mrb[0].mxu0
      %v871 = vadd.f32 0.0, %v870
      %v872 = vpop.f32.mrb[0].mxu0
      %873 = vdwg.mxu0
      %v875 = vlaneseq
      %v876 = vshrl.u32 %v875, 7
      %v877 = vsub.s32 0, %v876
      %v878 = vrot.slane %v513, %v877
      %v880 = vadd.f32 %v716, %v878
      %v881 = vadd.f32 %v721, %v878
      %v882 = vadd.f32 %v726, %v878
      %v883 = vadd.f32 %v731, %v878
      %v884 = vadd.f32 %v736, %v878
      %v885 = vadd.f32 %v741, %v878
      %v886 = vadd.f32 %v746, %v878
      %v887 = vadd.f32 %v751, %v878
      %v888 = vadd.f32 %v756, %v878
      %v889 = vadd.f32 %v761, %v878
      %v890 = vadd.f32 %v766, %v878
      %v891 = vadd.f32 %v771, %v878
      %v892 = vadd.f32 %v776, %v878
      %v893 = vadd.f32 %v781, %v878
      %v894 = vadd.f32 %v786, %v878
      %v895 = vadd.f32 %v791, %v878
      %v896 = vadd.f32 %v796, %v878
      %v897 = vadd.f32 %v801, %v878
      %v898 = vadd.f32 %v806, %v878
      %v899 = vadd.f32 %v811, %v878
      %v900 = vadd.f32 %v816, %v878
      %v901 = vadd.f32 %v821, %v878
      %v902 = vadd.f32 %v826, %v878
      %v903 = vadd.f32 %v831, %v878
      %v904 = vadd.f32 %v836, %v878
      %v905 = vadd.f32 %v841, %v878
      %v906 = vadd.f32 %v846, %v878
      %v907 = vadd.f32 %v851, %v878
      %v908 = vadd.f32 %v856, %v878
      %v909 = vadd.f32 %v861, %v878
      %v910 = vadd.f32 %v866, %v878
      %v911 = vadd.f32 %v871, %v878
      %vm912 = vcmask 64512
      %913 = vst.msk [vmem:[#allocation3] sm:$0xff] %vm912, %v880
      %914 = vst.msk [vmem:[#allocation3 + $0x8] sm:$0xff] %vm912, %v881
      %915 = vst.msk [vmem:[#allocation3 + $0x10] sm:$0xff] %vm912, %v882
      %916 = vst.msk [vmem:[#allocation3 + $0x18] sm:$0xff] %vm912, %v883
      %917 = vst.msk [vmem:[#allocation3 + $0x20] sm:$0xff] %vm912, %v884
      %918 = vst.msk [vmem:[#allocation3 + $0x28] sm:$0xff] %vm912, %v885
      %919 = vst.msk [vmem:[#allocation3 + $0x30] sm:$0xff] %vm912, %v886
      %920 = vst.msk [vmem:[#allocation3 + $0x38] sm:$0xff] %vm912, %v887
      %921 = vst.msk [vmem:[#allocation3 + $0x40] sm:$0xff] %vm912, %v888
      %922 = vst.msk [vmem:[#allocation3 + $0x48] sm:$0xff] %vm912, %v889
      %923 = vst.msk [vmem:[#allocation3 + $0x50] sm:$0xff] %vm912, %v890
      %924 = vst.msk [vmem:[#allocation3 + $0x58] sm:$0xff] %vm912, %v891
      %925 = vst.msk [vmem:[#allocation3 + $0x60] sm:$0xff] %vm912, %v892
      %926 = vst.msk [vmem:[#allocation3 + $0x68] sm:$0xff] %vm912, %v893
      %927 = vst.msk [vmem:[#allocation3 + $0x70] sm:$0xff] %vm912, %v894
      %928 = vst.msk [vmem:[#allocation3 + $0x78] sm:$0xff] %vm912, %v895
      %929 = vst.msk [vmem:[#allocation3 + $0x80] sm:$0xff] %vm912, %v896
      %930 = vst.msk [vmem:[#allocation3 + $0x88] sm:$0xff] %vm912, %v897
      %931 = vst.msk [vmem:[#allocation3 + $0x90] sm:$0xff] %vm912, %v898
      %932 = vst.msk [vmem:[#allocation3 + $0x98] sm:$0xff] %vm912, %v899
      %933 = vst.msk [vmem:[#allocation3 + $0xa0] sm:$0xff] %vm912, %v900
      %934 = vst.msk [vmem:[#allocation3 + $0xa8] sm:$0xff] %vm912, %v901
      %935 = vst.msk [vmem:[#allocation3 + $0xb0] sm:$0xff] %vm912, %v902
      %936 = vst.msk [vmem:[#allocation3 + $0xb8] sm:$0xff] %vm912, %v903
      %937 = vst.msk [vmem:[#allocation3 + $0xc0] sm:$0xff] %vm912, %v904
      %938 = vst.msk [vmem:[#allocation3 + $0xc8] sm:$0xff] %vm912, %v905
      %939 = vst.msk [vmem:[#allocation3 + $0xd0] sm:$0xff] %vm912, %v906
      %940 = vst.msk [vmem:[#allocation3 + $0xd8] sm:$0xff] %vm912, %v907
      %941 = vst.msk [vmem:[#allocation3 + $0xe0] sm:$0xff] %vm912, %v908
      %942 = vst.msk [vmem:[#allocation3 + $0xe8] sm:$0xff] %vm912, %v909
      %943 = vst.msk [vmem:[#allocation3 + $0xf0] sm:$0xff] %vm912, %v910
      %944 = vst.msk [vmem:[#allocation3 + $0xf8] sm:$0xff] %vm912, %v911
      %945 = vrot.lane.b32.xlu0 %v878, 8
      %v946 = vpop.permute.xlu0 %945
      %v948 = vadd.f32 %v716, %v946
      %v949 = vadd.f32 %v721, %v946
      %v950 = vadd.f32 %v726, %v946
      %v951 = vadd.f32 %v731, %v946
      %v952 = vadd.f32 %v736, %v946
      %v953 = vadd.f32 %v741, %v946
      %v954 = vadd.f32 %v746, %v946
      %v955 = vadd.f32 %v751, %v946
      %v956 = vadd.f32 %v756, %v946
      %v957 = vadd.f32 %v761, %v946
      %v958 = vadd.f32 %v766, %v946
      %v959 = vadd.f32 %v771, %v946
      %v960 = vadd.f32 %v776, %v946
      %v961 = vadd.f32 %v781, %v946
      %v962 = vadd.f32 %v786, %v946
      %v963 = vadd.f32 %v791, %v946
      %v964 = vadd.f32 %v796, %v946
      %v965 = vadd.f32 %v801, %v946
      %v966 = vadd.f32 %v806, %v946
      %v967 = vadd.f32 %v811, %v946
      %v968 = vadd.f32 %v816, %v946
      %v969 = vadd.f32 %v821, %v946
      %v970 = vadd.f32 %v826, %v946
      %v971 = vadd.f32 %v831, %v946
      %v972 = vadd.f32 %v836, %v946
      %v973 = vadd.f32 %v841, %v946
      %v974 = vadd.f32 %v846, %v946
      %v975 = vadd.f32 %v851, %v946
      %v976 = vadd.f32 %v856, %v946
      %v977 = vadd.f32 %v861, %v946
      %v978 = vadd.f32 %v866, %v946
      %v979 = vadd.f32 %v871, %v946
      %1012 = vrot.lane.b32.xlu0 %v948, 120
      %v1013 = vpop.permute.xlu0 %1012
      %1014 = vrot.lane.b32.xlu0 %v949, 120
      %v1015 = vpop.permute.xlu0 %1014
      %1016 = vrot.lane.b32.xlu0 %v950, 120
      %v1017 = vpop.permute.xlu0 %1016
      %1018 = vrot.lane.b32.xlu0 %v951, 120
      %v1019 = vpop.permute.xlu0 %1018
      %1020 = vrot.lane.b32.xlu0 %v952, 120
      %v1021 = vpop.permute.xlu0 %1020
      %1022 = vrot.lane.b32.xlu0 %v953, 120
      %v1023 = vpop.permute.xlu0 %1022
      %1024 = vrot.lane.b32.xlu0 %v954, 120
      %v1025 = vpop.permute.xlu0 %1024
      %1026 = vrot.lane.b32.xlu0 %v955, 120
      %v1027 = vpop.permute.xlu0 %1026
      %1028 = vrot.lane.b32.xlu0 %v956, 120
      %v1029 = vpop.permute.xlu0 %1028
      %1030 = vrot.lane.b32.xlu0 %v957, 120
      %v1031 = vpop.permute.xlu0 %1030
      %1032 = vrot.lane.b32.xlu0 %v958, 120
      %v1033 = vpop.permute.xlu0 %1032
      %1034 = vrot.lane.b32.xlu0 %v959, 120
      %v1035 = vpop.permute.xlu0 %1034
      %1036 = vrot.lane.b32.xlu0 %v960, 120
      %v1037 = vpop.permute.xlu0 %1036
      %1038 = vrot.lane.b32.xlu0 %v961, 120
      %v1039 = vpop.permute.xlu0 %1038
      %1040 = vrot.lane.b32.xlu0 %v962, 120
      %v1041 = vpop.permute.xlu0 %1040
      %1042 = vrot.lane.b32.xlu0 %v963, 120
      %v1043 = vpop.permute.xlu0 %1042
      %1044 = vrot.lane.b32.xlu0 %v964, 120
      %v1045 = vpop.permute.xlu0 %1044
      %1046 = vrot.lane.b32.xlu0 %v965, 120
      %v1047 = vpop.permute.xlu0 %1046
      %1048 = vrot.lane.b32.xlu0 %v966, 120
      %v1049 = vpop.permute.xlu0 %1048
      %1050 = vrot.lane.b32.xlu0 %v967, 120
      %v1051 = vpop.permute.xlu0 %1050
      %1052 = vrot.lane.b32.xlu0 %v968, 120
      %v1053 = vpop.permute.xlu0 %1052
      %1054 = vrot.lane.b32.xlu0 %v969, 120
      %v1055 = vpop.permute.xlu0 %1054
      %1056 = vrot.lane.b32.xlu0 %v970, 120
      %v1057 = vpop.permute.xlu0 %1056
      %1058 = vrot.lane.b32.xlu0 %v971, 120
      %v1059 = vpop.permute.xlu0 %1058
      %1060 = vrot.lane.b32.xlu0 %v972, 120
      %v1061 = vpop.permute.xlu0 %1060
      %1062 = vrot.lane.b32.xlu0 %v973, 120
      %v1063 = vpop.permute.xlu0 %1062
      %1064 = vrot.lane.b32.xlu0 %v974, 120
      %v1065 = vpop.permute.xlu0 %1064
      %1066 = vrot.lane.b32.xlu0 %v975, 120
      %v1067 = vpop.permute.xlu0 %1066
      %1068 = vrot.lane.b32.xlu0 %v976, 120
      %v1069 = vpop.permute.xlu0 %1068
      %1070 = vrot.lane.b32.xlu0 %v977, 120
      %v1071 = vpop.permute.xlu0 %1070
      %1072 = vrot.lane.b32.xlu0 %v978, 120
      %v1073 = vpop.permute.xlu0 %1072
      %1074 = vrot.lane.b32.xlu0 %v979, 120
      %v1075 = vpop.permute.xlu0 %1074
      %1108 = vst.msk [vmem:[#allocation4] sm:$0xff] %vm912, %v1013
      %1109 = vst.msk [vmem:[#allocation4 + $0x8] sm:$0xff] %vm912, %v1015
      %1110 = vst.msk [vmem:[#allocation4 + $0x10] sm:$0xff] %vm912, %v1017
      %1111 = vst.msk [vmem:[#allocation4 + $0x18] sm:$0xff] %vm912, %v1019
      %1112 = vst.msk [vmem:[#allocation4 + $0x20] sm:$0xff] %vm912, %v1021
      %1113 = vst.msk [vmem:[#allocation4 + $0x28] sm:$0xff] %vm912, %v1023
      %1114 = vst.msk [vmem:[#allocation4 + $0x30] sm:$0xff] %vm912, %v1025
      %1115 = vst.msk [vmem:[#allocation4 + $0x38] sm:$0xff] %vm912, %v1027
      %1116 = vst.msk [vmem:[#allocation4 + $0x40] sm:$0xff] %vm912, %v1029
      %1117 = vst.msk [vmem:[#allocation4 + $0x48] sm:$0xff] %vm912, %v1031
      %1118 = vst.msk [vmem:[#allocation4 + $0x50] sm:$0xff] %vm912, %v1033
      %1119 = vst.msk [vmem:[#allocation4 + $0x58] sm:$0xff] %vm912, %v1035
      %1120 = vst.msk [vmem:[#allocation4 + $0x60] sm:$0xff] %vm912, %v1037
      %1121 = vst.msk [vmem:[#allocation4 + $0x68] sm:$0xff] %vm912, %v1039
      %1122 = vst.msk [vmem:[#allocation4 + $0x70] sm:$0xff] %vm912, %v1041
      %1123 = vst.msk [vmem:[#allocation4 + $0x78] sm:$0xff] %vm912, %v1043
      %1124 = vst.msk [vmem:[#allocation4 + $0x80] sm:$0xff] %vm912, %v1045
      %1125 = vst.msk [vmem:[#allocation4 + $0x88] sm:$0xff] %vm912, %v1047
      %1126 = vst.msk [vmem:[#allocation4 + $0x90] sm:$0xff] %vm912, %v1049
      %1127 = vst.msk [vmem:[#allocation4 + $0x98] sm:$0xff] %vm912, %v1051
      %1128 = vst.msk [vmem:[#allocation4 + $0xa0] sm:$0xff] %vm912, %v1053
      %1129 = vst.msk [vmem:[#allocation4 + $0xa8] sm:$0xff] %vm912, %v1055
      %1130 = vst.msk [vmem:[#allocation4 + $0xb0] sm:$0xff] %vm912, %v1057
      %1131 = vst.msk [vmem:[#allocation4 + $0xb8] sm:$0xff] %vm912, %v1059
      %1132 = vst.msk [vmem:[#allocation4 + $0xc0] sm:$0xff] %vm912, %v1061
      %1133 = vst.msk [vmem:[#allocation4 + $0xc8] sm:$0xff] %vm912, %v1063
      %1134 = vst.msk [vmem:[#allocation4 + $0xd0] sm:$0xff] %vm912, %v1065
      %1135 = vst.msk [vmem:[#allocation4 + $0xd8] sm:$0xff] %vm912, %v1067
      %1136 = vst.msk [vmem:[#allocation4 + $0xe0] sm:$0xff] %vm912, %v1069
      %1137 = vst.msk [vmem:[#allocation4 + $0xe8] sm:$0xff] %vm912, %v1071
      %1138 = vst.msk [vmem:[#allocation4 + $0xf0] sm:$0xff] %vm912, %v1073
      %1139 = vst.msk [vmem:[#allocation4 + $0xf8] sm:$0xff] %vm912, %v1075
      %v1140 = vld [vmem:[#allocation2] sm:$0xff]
      %v1141 = vld [vmem:[#allocation2 + $0x8] sm:$0xff]
      %v1142 = vld [vmem:[#allocation2 + $0x18] sm:$0xff]
      %v1143 = vld [vmem:[#allocation2 + $0x20] sm:$0xff]
      %v1144 = vld [vmem:[#allocation2 + $0x30] sm:$0xff]
      %v1145 = vld [vmem:[#allocation2 + $0x38] sm:$0xff]
      %v1146 = vld [vmem:[#allocation2 + $0x48] sm:$0xff]
      %v1147 = vld [vmem:[#allocation2 + $0x50] sm:$0xff]
      %v1148 = vld [vmem:[#allocation2 + $0x60] sm:$0xff]
      %v1149 = vld [vmem:[#allocation2 + $0x68] sm:$0xff]
      %v1150 = vld [vmem:[#allocation2 + $0x78] sm:$0xff]
      %v1151 = vld [vmem:[#allocation2 + $0x80] sm:$0xff]
      %v1152 = vld [vmem:[#allocation2 + $0x90] sm:$0xff]
      %v1153 = vld [vmem:[#allocation2 + $0x98] sm:$0xff]
      %v1154 = vld [vmem:[#allocation2 + $0xa8] sm:$0xff]
      %v1155 = vld [vmem:[#allocation2 + $0xb0] sm:$0xff]
      %v1156 = vld [vmem:[#allocation2 + $0xc0] sm:$0xff]
      %v1157 = vld [vmem:[#allocation2 + $0xc8] sm:$0xff]
      %v1158 = vld [vmem:[#allocation2 + $0xd8] sm:$0xff]
      %v1159 = vld [vmem:[#allocation2 + $0xe0] sm:$0xff]
      %v1160 = vld [vmem:[#allocation2 + $0xf0] sm:$0xff]
      %v1161 = vld [vmem:[#allocation2 + $0xf8] sm:$0xff]
      %v1162 = vld [vmem:[#allocation2 + $0x108] sm:$0xff]
      %v1163 = vld [vmem:[#allocation2 + $0x110] sm:$0xff]
      %v1164 = vld [vmem:[#allocation2 + $0x120] sm:$0xff]
      %v1165 = vld [vmem:[#allocation2 + $0x128] sm:$0xff]
      %v1166 = vld [vmem:[#allocation2 + $0x138] sm:$0xff]
      %v1167 = vld [vmem:[#allocation2 + $0x140] sm:$0xff]
      %v1168 = vld [vmem:[#allocation2 + $0x150] sm:$0xff]
      %v1169 = vld [vmem:[#allocation2 + $0x158] sm:$0xff]
      %v1170 = vld [vmem:[#allocation2 + $0x168] sm:$0xff]
      %v1171 = vld [vmem:[#allocation2 + $0x170] sm:$0xff]
      %v1172 = vld [vmem:[%s3] sm:$0xf]
      %v1174 = vsel %vm463, %v1140, 0
      %v1177 = vsel %vm463, %v1141, 0
      %v1180 = vsel %vm463, %v1142, 0
      %v1183 = vsel %vm463, %v1143, 0
      %v1186 = vsel %vm463, %v1144, 0
      %v1189 = vsel %vm463, %v1145, 0
      %v1192 = vsel %vm463, %v1146, 0
      %v1195 = vsel %vm463, %v1147, 0
      %v1198 = vsel %vm463, %v1148, 0
      %v1201 = vsel %vm463, %v1149, 0
      %v1204 = vsel %vm463, %v1150, 0
      %v1207 = vsel %vm463, %v1151, 0
      %v1210 = vsel %vm463, %v1152, 0
      %v1213 = vsel %vm463, %v1153, 0
      %v1216 = vsel %vm463, %v1154, 0
      %v1219 = vsel %vm463, %v1155, 0
      %v1222 = vsel %vm463, %v1156, 0
      %v1225 = vsel %vm463, %v1157, 0
      %v1228 = vsel %vm463, %v1158, 0
      %v1231 = vsel %vm463, %v1159, 0
      %v1234 = vsel %vm463, %v1160, 0
      %v1237 = vsel %vm463, %v1161, 0
      %v1240 = vsel %vm463, %v1162, 0
      %v1243 = vsel %vm463, %v1163, 0
      %v1246 = vsel %vm463, %v1164, 0
      %v1249 = vsel %vm463, %v1165, 0
      %v1252 = vsel %vm463, %v1166, 0
      %v1255 = vsel %vm463, %v1167, 0
      %v1258 = vsel %vm463, %v1168, 0
      %v1261 = vsel %vm463, %v1169, 0
      %v1264 = vsel %vm463, %v1170, 0
      %v1267 = vsel %vm463, %v1171, 0
      %v1270 = vsel %vm646, %v1172, 0
      %1272 = vmatprep.subr.mxu0 0.0
      %1273 = vmatpush1.msra.mxu0 %v1270
      %1274 = vmatprep.subr.mxu0 0.0
      %1275 = vmatpush1.msra.mxu0 0.0
      %1276 = vmatprep.subr.mxu0 0.0
      %1277 = vmatpush1.msra.mxu0 0.0
      %1278 = vmatprep.subr.mxu0 0.0
      %1279 = vmatpush1.msra.mxu0 0.0
      %1280 = vmatprep.subr.mxu0 0.0
      %1281 = vmatpush1.msra.mxu0 0.0
      %1282 = vmatprep.subr.mxu0 0.0
      %1283 = vmatpush1.msra.mxu0 0.0
      %1284 = vmatprep.subr.mxu0 0.0
      %1285 = vmatpush1.msra.mxu0 0.0
      %1286 = vmatprep.subr.mxu0 0.0
      %1287 = vmatpush1.msra.mxu0 0.0
      %1288 = vmatprep.subr.mxu0 0.0
      %1289 = vmatpush1.msra.mxu0 0.0
      %1290 = vmatprep.subr.mxu0 0.0
      %1291 = vmatpush1.msra.mxu0 0.0
      %1292 = vmatprep.subr.mxu0 0.0
      %1293 = vmatpush1.msra.mxu0 0.0
      %1294 = vmatprep.subr.mxu0 0.0
      %1295 = vmatpush1.msra.mxu0 0.0
      %1296 = vmatprep.subr.mxu0 0.0
      %1297 = vmatpush1.msra.mxu0 0.0
      %1298 = vmatprep.subr.mxu0 0.0
      %1299 = vmatpush1.msra.mxu0 0.0
      %1300 = vmatprep.subr.mxu0 0.0
      %1301 = vmatpush1.msra.mxu0 0.0
      %1302 = vmatprep.subr.mxu0 0.0
      %1303 = vmatpush1.msra.mxu0 0.0
      %1304 = vmatprep.subr.mxu0 0.0
      %1305 = vmatpush1.msra.mxu0 0.0
      %1306 = vmatprep.subr.mxu0 0.0
      %1307 = vmatpush1.msra.mxu0 0.0
      %1308 = vmatprep.subr.mxu0 0.0
      %1309 = vmatpush1.msra.mxu0 0.0
      %1310 = vmatprep.subr.mxu0 0.0
      %1311 = vmatpush1.msra.mxu0 0.0
      %1312 = vmatprep.subr.mxu0 0.0
      %1313 = vmatpush1.msra.mxu0 0.0
      %1314 = vmatprep.subr.mxu0 0.0
      %1315 = vmatpush1.msra.mxu0 0.0
      %1316 = vmatprep.subr.mxu0 0.0
      %1317 = vmatpush1.msra.mxu0 0.0
      %1318 = vmatprep.subr.mxu0 0.0
      %1319 = vmatpush1.msra.mxu0 0.0
      %1320 = vmatprep.subr.mxu0 0.0
      %1321 = vmatpush1.msra.mxu0 0.0
      %1322 = vmatprep.subr.mxu0 0.0
      %1323 = vmatpush1.msra.mxu0 0.0
      %1324 = vmatprep.subr.mxu0 0.0
      %1325 = vmatpush1.msra.mxu0 0.0
      %1326 = vmatprep.subr.mxu0 0.0
      %1327 = vmatpush1.msra.mxu0 0.0
      %1328 = vmatprep.subr.mxu0 0.0
      %1329 = vmatpush1.msra.mxu0 0.0
      %1330 = vmatprep.subr.mxu0 0.0
      %1331 = vmatpush1.msra.mxu0 0.0
      %1332 = vmatprep.subr.mxu0 0.0
      %1333 = vmatpush1.msra.mxu0 0.0
      %1334 = vmatprep.subr.mxu0 0.0
      %1335 = vmatpush1.msra.mxu0 0.0
      %1336 = vmatprep.mubr.f32.mxu0 0.0
      %1337 = vmatmul.mubr.f32.gmra.mrb[0].mxu0 %v1174
      %v1338 = vpop.f32.mrb[0].mxu0
      %v1339 = vadd.f32 0.0, %v1338
      %v1340 = vpop.f32.mrb[0].mxu0
      %1341 = vmatprep.mubr.f32.mxu0 0.0
      %1342 = vmatmul.mubr.f32.gmra.mrb[0].mxu0 %v1177
      %v1343 = vpop.f32.mrb[0].mxu0
      %v1344 = vadd.f32 0.0, %v1343
      %v1345 = vpop.f32.mrb[0].mxu0
      %1346 = vmatprep.mubr.f32.mxu0 0.0
      %1347 = vmatmul.mubr.f32.gmra.mrb[0].mxu0 %v1180
      %v1348 = vpop.f32.mrb[0].mxu0
      %v1349 = vadd.f32 0.0, %v1348
      %v1350 = vpop.f32.mrb[0].mxu0
      %1351 = vmatprep.mubr.f32.mxu0 0.0
      %1352 = vmatmul.mubr.f32.gmra.mrb[0].mxu0 %v1183
      %v1353 = vpop.f32.mrb[0].mxu0
      %v1354 = vadd.f32 0.0, %v1353
      %v1355 = vpop.f32.mrb[0].mxu0
      %1356 = vmatprep.mubr.f32.mxu0 0.0
      %1357 = vmatmul.mubr.f32.gmra.mrb[0].mxu0 %v1186
      %v1358 = vpop.f32.mrb[0].mxu0
      %v1359 = vadd.f32 0.0, %v1358
      %v1360 = vpop.f32.mrb[0].mxu0
      %1361 = vmatprep.mubr.f32.mxu0 0.0
      %1362 = vmatmul.mubr.f32.gmra.mrb[0].mxu0 %v1189
      %v1363 = vpop.f32.mrb[0].mxu0
      %v1364 = vadd.f32 0.0, %v1363
      %v1365 = vpop.f32.mrb[0].mxu0
      %1366 = vmatprep.mubr.f32.mxu0 0.0
      %1367 = vmatmul.mubr.f32.gmra.mrb[0].mxu0 %v1192
      %v1368 = vpop.f32.mrb[0].mxu0
      %v1369 = vadd.f32 0.0, %v1368
      %v1370 = vpop.f32.mrb[0].mxu0
      %1371 = vmatprep.mubr.f32.mxu0 0.0
      %1372 = vmatmul.mubr.f32.gmra.mrb[0].mxu0 %v1195
      %v1373 = vpop.f32.mrb[0].mxu0
      %v1374 = vadd.f32 0.0, %v1373
      %v1375 = vpop.f32.mrb[0].mxu0
      %1376 = vmatprep.mubr.f32.mxu0 0.0
      %1377 = vmatmul.mubr.f32.gmra.mrb[0].mxu0 %v1198
      %v1378 = vpop.f32.mrb[0].mxu0
      %v1379 = vadd.f32 0.0, %v1378
      %v1380 = vpop.f32.mrb[0].mxu0
      %1381 = vmatprep.mubr.f32.mxu0 0.0
      %1382 = vmatmul.mubr.f32.gmra.mrb[0].mxu0 %v1201
      %v1383 = vpop.f32.mrb[0].mxu0
      %v1384 = vadd.f32 0.0, %v1383
      %v1385 = vpop.f32.mrb[0].mxu0
      %1386 = vmatprep.mubr.f32.mxu0 0.0
      %1387 = vmatmul.mubr.f32.gmra.mrb[0].mxu0 %v1204
      %v1388 = vpop.f32.mrb[0].mxu0
      %v1389 = vadd.f32 0.0, %v1388
      %v1390 = vpop.f32.mrb[0].mxu0
      %1391 = vmatprep.mubr.f32.mxu0 0.0
      %1392 = vmatmul.mubr.f32.gmra.mrb[0].mxu0 %v1207
      %v1393 = vpop.f32.mrb[0].mxu0
      %v1394 = vadd.f32 0.0, %v1393
      %v1395 = vpop.f32.mrb[0].mxu0
      %1396 = vmatprep.mubr.f32.mxu0 0.0
      %1397 = vmatmul.mubr.f32.gmra.mrb[0].mxu0 %v1210
      %v1398 = vpop.f32.mrb[0].mxu0
      %v1399 = vadd.f32 0.0, %v1398
      %v1400 = vpop.f32.mrb[0].mxu0
      %1401 = vmatprep.mubr.f32.mxu0 0.0
      %1402 = vmatmul.mubr.f32.gmra.mrb[0].mxu0 %v1213
      %v1403 = vpop.f32.mrb[0].mxu0
      %v1404 = vadd.f32 0.0, %v1403
      %v1405 = vpop.f32.mrb[0].mxu0
      %1406 = vmatprep.mubr.f32.mxu0 0.0
      %1407 = vmatmul.mubr.f32.gmra.mrb[0].mxu0 %v1216
      %v1408 = vpop.f32.mrb[0].mxu0
      %v1409 = vadd.f32 0.0, %v1408
      %v1410 = vpop.f32.mrb[0].mxu0
      %1411 = vmatprep.mubr.f32.mxu0 0.0
      %1412 = vmatmul.mubr.f32.gmra.mrb[0].mxu0 %v1219
      %v1413 = vpop.f32.mrb[0].mxu0
      %v1414 = vadd.f32 0.0, %v1413
      %v1415 = vpop.f32.mrb[0].mxu0
      %1416 = vmatprep.mubr.f32.mxu0 0.0
      %1417 = vmatmul.mubr.f32.gmra.mrb[0].mxu0 %v1222
      %v1418 = vpop.f32.mrb[0].mxu0
      %v1419 = vadd.f32 0.0, %v1418
      %v1420 = vpop.f32.mrb[0].mxu0
      %1421 = vmatprep.mubr.f32.mxu0 0.0
      %1422 = vmatmul.mubr.f32.gmra.mrb[0].mxu0 %v1225
      %v1423 = vpop.f32.mrb[0].mxu0
      %v1424 = vadd.f32 0.0, %v1423
      %v1425 = vpop.f32.mrb[0].mxu0
      %1426 = vmatprep.mubr.f32.mxu0 0.0
      %1427 = vmatmul.mubr.f32.gmra.mrb[0].mxu0 %v1228
      %v1428 = vpop.f32.mrb[0].mxu0
      %v1429 = vadd.f32 0.0, %v1428
      %v1430 = vpop.f32.mrb[0].mxu0
      %1431 = vmatprep.mubr.f32.mxu0 0.0
      %1432 = vmatmul.mubr.f32.gmra.mrb[0].mxu0 %v1231
      %v1433 = vpop.f32.mrb[0].mxu0
      %v1434 = vadd.f32 0.0, %v1433
      %v1435 = vpop.f32.mrb[0].mxu0
      %1436 = vmatprep.mubr.f32.mxu0 0.0
      %1437 = vmatmul.mubr.f32.gmra.mrb[0].mxu0 %v1234
      %v1438 = vpop.f32.mrb[0].mxu0
      %v1439 = vadd.f32 0.0, %v1438
      %v1440 = vpop.f32.mrb[0].mxu0
      %1441 = vmatprep.mubr.f32.mxu0 0.0
      %1442 = vmatmul.mubr.f32.gmra.mrb[0].mxu0 %v1237
      %v1443 = vpop.f32.mrb[0].mxu0
      %v1444 = vadd.f32 0.0, %v1443
      %v1445 = vpop.f32.mrb[0].mxu0
      %1446 = vmatprep.mubr.f32.mxu0 0.0
      %1447 = vmatmul.mubr.f32.gmra.mrb[0].mxu0 %v1240
      %v1448 = vpop.f32.mrb[0].mxu0
      %v1449 = vadd.f32 0.0, %v1448
      %v1450 = vpop.f32.mrb[0].mxu0
      %1451 = vmatprep.mubr.f32.mxu0 0.0
      %1452 = vmatmul.mubr.f32.gmra.mrb[0].mxu0 %v1243
      %v1453 = vpop.f32.mrb[0].mxu0
      %v1454 = vadd.f32 0.0, %v1453
      %v1455 = vpop.f32.mrb[0].mxu0
      %1456 = vmatprep.mubr.f32.mxu0 0.0
      %1457 = vmatmul.mubr.f32.gmra.mrb[0].mxu0 %v1246
      %v1458 = vpop.f32.mrb[0].mxu0
      %v1459 = vadd.f32 0.0, %v1458
      %v1460 = vpop.f32.mrb[0].mxu0
      %1461 = vmatprep.mubr.f32.mxu0 0.0
      %1462 = vmatmul.mubr.f32.gmra.mrb[0].mxu0 %v1249
      %v1463 = vpop.f32.mrb[0].mxu0
      %v1464 = vadd.f32 0.0, %v1463
      %v1465 = vpop.f32.mrb[0].mxu0
      %1466 = vmatprep.mubr.f32.mxu0 0.0
      %1467 = vmatmul.mubr.f32.gmra.mrb[0].mxu0 %v1252
      %v1468 = vpop.f32.mrb[0].mxu0
      %v1469 = vadd.f32 0.0, %v1468
      %v1470 = vpop.f32.mrb[0].mxu0
      %1471 = vmatprep.mubr.f32.mxu0 0.0
      %1472 = vmatmul.mubr.f32.gmra.mrb[0].mxu0 %v1255
      %v1473 = vpop.f32.mrb[0].mxu0
      %v1474 = vadd.f32 0.0, %v1473
      %v1475 = vpop.f32.mrb[0].mxu0
      %1476 = vmatprep.mubr.f32.mxu0 0.0
      %1477 = vmatmul.mubr.f32.gmra.mrb[0].mxu0 %v1258
      %v1478 = vpop.f32.mrb[0].mxu0
      %v1479 = vadd.f32 0.0, %v1478
      %v1480 = vpop.f32.mrb[0].mxu0
      %1481 = vmatprep.mubr.f32.mxu0 0.0
      %1482 = vmatmul.mubr.f32.gmra.mrb[0].mxu0 %v1261
      %v1483 = vpop.f32.mrb[0].mxu0
      %v1484 = vadd.f32 0.0, %v1483
      %v1485 = vpop.f32.mrb[0].mxu0
      %1486 = vmatprep.mubr.f32.mxu0 0.0
      %1487 = vmatmul.mubr.f32.gmra.mrb[0].mxu0 %v1264
      %v1488 = vpop.f32.mrb[0].mxu0
      %v1489 = vadd.f32 0.0, %v1488
      %v1490 = vpop.f32.mrb[0].mxu0
      %1491 = vmatprep.mubr.f32.mxu0 0.0
      %1492 = vmatmul.mubr.f32.gmra.mrb[0].mxu0 %v1267
      %v1493 = vpop.f32.mrb[0].mxu0
      %v1494 = vadd.f32 0.0, %v1493
      %v1495 = vpop.f32.mrb[0].mxu0
      %1496 = vdwg.mxu0
      %v1497 = vld [vmem:[#allocation3] sm:$0xff]
      %v1498 = vld [vmem:[#allocation3 + $0x8] sm:$0xff]
      %v1499 = vld [vmem:[#allocation3 + $0x10] sm:$0xff]
      %v1500 = vld [vmem:[#allocation3 + $0x18] sm:$0xff]
      %v1501 = vld [vmem:[#allocation3 + $0x20] sm:$0xff]
      %v1502 = vld [vmem:[#allocation3 + $0x28] sm:$0xff]
      %v1503 = vld [vmem:[#allocation3 + $0x30] sm:$0xff]
      %v1504 = vld [vmem:[#allocation3 + $0x38] sm:$0xff]
      %v1505 = vld [vmem:[#allocation3 + $0x40] sm:$0xff]
      %v1506 = vld [vmem:[#allocation3 + $0x48] sm:$0xff]
      %v1507 = vld [vmem:[#allocation3 + $0x50] sm:$0xff]
      %v1508 = vld [vmem:[#allocation3 + $0x58] sm:$0xff]
      %v1509 = vld [vmem:[#allocation3 + $0x60] sm:$0xff]
      %v1510 = vld [vmem:[#allocation3 + $0x68] sm:$0xff]
      %v1511 = vld [vmem:[#allocation3 + $0x70] sm:$0xff]
      %v1512 = vld [vmem:[#allocation3 + $0x78] sm:$0xff]
      %v1513 = vld [vmem:[#allocation3 + $0x80] sm:$0xff]
      %v1514 = vld [vmem:[#allocation3 + $0x88] sm:$0xff]
      %v1515 = vld [vmem:[#allocation3 + $0x90] sm:$0xff]
      %v1516 = vld [vmem:[#allocation3 + $0x98] sm:$0xff]
      %v1517 = vld [vmem:[#allocation3 + $0xa0] sm:$0xff]
      %v1518 = vld [vmem:[#allocation3 + $0xa8] sm:$0xff]
      %v1519 = vld [vmem:[#allocation3 + $0xb0] sm:$0xff]
      %v1520 = vld [vmem:[#allocation3 + $0xb8] sm:$0xff]
      %v1521 = vld [vmem:[#allocation3 + $0xc0] sm:$0xff]
      %v1522 = vld [vmem:[#allocation3 + $0xc8] sm:$0xff]
      %v1523 = vld [vmem:[#allocation3 + $0xd0] sm:$0xff]
      %v1524 = vld [vmem:[#allocation3 + $0xd8] sm:$0xff]
      %v1525 = vld [vmem:[#allocation3 + $0xe0] sm:$0xff]
      %v1526 = vld [vmem:[#allocation3 + $0xe8] sm:$0xff]
      %v1527 = vld [vmem:[#allocation3 + $0xf0] sm:$0xff]
      %v1528 = vld [vmem:[#allocation3 + $0xf8] sm:$0xff]
      %v1529 = vadd.f32 %v1497, %v1339
      %v1530 = vadd.f32 %v1498, %v1344
      %v1531 = vadd.f32 %v1499, %v1349
      %v1532 = vadd.f32 %v1500, %v1354
      %v1533 = vadd.f32 %v1501, %v1359
      %v1534 = vadd.f32 %v1502, %v1364
      %v1535 = vadd.f32 %v1503, %v1369
      %v1536 = vadd.f32 %v1504, %v1374
      %v1537 = vadd.f32 %v1505, %v1379
      %v1538 = vadd.f32 %v1506, %v1384
      %v1539 = vadd.f32 %v1507, %v1389
      %v1540 = vadd.f32 %v1508, %v1394
      %v1541 = vadd.f32 %v1509, %v1399
      %v1542 = vadd.f32 %v1510, %v1404
      %v1543 = vadd.f32 %v1511, %v1409
      %v1544 = vadd.f32 %v1512, %v1414
      %v1545 = vadd.f32 %v1513, %v1419
      %v1546 = vadd.f32 %v1514, %v1424
      %v1547 = vadd.f32 %v1515, %v1429
      %v1548 = vadd.f32 %v1516, %v1434
      %v1549 = vadd.f32 %v1517, %v1439
      %v1550 = vadd.f32 %v1518, %v1444
      %v1551 = vadd.f32 %v1519, %v1449
      %v1552 = vadd.f32 %v1520, %v1454
      %v1553 = vadd.f32 %v1521, %v1459
      %v1554 = vadd.f32 %v1522, %v1464
      %v1555 = vadd.f32 %v1523, %v1469
      %v1556 = vadd.f32 %v1524, %v1474
      %v1557 = vadd.f32 %v1525, %v1479
      %v1558 = vadd.f32 %v1526, %v1484
      %v1559 = vadd.f32 %v1527, %v1489
      %v1560 = vadd.f32 %v1528, %v1494
      %1561 = vst.msk [vmem:[#allocation3] sm:$0xff] %vm463, %v1529
      %1562 = vst.msk [vmem:[#allocation3 + $0x8] sm:$0xff] %vm463, %v1530
      %1563 = vst.msk [vmem:[#allocation3 + $0x10] sm:$0xff] %vm463, %v1531
      %1564 = vst.msk [vmem:[#allocation3 + $0x18] sm:$0xff] %vm463, %v1532
      %1565 = vst.msk [vmem:[#allocation3 + $0x20] sm:$0xff] %vm463, %v1533
      %1566 = vst.msk [vmem:[#allocation3 + $0x28] sm:$0xff] %vm463, %v1534
      %1567 = vst.msk [vmem:[#allocation3 + $0x30] sm:$0xff] %vm463, %v1535
      %1568 = vst.msk [vmem:[#allocation3 + $0x38] sm:$0xff] %vm463, %v1536
      %1569 = vst.msk [vmem:[#allocation3 + $0x40] sm:$0xff] %vm463, %v1537
      %1570 = vst.msk [vmem:[#allocation3 + $0x48] sm:$0xff] %vm463, %v1538
      %1571 = vst.msk [vmem:[#allocation3 + $0x50] sm:$0xff] %vm463, %v1539
      %1572 = vst.msk [vmem:[#allocation3 + $0x58] sm:$0xff] %vm463, %v1540
      %1573 = vst.msk [vmem:[#allocation3 + $0x60] sm:$0xff] %vm463, %v1541
      %1574 = vst.msk [vmem:[#allocation3 + $0x68] sm:$0xff] %vm463, %v1542
      %1575 = vst.msk [vmem:[#allocation3 + $0x70] sm:$0xff] %vm463, %v1543
      %1576 = vst.msk [vmem:[#allocation3 + $0x78] sm:$0xff] %vm463, %v1544
      %1577 = vst.msk [vmem:[#allocation3 + $0x80] sm:$0xff] %vm463, %v1545
      %1578 = vst.msk [vmem:[#allocation3 + $0x88] sm:$0xff] %vm463, %v1546
      %1579 = vst.msk [vmem:[#allocation3 + $0x90] sm:$0xff] %vm463, %v1547
      %1580 = vst.msk [vmem:[#allocation3 + $0x98] sm:$0xff] %vm463, %v1548
      %1581 = vst.msk [vmem:[#allocation3 + $0xa0] sm:$0xff] %vm463, %v1549
      %1582 = vst.msk [vmem:[#allocation3 + $0xa8] sm:$0xff] %vm463, %v1550
      %1583 = vst.msk [vmem:[#allocation3 + $0xb0] sm:$0xff] %vm463, %v1551
      %1584 = vst.msk [vmem:[#allocation3 + $0xb8] sm:$0xff] %vm463, %v1552
      %1585 = vst.msk [vmem:[#allocation3 + $0xc0] sm:$0xff] %vm463, %v1553
      %1586 = vst.msk [vmem:[#allocation3 + $0xc8] sm:$0xff] %vm463, %v1554
      %1587 = vst.msk [vmem:[#allocation3 + $0xd0] sm:$0xff] %vm463, %v1555
      %1588 = vst.msk [vmem:[#allocation3 + $0xd8] sm:$0xff] %vm463, %v1556
      %1589 = vst.msk [vmem:[#allocation3 + $0xe0] sm:$0xff] %vm463, %v1557
      %1590 = vst.msk [vmem:[#allocation3 + $0xe8] sm:$0xff] %vm463, %v1558
      %1591 = vst.msk [vmem:[#allocation3 + $0xf0] sm:$0xff] %vm463, %v1559
      %1592 = vst.msk [vmem:[#allocation3 + $0xf8] sm:$0xff] %vm463, %v1560
      %v1593 = vld [vmem:[#allocation2 + $0x1] sm:$0xff]
      %v1594 = vld [vmem:[#allocation2 + $0x9] sm:$0xff]
      %v1595 = vld [vmem:[#allocation2 + $0x19] sm:$0xff]
      %v1596 = vld [vmem:[#allocation2 + $0x21] sm:$0xff]
      %v1597 = vld [vmem:[#allocation2 + $0x31] sm:$0xff]
      %v1598 = vld [vmem:[#allocation2 + $0x39] sm:$0xff]
      %v1599 = vld [vmem:[#allocation2 + $0x49] sm:$0xff]
      %v1600 = vld [vmem:[#allocation2 + $0x51] sm:$0xff]
      %v1601 = vld [vmem:[#allocation2 + $0x61] sm:$0xff]
      %v1602 = vld [vmem:[#allocation2 + $0x69] sm:$0xff]
      %v1603 = vld [vmem:[#allocation2 + $0x79] sm:$0xff]
      %v1604 = vld [vmem:[#allocation2 + $0x81] sm:$0xff]
      %v1605 = vld [vmem:[#allocation2 + $0x91] sm:$0xff]
      %v1606 = vld [vmem:[#allocation2 + $0x99] sm:$0xff]
      %v1607 = vld [vmem:[#allocation2 + $0xa9] sm:$0xff]
      %v1608 = vld [vmem:[#allocation2 + $0xb1] sm:$0xff]
      %v1609 = vld [vmem:[#allocation2 + $0xc1] sm:$0xff]
      %v1610 = vld [vmem:[#allocation2 + $0xc9] sm:$0xff]
      %v1611 = vld [vmem:[#allocation2 + $0xd9] sm:$0xff]
      %v1612 = vld [vmem:[#allocation2 + $0xe1] sm:$0xff]
      %v1613 = vld [vmem:[#allocation2 + $0xf1] sm:$0xff]
      %v1614 = vld [vmem:[#allocation2 + $0xf9] sm:$0xff]
      %v1615 = vld [vmem:[#allocation2 + $0x109] sm:$0xff]
      %v1616 = vld [vmem:[#allocation2 + $0x111] sm:$0xff]
      %v1617 = vld [vmem:[#allocation2 + $0x121] sm:$0xff]
      %v1618 = vld [vmem:[#allocation2 + $0x129] sm:$0xff]
      %v1619 = vld [vmem:[#allocation2 + $0x139] sm:$0xff]
      %v1620 = vld [vmem:[#allocation2 + $0x141] sm:$0xff]
      %v1621 = vld [vmem:[#allocation2 + $0x151] sm:$0xff]
      %v1622 = vld [vmem:[#allocation2 + $0x159] sm:$0xff]
      %v1623 = vld [vmem:[#allocation2 + $0x169] sm:$0xff]
      %v1624 = vld [vmem:[#allocation2 + $0x171] sm:$0xff]
      %v1625 = vld [vmem:[%s3] sm:$0xf]
      %1627 = vrot.lane.b32.xlu0 %v1625, 124
      %v1628 = vpop.permute.xlu0 %1627
      %v1630 = vsel %vm463, %v1593, 0
      %v1633 = vsel %vm463, %v1594, 0
      %v1636 = vsel %vm463, %v1595, 0
      %v1639 = vsel %vm463, %v1596, 0
      %v1642 = vsel %vm463, %v1597, 0
      %v1645 = vsel %vm463, %v1598, 0
      %v1648 = vsel %vm463, %v1599, 0
      %v1651 = vsel %vm463, %v1600, 0
      %v1654 = vsel %vm463, %v1601, 0
      %v1657 = vsel %vm463, %v1602, 0
      %v1660 = vsel %vm463, %v1603, 0
      %v1663 = vsel %vm463, %v1604, 0
      %v1666 = vsel %vm463, %v1605, 0
      %v1669 = vsel %vm463, %v1606, 0
      %v1672 = vsel %vm463, %v1607, 0
      %v1675 = vsel %vm463, %v1608, 0
      %v1678 = vsel %vm463, %v1609, 0
      %v1681 = vsel %vm463, %v1610, 0
      %v1684 = vsel %vm463, %v1611, 0
      %v1687 = vsel %vm463, %v1612, 0
      %v1690 = vsel %vm463, %v1613, 0
      %v1693 = vsel %vm463, %v1614, 0
      %v1696 = vsel %vm463, %v1615, 0
      %v1699 = vsel %vm463, %v1616, 0
      %v1702 = vsel %vm463, %v1617, 0
      %v1705 = vsel %vm463, %v1618, 0
      %v1708 = vsel %vm463, %v1619, 0
      %v1711 = vsel %vm463, %v1620, 0
      %v1714 = vsel %vm463, %v1621, 0
      %v1717 = vsel %vm463, %v1622, 0
      %v1720 = vsel %vm463, %v1623, 0
      %v1723 = vsel %vm463, %v1624, 0
      %v1725 = vsel %vm646, %v1628, 0
      %1727 = vmatprep.subr.mxu0 0.0
      %1728 = vmatpush1.msra.mxu0 %v1725
      %1729 = vmatprep.subr.mxu0 0.0
      %1730 = vmatpush1.msra.mxu0 0.0
      %1731 = vmatprep.subr.mxu0 0.0
      %1732 = vmatpush1.msra.mxu0 0.0
      %1733 = vmatprep.subr.mxu0 0.0
      %1734 = vmatpush1.msra.mxu0 0.0
      %1735 = vmatprep.subr.mxu0 0.0
      %1736 = vmatpush1.msra.mxu0 0.0
      %1737 = vmatprep.subr.mxu0 0.0
      %1738 = vmatpush1.msra.mxu0 0.0
      %1739 = vmatprep.subr.mxu0 0.0
      %1740 = vmatpush1.msra.mxu0 0.0
      %1741 = vmatprep.subr.mxu0 0.0
      %1742 = vmatpush1.msra.mxu0 0.0
      %1743 = vmatprep.subr.mxu0 0.0
      %1744 = vmatpush1.msra.mxu0 0.0
      %1745 = vmatprep.subr.mxu0 0.0
      %1746 = vmatpush1.msra.mxu0 0.0
      %1747 = vmatprep.subr.mxu0 0.0
      %1748 = vmatpush1.msra.mxu0 0.0
      %1749 = vmatprep.subr.mxu0 0.0
      %1750 = vmatpush1.msra.mxu0 0.0
      %1751 = vmatprep.subr.mxu0 0.0
      %1752 = vmatpush1.msra.mxu0 0.0
      %1753 = vmatprep.subr.mxu0 0.0
      %1754 = vmatpush1.msra.mxu0 0.0
      %1755 = vmatprep.subr.mxu0 0.0
      %1756 = vmatpush1.msra.mxu0 0.0
      %1757 = vmatprep.subr.mxu0 0.0
      %1758 = vmatpush1.msra.mxu0 0.0
      %1759 = vmatprep.subr.mxu0 0.0
      %1760 = vmatpush1.msra.mxu0 0.0
      %1761 = vmatprep.subr.mxu0 0.0
      %1762 = vmatpush1.msra.mxu0 0.0
      %1763 = vmatprep.subr.mxu0 0.0
      %1764 = vmatpush1.msra.mxu0 0.0
      %1765 = vmatprep.subr.mxu0 0.0
      %1766 = vmatpush1.msra.mxu0 0.0
      %1767 = vmatprep.subr.mxu0 0.0
      %1768 = vmatpush1.msra.mxu0 0.0
      %1769 = vmatprep.subr.mxu0 0.0
      %1770 = vmatpush1.msra.mxu0 0.0
      %1771 = vmatprep.subr.mxu0 0.0
      %1772 = vmatpush1.msra.mxu0 0.0
      %1773 = vmatprep.subr.mxu0 0.0
      %1774 = vmatpush1.msra.mxu0 0.0
      %1775 = vmatprep.subr.mxu0 0.0
      %1776 = vmatpush1.msra.mxu0 0.0
      %1777 = vmatprep.subr.mxu0 0.0
      %1778 = vmatpush1.msra.mxu0 0.0
      %1779 = vmatprep.subr.mxu0 0.0
      %1780 = vmatpush1.msra.mxu0 0.0
      %1781 = vmatprep.subr.mxu0 0.0
      %1782 = vmatpush1.msra.mxu0 0.0
      %1783 = vmatprep.subr.mxu0 0.0
      %1784 = vmatpush1.msra.mxu0 0.0
      %1785 = vmatprep.subr.mxu0 0.0
      %1786 = vmatpush1.msra.mxu0 0.0
      %1787 = vmatprep.subr.mxu0 0.0
      %1788 = vmatpush1.msra.mxu0 0.0
      %1789 = vmatprep.subr.mxu0 0.0
      %1790 = vmatpush1.msra.mxu0 0.0
      %1791 = vmatprep.mubr.f32.mxu0 0.0
      %1792 = vmatmul.mubr.f32.gmra.mrb[0].mxu0 %v1630
      %v1793 = vpop.f32.mrb[0].mxu0
      %v1794 = vadd.f32 0.0, %v1793
      %v1795 = vpop.f32.mrb[0].mxu0
      %1796 = vmatprep.mubr.f32.mxu0 0.0
      %1797 = vmatmul.mubr.f32.gmra.mrb[0].mxu0 %v1633
      %v1798 = vpop.f32.mrb[0].mxu0
      %v1799 = vadd.f32 0.0, %v1798
      %v1800 = vpop.f32.mrb[0].mxu0
      %1801 = vmatprep.mubr.f32.mxu0 0.0
      %1802 = vmatmul.mubr.f32.gmra.mrb[0].mxu0 %v1636
      %v1803 = vpop.f32.mrb[0].mxu0
      %v1804 = vadd.f32 0.0, %v1803
      %v1805 = vpop.f32.mrb[0].mxu0
      %1806 = vmatprep.mubr.f32.mxu0 0.0
      %1807 = vmatmul.mubr.f32.gmra.mrb[0].mxu0 %v1639
      %v1808 = vpop.f32.mrb[0].mxu0
      %v1809 = vadd.f32 0.0, %v1808
      %v1810 = vpop.f32.mrb[0].mxu0
      %1811 = vmatprep.mubr.f32.mxu0 0.0
      %1812 = vmatmul.mubr.f32.gmra.mrb[0].mxu0 %v1642
      %v1813 = vpop.f32.mrb[0].mxu0
      %v1814 = vadd.f32 0.0, %v1813
      %v1815 = vpop.f32.mrb[0].mxu0
      %1816 = vmatprep.mubr.f32.mxu0 0.0
      %1817 = vmatmul.mubr.f32.gmra.mrb[0].mxu0 %v1645
      %v1818 = vpop.f32.mrb[0].mxu0
      %v1819 = vadd.f32 0.0, %v1818
      %v1820 = vpop.f32.mrb[0].mxu0
      %1821 = vmatprep.mubr.f32.mxu0 0.0
      %1822 = vmatmul.mubr.f32.gmra.mrb[0].mxu0 %v1648
      %v1823 = vpop.f32.mrb[0].mxu0
      %v1824 = vadd.f32 0.0, %v1823
      %v1825 = vpop.f32.mrb[0].mxu0
      %1826 = vmatprep.mubr.f32.mxu0 0.0
      %1827 = vmatmul.mubr.f32.gmra.mrb[0].mxu0 %v1651
      %v1828 = vpop.f32.mrb[0].mxu0
      %v1829 = vadd.f32 0.0, %v1828
      %v1830 = vpop.f32.mrb[0].mxu0
      %1831 = vmatprep.mubr.f32.mxu0 0.0
      %1832 = vmatmul.mubr.f32.gmra.mrb[0].mxu0 %v1654
      %v1833 = vpop.f32.mrb[0].mxu0
      %v1834 = vadd.f32 0.0, %v1833
      %v1835 = vpop.f32.mrb[0].mxu0
      %1836 = vmatprep.mubr.f32.mxu0 0.0
      %1837 = vmatmul.mubr.f32.gmra.mrb[0].mxu0 %v1657
      %v1838 = vpop.f32.mrb[0].mxu0
      %v1839 = vadd.f32 0.0, %v1838
      %v1840 = vpop.f32.mrb[0].mxu0
      %1841 = vmatprep.mubr.f32.mxu0 0.0
      %1842 = vmatmul.mubr.f32.gmra.mrb[0].mxu0 %v1660
      %v1843 = vpop.f32.mrb[0].mxu0
      %v1844 = vadd.f32 0.0, %v1843
      %v1845 = vpop.f32.mrb[0].mxu0
      %1846 = vmatprep.mubr.f32.mxu0 0.0
      %1847 = vmatmul.mubr.f32.gmra.mrb[0].mxu0 %v1663
      %v1848 = vpop.f32.mrb[0].mxu0
      %v1849 = vadd.f32 0.0, %v1848
      %v1850 = vpop.f32.mrb[0].mxu0
      %1851 = vmatprep.mubr.f32.mxu0 0.0
      %1852 = vmatmul.mubr.f32.gmra.mrb[0].mxu0 %v1666
      %v1853 = vpop.f32.mrb[0].mxu0
      %v1854 = vadd.f32 0.0, %v1853
      %v1855 = vpop.f32.mrb[0].mxu0
      %1856 = vmatprep.mubr.f32.mxu0 0.0
      %1857 = vmatmul.mubr.f32.gmra.mrb[0].mxu0 %v1669
      %v1858 = vpop.f32.mrb[0].mxu0
      %v1859 = vadd.f32 0.0, %v1858
      %v1860 = vpop.f32.mrb[0].mxu0
      %1861 = vmatprep.mubr.f32.mxu0 0.0
      %1862 = vmatmul.mubr.f32.gmra.mrb[0].mxu0 %v1672
      %v1863 = vpop.f32.mrb[0].mxu0
      %v1864 = vadd.f32 0.0, %v1863
      %v1865 = vpop.f32.mrb[0].mxu0
      %1866 = vmatprep.mubr.f32.mxu0 0.0
      %1867 = vmatmul.mubr.f32.gmra.mrb[0].mxu0 %v1675
      %v1868 = vpop.f32.mrb[0].mxu0
      %v1869 = vadd.f32 0.0, %v1868
      %v1870 = vpop.f32.mrb[0].mxu0
      %1871 = vmatprep.mubr.f32.mxu0 0.0
      %1872 = vmatmul.mubr.f32.gmra.mrb[0].mxu0 %v1678
      %v1873 = vpop.f32.mrb[0].mxu0
      %v1874 = vadd.f32 0.0, %v1873
      %v1875 = vpop.f32.mrb[0].mxu0
      %1876 = vmatprep.mubr.f32.mxu0 0.0
      %1877 = vmatmul.mubr.f32.gmra.mrb[0].mxu0 %v1681
      %v1878 = vpop.f32.mrb[0].mxu0
      %v1879 = vadd.f32 0.0, %v1878
      %v1880 = vpop.f32.mrb[0].mxu0
      %1881 = vmatprep.mubr.f32.mxu0 0.0
      %1882 = vmatmul.mubr.f32.gmra.mrb[0].mxu0 %v1684
      %v1883 = vpop.f32.mrb[0].mxu0
      %v1884 = vadd.f32 0.0, %v1883
      %v1885 = vpop.f32.mrb[0].mxu0
      %1886 = vmatprep.mubr.f32.mxu0 0.0
      %1887 = vmatmul.mubr.f32.gmra.mrb[0].mxu0 %v1687
      %v1888 = vpop.f32.mrb[0].mxu0
      %v1889 = vadd.f32 0.0, %v1888
      %v1890 = vpop.f32.mrb[0].mxu0
      %1891 = vmatprep.mubr.f32.mxu0 0.0
      %1892 = vmatmul.mubr.f32.gmra.mrb[0].mxu0 %v1690
      %v1893 = vpop.f32.mrb[0].mxu0
      %v1894 = vadd.f32 0.0, %v1893
      %v1895 = vpop.f32.mrb[0].mxu0
      %1896 = vmatprep.mubr.f32.mxu0 0.0
      %1897 = vmatmul.mubr.f32.gmra.mrb[0].mxu0 %v1693
      %v1898 = vpop.f32.mrb[0].mxu0
      %v1899 = vadd.f32 0.0, %v1898
      %v1900 = vpop.f32.mrb[0].mxu0
      %1901 = vmatprep.mubr.f32.mxu0 0.0
      %1902 = vmatmul.mubr.f32.gmra.mrb[0].mxu0 %v1696
      %v1903 = vpop.f32.mrb[0].mxu0
      %v1904 = vadd.f32 0.0, %v1903
      %v1905 = vpop.f32.mrb[0].mxu0
      %1906 = vmatprep.mubr.f32.mxu0 0.0
      %1907 = vmatmul.mubr.f32.gmra.mrb[0].mxu0 %v1699
      %v1908 = vpop.f32.mrb[0].mxu0
      %v1909 = vadd.f32 0.0, %v1908
      %v1910 = vpop.f32.mrb[0].mxu0
      %1911 = vmatprep.mubr.f32.mxu0 0.0
      %1912 = vmatmul.mubr.f32.gmra.mrb[0].mxu0 %v1702
      %v1913 = vpop.f32.mrb[0].mxu0
      %v1914 = vadd.f32 0.0, %v1913
      %v1915 = vpop.f32.mrb[0].mxu0
      %1916 = vmatprep.mubr.f32.mxu0 0.0
      %1917 = vmatmul.mubr.f32.gmra.mrb[0].mxu0 %v1705
      %v1918 = vpop.f32.mrb[0].mxu0
      %v1919 = vadd.f32 0.0, %v1918
      %v1920 = vpop.f32.mrb[0].mxu0
      %1921 = vmatprep.mubr.f32.mxu0 0.0
      %1922 = vmatmul.mubr.f32.gmra.mrb[0].mxu0 %v1708
      %v1923 = vpop.f32.mrb[0].mxu0
      %v1924 = vadd.f32 0.0, %v1923
      %v1925 = vpop.f32.mrb[0].mxu0
      %1926 = vmatprep.mubr.f32.mxu0 0.0
      %1927 = vmatmul.mubr.f32.gmra.mrb[0].mxu0 %v1711
      %v1928 = vpop.f32.mrb[0].mxu0
      %v1929 = vadd.f32 0.0, %v1928
      %v1930 = vpop.f32.mrb[0].mxu0
      %1931 = vmatprep.mubr.f32.mxu0 0.0
      %1932 = vmatmul.mubr.f32.gmra.mrb[0].mxu0 %v1714
      %v1933 = vpop.f32.mrb[0].mxu0
      %v1934 = vadd.f32 0.0, %v1933
      %v1935 = vpop.f32.mrb[0].mxu0
      %1936 = vmatprep.mubr.f32.mxu0 0.0
      %1937 = vmatmul.mubr.f32.gmra.mrb[0].mxu0 %v1717
      %v1938 = vpop.f32.mrb[0].mxu0
      %v1939 = vadd.f32 0.0, %v1938
      %v1940 = vpop.f32.mrb[0].mxu0
      %1941 = vmatprep.mubr.f32.mxu0 0.0
      %1942 = vmatmul.mubr.f32.gmra.mrb[0].mxu0 %v1720
      %v1943 = vpop.f32.mrb[0].mxu0
      %v1944 = vadd.f32 0.0, %v1943
      %v1945 = vpop.f32.mrb[0].mxu0
      %1946 = vmatprep.mubr.f32.mxu0 0.0
      %1947 = vmatmul.mubr.f32.gmra.mrb[0].mxu0 %v1723
      %v1948 = vpop.f32.mrb[0].mxu0
      %v1949 = vadd.f32 0.0, %v1948
      %v1950 = vpop.f32.mrb[0].mxu0
      %1951 = vdwg.mxu0
      %v1952 = vld [vmem:[#allocation3] sm:$0xff]
      %v1953 = vld [vmem:[#allocation3 + $0x8] sm:$0xff]
      %v1954 = vld [vmem:[#allocation3 + $0x10] sm:$0xff]
      %v1955 = vld [vmem:[#allocation3 + $0x18] sm:$0xff]
      %v1956 = vld [vmem:[#allocation3 + $0x20] sm:$0xff]
      %v1957 = vld [vmem:[#allocation3 + $0x28] sm:$0xff]
      %v1958 = vld [vmem:[#allocation3 + $0x30] sm:$0xff]
      %v1959 = vld [vmem:[#allocation3 + $0x38] sm:$0xff]
      %v1960 = vld [vmem:[#allocation3 + $0x40] sm:$0xff]
      %v1961 = vld [vmem:[#allocation3 + $0x48] sm:$0xff]
      %v1962 = vld [vmem:[#allocation3 + $0x50] sm:$0xff]
      %v1963 = vld [vmem:[#allocation3 + $0x58] sm:$0xff]
      %v1964 = vld [vmem:[#allocation3 + $0x60] sm:$0xff]
      %v1965 = vld [vmem:[#allocation3 + $0x68] sm:$0xff]
      %v1966 = vld [vmem:[#allocation3 + $0x70] sm:$0xff]
      %v1967 = vld [vmem:[#allocation3 + $0x78] sm:$0xff]
      %v1968 = vld [vmem:[#allocation3 + $0x80] sm:$0xff]
      %v1969 = vld [vmem:[#allocation3 + $0x88] sm:$0xff]
      %v1970 = vld [vmem:[#allocation3 + $0x90] sm:$0xff]
      %v1971 = vld [vmem:[#allocation3 + $0x98] sm:$0xff]
      %v1972 = vld [vmem:[#allocation3 + $0xa0] sm:$0xff]
      %v1973 = vld [vmem:[#allocation3 + $0xa8] sm:$0xff]
      %v1974 = vld [vmem:[#allocation3 + $0xb0] sm:$0xff]
      %v1975 = vld [vmem:[#allocation3 + $0xb8] sm:$0xff]
      %v1976 = vld [vmem:[#allocation3 + $0xc0] sm:$0xff]
      %v1977 = vld [vmem:[#allocation3 + $0xc8] sm:$0xff]
      %v1978 = vld [vmem:[#allocation3 + $0xd0] sm:$0xff]
      %v1979 = vld [vmem:[#allocation3 + $0xd8] sm:$0xff]
      %v1980 = vld [vmem:[#allocation3 + $0xe0] sm:$0xff]
      %v1981 = vld [vmem:[#allocation3 + $0xe8] sm:$0xff]
      %v1982 = vld [vmem:[#allocation3 + $0xf0] sm:$0xff]
      %v1983 = vld [vmem:[#allocation3 + $0xf8] sm:$0xff]
      %v1984 = vadd.f32 %v1952, %v1794
      %v1985 = vadd.f32 %v1953, %v1799
      %v1986 = vadd.f32 %v1954, %v1804
      %v1987 = vadd.f32 %v1955, %v1809
      %v1988 = vadd.f32 %v1956, %v1814
      %v1989 = vadd.f32 %v1957, %v1819
      %v1990 = vadd.f32 %v1958, %v1824
      %v1991 = vadd.f32 %v1959, %v1829
      %v1992 = vadd.f32 %v1960, %v1834
      %v1993 = vadd.f32 %v1961, %v1839
      %v1994 = vadd.f32 %v1962, %v1844
      %v1995 = vadd.f32 %v1963, %v1849
      %v1996 = vadd.f32 %v1964, %v1854
      %v1997 = vadd.f32 %v1965, %v1859
      %v1998 = vadd.f32 %v1966, %v1864
      %v1999 = vadd.f32 %v1967, %v1869
      %v2000 = vadd.f32 %v1968, %v1874
      %v2001 = vadd.f32 %v1969, %v1879
      %v2002 = vadd.f32 %v1970, %v1884
      %v2003 = vadd.f32 %v1971, %v1889
      %v2004 = vadd.f32 %v1972, %v1894
      %v2005 = vadd.f32 %v1973, %v1899
      %v2006 = vadd.f32 %v1974, %v1904
      %v2007 = vadd.f32 %v1975, %v1909
      %v2008 = vadd.f32 %v1976, %v1914
      %v2009 = vadd.f32 %v1977, %v1919
      %v2010 = vadd.f32 %v1978, %v1924
      %v2011 = vadd.f32 %v1979, %v1929
      %v2012 = vadd.f32 %v1980, %v1934
      %v2013 = vadd.f32 %v1981, %v1939
      %v2014 = vadd.f32 %v1982, %v1944
      %v2015 = vadd.f32 %v1983, %v1949
      %2016 = vst.msk [vmem:[#allocation3] sm:$0xff] %vm912, %v1984
      %2017 = vst.msk [vmem:[#allocation3 + $0x8] sm:$0xff] %vm912, %v1985
      %2018 = vst.msk [vmem:[#allocation3 + $0x10] sm:$0xff] %vm912, %v1986
      %2019 = vst.msk [vmem:[#allocation3 + $0x18] sm:$0xff] %vm912, %v1987
      %2020 = vst.msk [vmem:[#allocation3 + $0x20] sm:$0xff] %vm912, %v1988
      %2021 = vst.msk [vmem:[#allocation3 + $0x28] sm:$0xff] %vm912, %v1989
      %2022 = vst.msk [vmem:[#allocation3 + $0x30] sm:$0xff] %vm912, %v1990
      %2023 = vst.msk [vmem:[#allocation3 + $0x38] sm:$0xff] %vm912, %v1991
      %2024 = vst.msk [vmem:[#allocation3 + $0x40] sm:$0xff] %vm912, %v1992
      %2025 = vst.msk [vmem:[#allocation3 + $0x48] sm:$0xff] %vm912, %v1993
      %2026 = vst.msk [vmem:[#allocation3 + $0x50] sm:$0xff] %vm912, %v1994
      %2027 = vst.msk [vmem:[#allocation3 + $0x58] sm:$0xff] %vm912, %v1995
      %2028 = vst.msk [vmem:[#allocation3 + $0x60] sm:$0xff] %vm912, %v1996
      %2029 = vst.msk [vmem:[#allocation3 + $0x68] sm:$0xff] %vm912, %v1997
      %2030 = vst.msk [vmem:[#allocation3 + $0x70] sm:$0xff] %vm912, %v1998
      %2031 = vst.msk [vmem:[#allocation3 + $0x78] sm:$0xff] %vm912, %v1999
      %2032 = vst.msk [vmem:[#allocation3 + $0x80] sm:$0xff] %vm912, %v2000
      %2033 = vst.msk [vmem:[#allocation3 + $0x88] sm:$0xff] %vm912, %v2001
      %2034 = vst.msk [vmem:[#allocation3 + $0x90] sm:$0xff] %vm912, %v2002
      %2035 = vst.msk [vmem:[#allocation3 + $0x98] sm:$0xff] %vm912, %v2003
      %2036 = vst.msk [vmem:[#allocation3 + $0xa0] sm:$0xff] %vm912, %v2004
      %2037 = vst.msk [vmem:[#allocation3 + $0xa8] sm:$0xff] %vm912, %v2005
      %2038 = vst.msk [vmem:[#allocation3 + $0xb0] sm:$0xff] %vm912, %v2006
      %2039 = vst.msk [vmem:[#allocation3 + $0xb8] sm:$0xff] %vm912, %v2007
      %2040 = vst.msk [vmem:[#allocation3 + $0xc0] sm:$0xff] %vm912, %v2008
      %2041 = vst.msk [vmem:[#allocation3 + $0xc8] sm:$0xff] %vm912, %v2009
      %2042 = vst.msk [vmem:[#allocation3 + $0xd0] sm:$0xff] %vm912, %v2010
      %2043 = vst.msk [vmem:[#allocation3 + $0xd8] sm:$0xff] %vm912, %v2011
      %2044 = vst.msk [vmem:[#allocation3 + $0xe0] sm:$0xff] %vm912, %v2012
      %2045 = vst.msk [vmem:[#allocation3 + $0xe8] sm:$0xff] %vm912, %v2013
      %2046 = vst.msk [vmem:[#allocation3 + $0xf0] sm:$0xff] %vm912, %v2014
      %2047 = vst.msk [vmem:[#allocation3 + $0xf8] sm:$0xff] %vm912, %v2015
      %v2048 = vld [vmem:[#allocation2 + $0x2] sm:$0xff]
      %v2049 = vld [vmem:[#allocation2 + $0xa] sm:$0xff]
      %v2050 = vld [vmem:[#allocation2 + $0x1a] sm:$0xff]
      %v2051 = vld [vmem:[#allocation2 + $0x22] sm:$0xff]
      %v2052 = vld [vmem:[#allocation2 + $0x32] sm:$0xff]
      %v2053 = vld [vmem:[#allocation2 + $0x3a] sm:$0xff]
      %v2054 = vld [vmem:[#allocation2 + $0x4a] sm:$0xff]
      %v2055 = vld [vmem:[#allocation2 + $0x52] sm:$0xff]
      %v2056 = vld [vmem:[#allocation2 + $0x62] sm:$0xff]
      %v2057 = vld [vmem:[#allocation2 + $0x6a] sm:$0xff]
      %v2058 = vld [vmem:[#allocation2 + $0x7a] sm:$0xff]
      %v2059 = vld [vmem:[#allocation2 + $0x82] sm:$0xff]
      %v2060 = vld [vmem:[#allocation2 + $0x92] sm:$0xff]
      %v2061 = vld [vmem:[#allocation2 + $0x9a] sm:$0xff]
      %v2062 = vld [vmem:[#allocation2 + $0xaa] sm:$0xff]
      %v2063 = vld [vmem:[#allocation2 + $0xb2] sm:$0xff]
      %v2064 = vld [vmem:[#allocation2 + $0xc2] sm:$0xff]
      %v2065 = vld [vmem:[#allocation2 + $0xca] sm:$0xff]
      %v2066 = vld [vmem:[#allocation2 + $0xda] sm:$0xff]
      %v2067 = vld [vmem:[#allocation2 + $0xe2] sm:$0xff]
      %v2068 = vld [vmem:[#allocation2 + $0xf2] sm:$0xff]
      %v2069 = vld [vmem:[#allocation2 + $0xfa] sm:$0xff]
      %v2070 = vld [vmem:[#allocation2 + $0x10a] sm:$0xff]
      %v2071 = vld [vmem:[#allocation2 + $0x112] sm:$0xff]
      %v2072 = vld [vmem:[#allocation2 + $0x122] sm:$0xff]
      %v2073 = vld [vmem:[#allocation2 + $0x12a] sm:$0xff]
      %v2074 = vld [vmem:[#allocation2 + $0x13a] sm:$0xff]
      %v2075 = vld [vmem:[#allocation2 + $0x142] sm:$0xff]
      %v2076 = vld [vmem:[#allocation2 + $0x152] sm:$0xff]
      %v2077 = vld [vmem:[#allocation2 + $0x15a] sm:$0xff]
      %v2078 = vld [vmem:[#allocation2 + $0x16a] sm:$0xff]
      %v2079 = vld [vmem:[#allocation2 + $0x172] sm:$0xff]
      %v2080 = vld [vmem:[%s3] sm:$0xf]
      %2082 = vrot.lane.b32.xlu0 %v2080, 116
      %v2083 = vpop.permute.xlu0 %2082
      %v2085 = vsel %vm463, %v2048, 0
      %v2088 = vsel %vm463, %v2049, 0
      %v2091 = vsel %vm463, %v2050, 0
      %v2094 = vsel %vm463, %v2051, 0
      %v2097 = vsel %vm463, %v2052, 0
      %v2100 = vsel %vm463, %v2053, 0
      %v2103 = vsel %vm463, %v2054, 0
      %v2106 = vsel %vm463, %v2055, 0
      %v2109 = vsel %vm463, %v2056, 0
      %v2112 = vsel %vm463, %v2057, 0
      %v2115 = vsel %vm463, %v2058, 0
      %v2118 = vsel %vm463, %v2059, 0
      %v2121 = vsel %vm463, %v2060, 0
      %v2124 = vsel %vm463, %v2061, 0
      %v2127 = vsel %vm463, %v2062, 0
      %v2130 = vsel %vm463, %v2063, 0
      %v2133 = vsel %vm463, %v2064, 0
      %v2136 = vsel %vm463, %v2065, 0
      %v2139 = vsel %vm463, %v2066, 0
      %v2142 = vsel %vm463, %v2067, 0
      %v2145 = vsel %vm463, %v2068, 0
      %v2148 = vsel %vm463, %v2069, 0
      %v2151 = vsel %vm463, %v2070, 0
      %v2154 = vsel %vm463, %v2071, 0
      %v2157 = vsel %vm463, %v2072, 0
      %v2160 = vsel %vm463, %v2073, 0
      %v2163 = vsel %vm463, %v2074, 0
      %v2166 = vsel %vm463, %v2075, 0
      %v2169 = vsel %vm463, %v2076, 0
      %v2172 = vsel %vm463, %v2077, 0
      %v2175 = vsel %vm463, %v2078, 0
      %v2178 = vsel %vm463, %v2079, 0
      %v2180 = vsel %vm646, %v2083, 0
      %2182 = vmatprep.subr.mxu0 0.0
      %2183 = vmatpush1.msra.mxu0 %v2180
      %2184 = vmatprep.subr.mxu0 0.0
      %2185 = vmatpush1.msra.mxu0 0.0
      %2186 = vmatprep.subr.mxu0 0.0
      %2187 = vmatpush1.msra.mxu0 0.0
      %2188 = vmatprep.subr.mxu0 0.0
      %2189 = vmatpush1.msra.mxu0 0.0
      %2190 = vmatprep.subr.mxu0 0.0
      %2191 = vmatpush1.msra.mxu0 0.0
      %2192 = vmatprep.subr.mxu0 0.0
      %2193 = vmatpush1.msra.mxu0 0.0
      %2194 = vmatprep.subr.mxu0 0.0
      %2195 = vmatpush1.msra.mxu0 0.0
      %2196 = vmatprep.subr.mxu0 0.0
      %2197 = vmatpush1.msra.mxu0 0.0
      %2198 = vmatprep.subr.mxu0 0.0
      %2199 = vmatpush1.msra.mxu0 0.0
      %2200 = vmatprep.subr.mxu0 0.0
      %2201 = vmatpush1.msra.mxu0 0.0
      %2202 = vmatprep.subr.mxu0 0.0
      %2203 = vmatpush1.msra.mxu0 0.0
      %2204 = vmatprep.subr.mxu0 0.0
      %2205 = vmatpush1.msra.mxu0 0.0
      %2206 = vmatprep.subr.mxu0 0.0
      %2207 = vmatpush1.msra.mxu0 0.0
      %2208 = vmatprep.subr.mxu0 0.0
      %2209 = vmatpush1.msra.mxu0 0.0
      %2210 = vmatprep.subr.mxu0 0.0
      %2211 = vmatpush1.msra.mxu0 0.0
      %2212 = vmatprep.subr.mxu0 0.0
      %2213 = vmatpush1.msra.mxu0 0.0
      %2214 = vmatprep.subr.mxu0 0.0
      %2215 = vmatpush1.msra.mxu0 0.0
      %2216 = vmatprep.subr.mxu0 0.0
      %2217 = vmatpush1.msra.mxu0 0.0
      %2218 = vmatprep.subr.mxu0 0.0
      %2219 = vmatpush1.msra.mxu0 0.0
      %2220 = vmatprep.subr.mxu0 0.0
      %2221 = vmatpush1.msra.mxu0 0.0
      %2222 = vmatprep.subr.mxu0 0.0
      %2223 = vmatpush1.msra.mxu0 0.0
      %2224 = vmatprep.subr.mxu0 0.0
      %2225 = vmatpush1.msra.mxu0 0.0
      %2226 = vmatprep.subr.mxu0 0.0
      %2227 = vmatpush1.msra.mxu0 0.0
      %2228 = vmatprep.subr.mxu0 0.0
      %2229 = vmatpush1.msra.mxu0 0.0
      %2230 = vmatprep.subr.mxu0 0.0
      %2231 = vmatpush1.msra.mxu0 0.0
      %2232 = vmatprep.subr.mxu0 0.0
      %2233 = vmatpush1.msra.mxu0 0.0
      %2234 = vmatprep.subr.mxu0 0.0
      %2235 = vmatpush1.msra.mxu0 0.0
      %2236 = vmatprep.subr.mxu0 0.0
      %2237 = vmatpush1.msra.mxu0 0.0
      %2238 = vmatprep.subr.mxu0 0.0
      %2239 = vmatpush1.msra.mxu0 0.0
      %2240 = vmatprep.subr.mxu0 0.0
      %2241 = vmatpush1.msra.mxu0 0.0
      %2242 = vmatprep.subr.mxu0 0.0
      %2243 = vmatpush1.msra.mxu0 0.0
      %2244 = vmatprep.subr.mxu0 0.0
      %2245 = vmatpush1.msra.mxu0 0.0
      %2246 = vmatprep.mubr.f32.mxu0 0.0
      %2247 = vmatmul.mubr.f32.gmra.mrb[0].mxu0 %v2085
      %v2248 = vpop.f32.mrb[0].mxu0
      %v2249 = vadd.f32 0.0, %v2248
      %v2250 = vpop.f32.mrb[0].mxu0
      %2251 = vmatprep.mubr.f32.mxu0 0.0
      %2252 = vmatmul.mubr.f32.gmra.mrb[0].mxu0 %v2088
      %v2253 = vpop.f32.mrb[0].mxu0
      %v2254 = vadd.f32 0.0, %v2253
      %v2255 = vpop.f32.mrb[0].mxu0
      %2256 = vmatprep.mubr.f32.mxu0 0.0
      %2257 = vmatmul.mubr.f32.gmra.mrb[0].mxu0 %v2091
      %v2258 = vpop.f32.mrb[0].mxu0
      %v2259 = vadd.f32 0.0, %v2258
      %v2260 = vpop.f32.mrb[0].mxu0
      %2261 = vmatprep.mubr.f32.mxu0 0.0
      %2262 = vmatmul.mubr.f32.gmra.mrb[0].mxu0 %v2094
      %v2263 = vpop.f32.mrb[0].mxu0
      %v2264 = vadd.f32 0.0, %v2263
      %v2265 = vpop.f32.mrb[0].mxu0
      %2266 = vmatprep.mubr.f32.mxu0 0.0
      %2267 = vmatmul.mubr.f32.gmra.mrb[0].mxu0 %v2097
      %v2268 = vpop.f32.mrb[0].mxu0
      %v2269 = vadd.f32 0.0, %v2268
      %v2270 = vpop.f32.mrb[0].mxu0
      %2271 = vmatprep.mubr.f32.mxu0 0.0
      %2272 = vmatmul.mubr.f32.gmra.mrb[0].mxu0 %v2100
      %v2273 = vpop.f32.mrb[0].mxu0
      %v2274 = vadd.f32 0.0, %v2273
      %v2275 = vpop.f32.mrb[0].mxu0
      %2276 = vmatprep.mubr.f32.mxu0 0.0
      %2277 = vmatmul.mubr.f32.gmra.mrb[0].mxu0 %v2103
      %v2278 = vpop.f32.mrb[0].mxu0
      %v2279 = vadd.f32 0.0, %v2278
      %v2280 = vpop.f32.mrb[0].mxu0
      %2281 = vmatprep.mubr.f32.mxu0 0.0
      %2282 = vmatmul.mubr.f32.gmra.mrb[0].mxu0 %v2106
      %v2283 = vpop.f32.mrb[0].mxu0
      %v2284 = vadd.f32 0.0, %v2283
      %v2285 = vpop.f32.mrb[0].mxu0
      %2286 = vmatprep.mubr.f32.mxu0 0.0
      %2287 = vmatmul.mubr.f32.gmra.mrb[0].mxu0 %v2109
      %v2288 = vpop.f32.mrb[0].mxu0
      %v2289 = vadd.f32 0.0, %v2288
      %v2290 = vpop.f32.mrb[0].mxu0
      %2291 = vmatprep.mubr.f32.mxu0 0.0
      %2292 = vmatmul.mubr.f32.gmra.mrb[0].mxu0 %v2112
      %v2293 = vpop.f32.mrb[0].mxu0
      %v2294 = vadd.f32 0.0, %v2293
      %v2295 = vpop.f32.mrb[0].mxu0
      %2296 = vmatprep.mubr.f32.mxu0 0.0
      %2297 = vmatmul.mubr.f32.gmra.mrb[0].mxu0 %v2115
      %v2298 = vpop.f32.mrb[0].mxu0
      %v2299 = vadd.f32 0.0, %v2298
      %v2300 = vpop.f32.mrb[0].mxu0
      %2301 = vmatprep.mubr.f32.mxu0 0.0
      %2302 = vmatmul.mubr.f32.gmra.mrb[0].mxu0 %v2118
      %v2303 = vpop.f32.mrb[0].mxu0
      %v2304 = vadd.f32 0.0, %v2303
      %v2305 = vpop.f32.mrb[0].mxu0
      %2306 = vmatprep.mubr.f32.mxu0 0.0
      %2307 = vmatmul.mubr.f32.gmra.mrb[0].mxu0 %v2121
      %v2308 = vpop.f32.mrb[0].mxu0
      %v2309 = vadd.f32 0.0, %v2308
      %v2310 = vpop.f32.mrb[0].mxu0
      %2311 = vmatprep.mubr.f32.mxu0 0.0
      %2312 = vmatmul.mubr.f32.gmra.mrb[0].mxu0 %v2124
      %v2313 = vpop.f32.mrb[0].mxu0
      %v2314 = vadd.f32 0.0, %v2313
      %v2315 = vpop.f32.mrb[0].mxu0
      %2316 = vmatprep.mubr.f32.mxu0 0.0
      %2317 = vmatmul.mubr.f32.gmra.mrb[0].mxu0 %v2127
      %v2318 = vpop.f32.mrb[0].mxu0
      %v2319 = vadd.f32 0.0, %v2318
      %v2320 = vpop.f32.mrb[0].mxu0
      %2321 = vmatprep.mubr.f32.mxu0 0.0
      %2322 = vmatmul.mubr.f32.gmra.mrb[0].mxu0 %v2130
      %v2323 = vpop.f32.mrb[0].mxu0
      %v2324 = vadd.f32 0.0, %v2323
      %v2325 = vpop.f32.mrb[0].mxu0
      %2326 = vmatprep.mubr.f32.mxu0 0.0
      %2327 = vmatmul.mubr.f32.gmra.mrb[0].mxu0 %v2133
      %v2328 = vpop.f32.mrb[0].mxu0
      %v2329 = vadd.f32 0.0, %v2328
      %v2330 = vpop.f32.mrb[0].mxu0
      %2331 = vmatprep.mubr.f32.mxu0 0.0
      %2332 = vmatmul.mubr.f32.gmra.mrb[0].mxu0 %v2136
      %v2333 = vpop.f32.mrb[0].mxu0
      %v2334 = vadd.f32 0.0, %v2333
      %v2335 = vpop.f32.mrb[0].mxu0
      %2336 = vmatprep.mubr.f32.mxu0 0.0
      %2337 = vmatmul.mubr.f32.gmra.mrb[0].mxu0 %v2139
      %v2338 = vpop.f32.mrb[0].mxu0
      %v2339 = vadd.f32 0.0, %v2338
      %v2340 = vpop.f32.mrb[0].mxu0
      %2341 = vmatprep.mubr.f32.mxu0 0.0
      %2342 = vmatmul.mubr.f32.gmra.mrb[0].mxu0 %v2142
      %v2343 = vpop.f32.mrb[0].mxu0
      %v2344 = vadd.f32 0.0, %v2343
      %v2345 = vpop.f32.mrb[0].mxu0
      %2346 = vmatprep.mubr.f32.mxu0 0.0
      %2347 = vmatmul.mubr.f32.gmra.mrb[0].mxu0 %v2145
      %v2348 = vpop.f32.mrb[0].mxu0
      %v2349 = vadd.f32 0.0, %v2348
      %v2350 = vpop.f32.mrb[0].mxu0
      %2351 = vmatprep.mubr.f32.mxu0 0.0
      %2352 = vmatmul.mubr.f32.gmra.mrb[0].mxu0 %v2148
      %v2353 = vpop.f32.mrb[0].mxu0
      %v2354 = vadd.f32 0.0, %v2353
      %v2355 = vpop.f32.mrb[0].mxu0
      %2356 = vmatprep.mubr.f32.mxu0 0.0
      %2357 = vmatmul.mubr.f32.gmra.mrb[0].mxu0 %v2151
      %v2358 = vpop.f32.mrb[0].mxu0
      %v2359 = vadd.f32 0.0, %v2358
      %v2360 = vpop.f32.mrb[0].mxu0
      %2361 = vmatprep.mubr.f32.mxu0 0.0
      %2362 = vmatmul.mubr.f32.gmra.mrb[0].mxu0 %v2154
      %v2363 = vpop.f32.mrb[0].mxu0
      %v2364 = vadd.f32 0.0, %v2363
      %v2365 = vpop.f32.mrb[0].mxu0
      %2366 = vmatprep.mubr.f32.mxu0 0.0
      %2367 = vmatmul.mubr.f32.gmra.mrb[0].mxu0 %v2157
      %v2368 = vpop.f32.mrb[0].mxu0
      %v2369 = vadd.f32 0.0, %v2368
      %v2370 = vpop.f32.mrb[0].mxu0
      %2371 = vmatprep.mubr.f32.mxu0 0.0
      %2372 = vmatmul.mubr.f32.gmra.mrb[0].mxu0 %v2160
      %v2373 = vpop.f32.mrb[0].mxu0
      %v2374 = vadd.f32 0.0, %v2373
      %v2375 = vpop.f32.mrb[0].mxu0
      %2376 = vmatprep.mubr.f32.mxu0 0.0
      %2377 = vmatmul.mubr.f32.gmra.mrb[0].mxu0 %v2163
      %v2378 = vpop.f32.mrb[0].mxu0
      %v2379 = vadd.f32 0.0, %v2378
      %v2380 = vpop.f32.mrb[0].mxu0
      %2381 = vmatprep.mubr.f32.mxu0 0.0
      %2382 = vmatmul.mubr.f32.gmra.mrb[0].mxu0 %v2166
      %v2383 = vpop.f32.mrb[0].mxu0
      %v2384 = vadd.f32 0.0, %v2383
      %v2385 = vpop.f32.mrb[0].mxu0
      %2386 = vmatprep.mubr.f32.mxu0 0.0
      %2387 = vmatmul.mubr.f32.gmra.mrb[0].mxu0 %v2169
      %v2388 = vpop.f32.mrb[0].mxu0
      %v2389 = vadd.f32 0.0, %v2388
      %v2390 = vpop.f32.mrb[0].mxu0
      %2391 = vmatprep.mubr.f32.mxu0 0.0
      %2392 = vmatmul.mubr.f32.gmra.mrb[0].mxu0 %v2172
      %v2393 = vpop.f32.mrb[0].mxu0
      %v2394 = vadd.f32 0.0, %v2393
      %v2395 = vpop.f32.mrb[0].mxu0
      %2396 = vmatprep.mubr.f32.mxu0 0.0
      %2397 = vmatmul.mubr.f32.gmra.mrb[0].mxu0 %v2175
      %v2398 = vpop.f32.mrb[0].mxu0
      %v2399 = vadd.f32 0.0, %v2398
      %v2400 = vpop.f32.mrb[0].mxu0
      %2401 = vmatprep.mubr.f32.mxu0 0.0
      %2402 = vmatmul.mubr.f32.gmra.mrb[0].mxu0 %v2178
      %v2403 = vpop.f32.mrb[0].mxu0
      %v2404 = vadd.f32 0.0, %v2403
      %v2405 = vpop.f32.mrb[0].mxu0
      %2406 = vdwg.mxu0
      %v2407 = vld [vmem:[#allocation3] sm:$0xff]
      %v2408 = vld [vmem:[#allocation3 + $0x8] sm:$0xff]
      %v2409 = vld [vmem:[#allocation3 + $0x10] sm:$0xff]
      %v2410 = vld [vmem:[#allocation3 + $0x18] sm:$0xff]
      %v2411 = vld [vmem:[#allocation3 + $0x20] sm:$0xff]
      %v2412 = vld [vmem:[#allocation3 + $0x28] sm:$0xff]
      %v2413 = vld [vmem:[#allocation3 + $0x30] sm:$0xff]
      %v2414 = vld [vmem:[#allocation3 + $0x38] sm:$0xff]
      %v2415 = vld [vmem:[#allocation3 + $0x40] sm:$0xff]
      %v2416 = vld [vmem:[#allocation3 + $0x48] sm:$0xff]
      %v2417 = vld [vmem:[#allocation3 + $0x50] sm:$0xff]
      %v2418 = vld [vmem:[#allocation3 + $0x58] sm:$0xff]
      %v2419 = vld [vmem:[#allocation3 + $0x60] sm:$0xff]
      %v2420 = vld [vmem:[#allocation3 + $0x68] sm:$0xff]
      %v2421 = vld [vmem:[#allocation3 + $0x70] sm:$0xff]
      %v2422 = vld [vmem:[#allocation3 + $0x78] sm:$0xff]
      %v2423 = vld [vmem:[#allocation3 + $0x80] sm:$0xff]
      %v2424 = vld [vmem:[#allocation3 + $0x88] sm:$0xff]
      %v2425 = vld [vmem:[#allocation3 + $0x90] sm:$0xff]
      %v2426 = vld [vmem:[#allocation3 + $0x98] sm:$0xff]
      %v2427 = vld [vmem:[#allocation3 + $0xa0] sm:$0xff]
      %v2428 = vld [vmem:[#allocation3 + $0xa8] sm:$0xff]
      %v2429 = vld [vmem:[#allocation3 + $0xb0] sm:$0xff]
      %v2430 = vld [vmem:[#allocation3 + $0xb8] sm:$0xff]
      %v2431 = vld [vmem:[#allocation3 + $0xc0] sm:$0xff]
      %v2432 = vld [vmem:[#allocation3 + $0xc8] sm:$0xff]
      %v2433 = vld [vmem:[#allocation3 + $0xd0] sm:$0xff]
      %v2434 = vld [vmem:[#allocation3 + $0xd8] sm:$0xff]
      %v2435 = vld [vmem:[#allocation3 + $0xe0] sm:$0xff]
      %v2436 = vld [vmem:[#allocation3 + $0xe8] sm:$0xff]
      %v2437 = vld [vmem:[#allocation3 + $0xf0] sm:$0xff]
      %v2438 = vld [vmem:[#allocation3 + $0xf8] sm:$0xff]
      %2471 = vrot.lane.b32.xlu0 %v2249, 4
      %v2472 = vpop.permute.xlu0 %2471
      %2473 = vrot.lane.b32.xlu0 %v2254, 4
      %v2474 = vpop.permute.xlu0 %2473
      %2475 = vrot.lane.b32.xlu0 %v2259, 4
      %v2476 = vpop.permute.xlu0 %2475
      %2477 = vrot.lane.b32.xlu0 %v2264, 4
      %v2478 = vpop.permute.xlu0 %2477
      %2479 = vrot.lane.b32.xlu0 %v2269, 4
      %v2480 = vpop.permute.xlu0 %2479
      %2481 = vrot.lane.b32.xlu0 %v2274, 4
      %v2482 = vpop.permute.xlu0 %2481
      %2483 = vrot.lane.b32.xlu0 %v2279, 4
      %v2484 = vpop.permute.xlu0 %2483
      %2485 = vrot.lane.b32.xlu0 %v2284, 4
      %v2486 = vpop.permute.xlu0 %2485
      %2487 = vrot.lane.b32.xlu0 %v2289, 4
      %v2488 = vpop.permute.xlu0 %2487
      %2489 = vrot.lane.b32.xlu0 %v2294, 4
      %v2490 = vpop.permute.xlu0 %2489
      %2491 = vrot.lane.b32.xlu0 %v2299, 4
      %v2492 = vpop.permute.xlu0 %2491
      %2493 = vrot.lane.b32.xlu0 %v2304, 4
      %v2494 = vpop.permute.xlu0 %2493
      %2495 = vrot.lane.b32.xlu0 %v2309, 4
      %v2496 = vpop.permute.xlu0 %2495
      %2497 = vrot.lane.b32.xlu0 %v2314, 4
      %v2498 = vpop.permute.xlu0 %2497
      %2499 = vrot.lane.b32.xlu0 %v2319, 4
      %v2500 = vpop.permute.xlu0 %2499
      %2501 = vrot.lane.b32.xlu0 %v2324, 4
      %v2502 = vpop.permute.xlu0 %2501
      %2503 = vrot.lane.b32.xlu0 %v2329, 4
      %v2504 = vpop.permute.xlu0 %2503
      %2505 = vrot.lane.b32.xlu0 %v2334, 4
      %v2506 = vpop.permute.xlu0 %2505
      %2507 = vrot.lane.b32.xlu0 %v2339, 4
      %v2508 = vpop.permute.xlu0 %2507
      %2509 = vrot.lane.b32.xlu0 %v2344, 4
      %v2510 = vpop.permute.xlu0 %2509
      %2511 = vrot.lane.b32.xlu0 %v2349, 4
      %v2512 = vpop.permute.xlu0 %2511
      %2513 = vrot.lane.b32.xlu0 %v2354, 4
      %v2514 = vpop.permute.xlu0 %2513
      %2515 = vrot.lane.b32.xlu0 %v2359, 4
      %v2516 = vpop.permute.xlu0 %2515
      %2517 = vrot.lane.b32.xlu0 %v2364, 4
      %v2518 = vpop.permute.xlu0 %2517
      %2519 = vrot.lane.b32.xlu0 %v2369, 4
      %v2520 = vpop.permute.xlu0 %2519
      %2521 = vrot.lane.b32.xlu0 %v2374, 4
      %v2522 = vpop.permute.xlu0 %2521
      %2523 = vrot.lane.b32.xlu0 %v2379, 4
      %v2524 = vpop.permute.xlu0 %2523
      %2525 = vrot.lane.b32.xlu0 %v2384, 4
      %v2526 = vpop.permute.xlu0 %2525
      %2527 = vrot.lane.b32.xlu0 %v2389, 4
      %v2528 = vpop.permute.xlu0 %2527
      %2529 = vrot.lane.b32.xlu0 %v2394, 4
      %v2530 = vpop.permute.xlu0 %2529
      %2531 = vrot.lane.b32.xlu0 %v2399, 4
      %v2532 = vpop.permute.xlu0 %2531
      %2533 = vrot.lane.b32.xlu0 %v2404, 4
      %v2534 = vpop.permute.xlu0 %2533
      %v2567 = vadd.f32 %v2407, %v2472
      %v2568 = vadd.f32 %v2408, %v2474
      %v2569 = vadd.f32 %v2409, %v2476
      %v2570 = vadd.f32 %v2410, %v2478
      %v2571 = vadd.f32 %v2411, %v2480
      %v2572 = vadd.f32 %v2412, %v2482
      %v2573 = vadd.f32 %v2413, %v2484
      %v2574 = vadd.f32 %v2414, %v2486
      %v2575 = vadd.f32 %v2415, %v2488
      %v2576 = vadd.f32 %v2416, %v2490
      %v2577 = vadd.f32 %v2417, %v2492
      %v2578 = vadd.f32 %v2418, %v2494
      %v2579 = vadd.f32 %v2419, %v2496
      %v2580 = vadd.f32 %v2420, %v2498
      %v2581 = vadd.f32 %v2421, %v2500
      %v2582 = vadd.f32 %v2422, %v2502
      %v2583 = vadd.f32 %v2423, %v2504
      %v2584 = vadd.f32 %v2424, %v2506
      %v2585 = vadd.f32 %v2425, %v2508
      %v2586 = vadd.f32 %v2426, %v2510
      %v2587 = vadd.f32 %v2427, %v2512
      %v2588 = vadd.f32 %v2428, %v2514
      %v2589 = vadd.f32 %v2429, %v2516
      %v2590 = vadd.f32 %v2430, %v2518
      %v2591 = vadd.f32 %v2431, %v2520
      %v2592 = vadd.f32 %v2432, %v2522
      %v2593 = vadd.f32 %v2433, %v2524
      %v2594 = vadd.f32 %v2434, %v2526
      %v2595 = vadd.f32 %v2435, %v2528
      %v2596 = vadd.f32 %v2436, %v2530
      %v2597 = vadd.f32 %v2437, %v2532
      %v2598 = vadd.f32 %v2438, %v2534
      %vm2599 = vcmask 64544
      %2600 = vst.msk [vmem:[#allocation3] sm:$0xff] %vm2599, %v2567
      %2601 = vst.msk [vmem:[#allocation3 + $0x8] sm:$0xff] %vm2599, %v2568
      %2602 = vst.msk [vmem:[#allocation3 + $0x10] sm:$0xff] %vm2599, %v2569
      %2603 = vst.msk [vmem:[#allocation3 + $0x18] sm:$0xff] %vm2599, %v2570
      %2604 = vst.msk [vmem:[#allocation3 + $0x20] sm:$0xff] %vm2599, %v2571
      %2605 = vst.msk [vmem:[#allocation3 + $0x28] sm:$0xff] %vm2599, %v2572
      %2606 = vst.msk [vmem:[#allocation3 + $0x30] sm:$0xff] %vm2599, %v2573
      %2607 = vst.msk [vmem:[#allocation3 + $0x38] sm:$0xff] %vm2599, %v2574
      %2608 = vst.msk [vmem:[#allocation3 + $0x40] sm:$0xff] %vm2599, %v2575
      %2609 = vst.msk [vmem:[#allocation3 + $0x48] sm:$0xff] %vm2599, %v2576
      %2610 = vst.msk [vmem:[#allocation3 + $0x50] sm:$0xff] %vm2599, %v2577
      %2611 = vst.msk [vmem:[#allocation3 + $0x58] sm:$0xff] %vm2599, %v2578
      %2612 = vst.msk [vmem:[#allocation3 + $0x60] sm:$0xff] %vm2599, %v2579
      %2613 = vst.msk [vmem:[#allocation3 + $0x68] sm:$0xff] %vm2599, %v2580
      %2614 = vst.msk [vmem:[#allocation3 + $0x70] sm:$0xff] %vm2599, %v2581
      %2615 = vst.msk [vmem:[#allocation3 + $0x78] sm:$0xff] %vm2599, %v2582
      %2616 = vst.msk [vmem:[#allocation3 + $0x80] sm:$0xff] %vm2599, %v2583
      %2617 = vst.msk [vmem:[#allocation3 + $0x88] sm:$0xff] %vm2599, %v2584
      %2618 = vst.msk [vmem:[#allocation3 + $0x90] sm:$0xff] %vm2599, %v2585
      %2619 = vst.msk [vmem:[#allocation3 + $0x98] sm:$0xff] %vm2599, %v2586
      %2620 = vst.msk [vmem:[#allocation3 + $0xa0] sm:$0xff] %vm2599, %v2587
      %2621 = vst.msk [vmem:[#allocation3 + $0xa8] sm:$0xff] %vm2599, %v2588
      %2622 = vst.msk [vmem:[#allocation3 + $0xb0] sm:$0xff] %vm2599, %v2589
      %2623 = vst.msk [vmem:[#allocation3 + $0xb8] sm:$0xff] %vm2599, %v2590
      %2624 = vst.msk [vmem:[#allocation3 + $0xc0] sm:$0xff] %vm2599, %v2591
      %2625 = vst.msk [vmem:[#allocation3 + $0xc8] sm:$0xff] %vm2599, %v2592
      %2626 = vst.msk [vmem:[#allocation3 + $0xd0] sm:$0xff] %vm2599, %v2593
      %2627 = vst.msk [vmem:[#allocation3 + $0xd8] sm:$0xff] %vm2599, %v2594
      %2628 = vst.msk [vmem:[#allocation3 + $0xe0] sm:$0xff] %vm2599, %v2595
      %2629 = vst.msk [vmem:[#allocation3 + $0xe8] sm:$0xff] %vm2599, %v2596
      %2630 = vst.msk [vmem:[#allocation3 + $0xf0] sm:$0xff] %vm2599, %v2597
      %2631 = vst.msk [vmem:[#allocation3 + $0xf8] sm:$0xff] %vm2599, %v2598
      %v2632 = vld [vmem:[%s462] sm:$0xff]
      %v2633 = vld [vmem:[%s462 + $0x8] sm:$0xff]
      %v2634 = vld [vmem:[%s462 + $0x18] sm:$0xff]
      %v2635 = vld [vmem:[%s462 + $0x20] sm:$0xff]
      %v2636 = vld [vmem:[%s462 + $0x30] sm:$0xff]
      %v2637 = vld [vmem:[%s462 + $0x38] sm:$0xff]
      %v2638 = vld [vmem:[%s462 + $0x48] sm:$0xff]
      %v2639 = vld [vmem:[%s462 + $0x50] sm:$0xff]
      %v2640 = vld [vmem:[%s462 + $0x60] sm:$0xff]
      %v2641 = vld [vmem:[%s462 + $0x68] sm:$0xff]
      %v2642 = vld [vmem:[%s462 + $0x78] sm:$0xff]
      %v2643 = vld [vmem:[%s462 + $0x80] sm:$0xff]
      %v2644 = vld [vmem:[%s462 + $0x90] sm:$0xff]
      %v2645 = vld [vmem:[%s462 + $0x98] sm:$0xff]
      %v2646 = vld [vmem:[%s462 + $0xa8] sm:$0xff]
      %v2647 = vld [vmem:[%s462 + $0xb0] sm:$0xff]
      %v2648 = vld [vmem:[%s462 + $0xc0] sm:$0xff]
      %v2649 = vld [vmem:[%s462 + $0xc8] sm:$0xff]
      %v2650 = vld [vmem:[%s462 + $0xd8] sm:$0xff]
      %v2651 = vld [vmem:[%s462 + $0xe0] sm:$0xff]
      %v2652 = vld [vmem:[%s462 + $0xf0] sm:$0xff]
      %v2653 = vld [vmem:[%s462 + $0xf8] sm:$0xff]
      %v2654 = vld [vmem:[%s462 + $0x108] sm:$0xff]
      %v2655 = vld [vmem:[%s462 + $0x110] sm:$0xff]
      %v2656 = vld [vmem:[%s462 + $0x120] sm:$0xff]
      %v2657 = vld [vmem:[%s462 + $0x128] sm:$0xff]
      %v2658 = vld [vmem:[%s462 + $0x138] sm:$0xff]
      %v2659 = vld [vmem:[%s462 + $0x140] sm:$0xff]
      %v2660 = vld [vmem:[%s462 + $0x150] sm:$0xff]
      %v2661 = vld [vmem:[%s462 + $0x158] sm:$0xff]
      %v2662 = vld [vmem:[%s462 + $0x168] sm:$0xff]
      %v2663 = vld [vmem:[%s462 + $0x170] sm:$0xff]
      %v2664 = vld [vmem:[%s3] sm:$0xf]
      %2666 = vrot.lane.b32.xlu0 %v2664, 112
      %v2667 = vpop.permute.xlu0 %2666
      %v2669 = vsel %vm463, %v2632, 0
      %v2672 = vsel %vm463, %v2633, 0
      %v2675 = vsel %vm463, %v2634, 0
      %v2678 = vsel %vm463, %v2635, 0
      %v2681 = vsel %vm463, %v2636, 0
      %v2684 = vsel %vm463, %v2637, 0
      %v2687 = vsel %vm463, %v2638, 0
      %v2690 = vsel %vm463, %v2639, 0
      %v2693 = vsel %vm463, %v2640, 0
      %v2696 = vsel %vm463, %v2641, 0
      %v2699 = vsel %vm463, %v2642, 0
      %v2702 = vsel %vm463, %v2643, 0
      %v2705 = vsel %vm463, %v2644, 0
      %v2708 = vsel %vm463, %v2645, 0
      %v2711 = vsel %vm463, %v2646, 0
      %v2714 = vsel %vm463, %v2647, 0
      %v2717 = vsel %vm463, %v2648, 0
      %v2720 = vsel %vm463, %v2649, 0
      %v2723 = vsel %vm463, %v2650, 0
      %v2726 = vsel %vm463, %v2651, 0
      %v2729 = vsel %vm463, %v2652, 0
      %v2732 = vsel %vm463, %v2653, 0
      %v2735 = vsel %vm463, %v2654, 0
      %v2738 = vsel %vm463, %v2655, 0
      %v2741 = vsel %vm463, %v2656, 0
      %v2744 = vsel %vm463, %v2657, 0
      %v2747 = vsel %vm463, %v2658, 0
      %v2750 = vsel %vm463, %v2659, 0
      %v2753 = vsel %vm463, %v2660, 0
      %v2756 = vsel %vm463, %v2661, 0
      %v2759 = vsel %vm463, %v2662, 0
      %v2762 = vsel %vm463, %v2663, 0
      %v2764 = vsel %vm646, %v2667, 0
      %2766 = vmatprep.subr.mxu0 0.0
      %2767 = vmatpush1.msra.mxu0 %v2764
      %2768 = vmatprep.subr.mxu0 0.0
      %2769 = vmatpush1.msra.mxu0 0.0
      %2770 = vmatprep.subr.mxu0 0.0
      %2771 = vmatpush1.msra.mxu0 0.0
      %2772 = vmatprep.subr.mxu0 0.0
      %2773 = vmatpush1.msra.mxu0 0.0
      %2774 = vmatprep.subr.mxu0 0.0
      %2775 = vmatpush1.msra.mxu0 0.0
      %2776 = vmatprep.subr.mxu0 0.0
      %2777 = vmatpush1.msra.mxu0 0.0
      %2778 = vmatprep.subr.mxu0 0.0
      %2779 = vmatpush1.msra.mxu0 0.0
      %2780 = vmatprep.subr.mxu0 0.0
      %2781 = vmatpush1.msra.mxu0 0.0
      %2782 = vmatprep.subr.mxu0 0.0
      %2783 = vmatpush1.msra.mxu0 0.0
      %2784 = vmatprep.subr.mxu0 0.0
      %2785 = vmatpush1.msra.mxu0 0.0
      %2786 = vmatprep.subr.mxu0 0.0
      %2787 = vmatpush1.msra.mxu0 0.0
      %2788 = vmatprep.subr.mxu0 0.0
      %2789 = vmatpush1.msra.mxu0 0.0
      %2790 = vmatprep.subr.mxu0 0.0
      %2791 = vmatpush1.msra.mxu0 0.0
      %2792 = vmatprep.subr.mxu0 0.0
      %2793 = vmatpush1.msra.mxu0 0.0
      %2794 = vmatprep.subr.mxu0 0.0
      %2795 = vmatpush1.msra.mxu0 0.0
      %2796 = vmatprep.subr.mxu0 0.0
      %2797 = vmatpush1.msra.mxu0 0.0
      %2798 = vmatprep.subr.mxu0 0.0
      %2799 = vmatpush1.msra.mxu0 0.0
      %2800 = vmatprep.subr.mxu0 0.0
      %2801 = vmatpush1.msra.mxu0 0.0
      %2802 = vmatprep.subr.mxu0 0.0
      %2803 = vmatpush1.msra.mxu0 0.0
      %2804 = vmatprep.subr.mxu0 0.0
      %2805 = vmatpush1.msra.mxu0 0.0
      %2806 = vmatprep.subr.mxu0 0.0
      %2807 = vmatpush1.msra.mxu0 0.0
      %2808 = vmatprep.subr.mxu0 0.0
      %2809 = vmatpush1.msra.mxu0 0.0
      %2810 = vmatprep.subr.mxu0 0.0
      %2811 = vmatpush1.msra.mxu0 0.0
      %2812 = vmatprep.subr.mxu0 0.0
      %2813 = vmatpush1.msra.mxu0 0.0
      %2814 = vmatprep.subr.mxu0 0.0
      %2815 = vmatpush1.msra.mxu0 0.0
      %2816 = vmatprep.subr.mxu0 0.0
      %2817 = vmatpush1.msra.mxu0 0.0
      %2818 = vmatprep.subr.mxu0 0.0
      %2819 = vmatpush1.msra.mxu0 0.0
      %2820 = vmatprep.subr.mxu0 0.0
      %2821 = vmatpush1.msra.mxu0 0.0
      %2822 = vmatprep.subr.mxu0 0.0
      %2823 = vmatpush1.msra.mxu0 0.0
      %2824 = vmatprep.subr.mxu0 0.0
      %2825 = vmatpush1.msra.mxu0 0.0
      %2826 = vmatprep.subr.mxu0 0.0
      %2827 = vmatpush1.msra.mxu0 0.0
      %2828 = vmatprep.subr.mxu0 0.0
      %2829 = vmatpush1.msra.mxu0 0.0
      %2830 = vmatprep.mubr.f32.mxu0 0.0
      %2831 = vmatmul.mubr.f32.gmra.mrb[0].mxu0 %v2669
      %v2832 = vpop.f32.mrb[0].mxu0
      %v2833 = vadd.f32 0.0, %v2832
      %v2834 = vpop.f32.mrb[0].mxu0
      %2835 = vmatprep.mubr.f32.mxu0 0.0
      %2836 = vmatmul.mubr.f32.gmra.mrb[0].mxu0 %v2672
      %v2837 = vpop.f32.mrb[0].mxu0
      %v2838 = vadd.f32 0.0, %v2837
      %v2839 = vpop.f32.mrb[0].mxu0
      %2840 = vmatprep.mubr.f32.mxu0 0.0
      %2841 = vmatmul.mubr.f32.gmra.mrb[0].mxu0 %v2675
      %v2842 = vpop.f32.mrb[0].mxu0
      %v2843 = vadd.f32 0.0, %v2842
      %v2844 = vpop.f32.mrb[0].mxu0
      %2845 = vmatprep.mubr.f32.mxu0 0.0
      %2846 = vmatmul.mubr.f32.gmra.mrb[0].mxu0 %v2678
      %v2847 = vpop.f32.mrb[0].mxu0
      %v2848 = vadd.f32 0.0, %v2847
      %v2849 = vpop.f32.mrb[0].mxu0
      %2850 = vmatprep.mubr.f32.mxu0 0.0
      %2851 = vmatmul.mubr.f32.gmra.mrb[0].mxu0 %v2681
      %v2852 = vpop.f32.mrb[0].mxu0
      %v2853 = vadd.f32 0.0, %v2852
      %v2854 = vpop.f32.mrb[0].mxu0
      %2855 = vmatprep.mubr.f32.mxu0 0.0
      %2856 = vmatmul.mubr.f32.gmra.mrb[0].mxu0 %v2684
      %v2857 = vpop.f32.mrb[0].mxu0
      %v2858 = vadd.f32 0.0, %v2857
      %v2859 = vpop.f32.mrb[0].mxu0
      %2860 = vmatprep.mubr.f32.mxu0 0.0
      %2861 = vmatmul.mubr.f32.gmra.mrb[0].mxu0 %v2687
      %v2862 = vpop.f32.mrb[0].mxu0
      %v2863 = vadd.f32 0.0, %v2862
      %v2864 = vpop.f32.mrb[0].mxu0
      %2865 = vmatprep.mubr.f32.mxu0 0.0
      %2866 = vmatmul.mubr.f32.gmra.mrb[0].mxu0 %v2690
      %v2867 = vpop.f32.mrb[0].mxu0
      %v2868 = vadd.f32 0.0, %v2867
      %v2869 = vpop.f32.mrb[0].mxu0
      %2870 = vmatprep.mubr.f32.mxu0 0.0
      %2871 = vmatmul.mubr.f32.gmra.mrb[0].mxu0 %v2693
      %v2872 = vpop.f32.mrb[0].mxu0
      %v2873 = vadd.f32 0.0, %v2872
      %v2874 = vpop.f32.mrb[0].mxu0
      %2875 = vmatprep.mubr.f32.mxu0 0.0
      %2876 = vmatmul.mubr.f32.gmra.mrb[0].mxu0 %v2696
      %v2877 = vpop.f32.mrb[0].mxu0
      %v2878 = vadd.f32 0.0, %v2877
      %v2879 = vpop.f32.mrb[0].mxu0
      %2880 = vmatprep.mubr.f32.mxu0 0.0
      %2881 = vmatmul.mubr.f32.gmra.mrb[0].mxu0 %v2699
      %v2882 = vpop.f32.mrb[0].mxu0
      %v2883 = vadd.f32 0.0, %v2882
      %v2884 = vpop.f32.mrb[0].mxu0
      %2885 = vmatprep.mubr.f32.mxu0 0.0
      %2886 = vmatmul.mubr.f32.gmra.mrb[0].mxu0 %v2702
      %v2887 = vpop.f32.mrb[0].mxu0
      %v2888 = vadd.f32 0.0, %v2887
      %v2889 = vpop.f32.mrb[0].mxu0
      %2890 = vmatprep.mubr.f32.mxu0 0.0
      %2891 = vmatmul.mubr.f32.gmra.mrb[0].mxu0 %v2705
      %v2892 = vpop.f32.mrb[0].mxu0
      %v2893 = vadd.f32 0.0, %v2892
      %v2894 = vpop.f32.mrb[0].mxu0
      %2895 = vmatprep.mubr.f32.mxu0 0.0
      %2896 = vmatmul.mubr.f32.gmra.mrb[0].mxu0 %v2708
      %v2897 = vpop.f32.mrb[0].mxu0
      %v2898 = vadd.f32 0.0, %v2897
      %v2899 = vpop.f32.mrb[0].mxu0
      %2900 = vmatprep.mubr.f32.mxu0 0.0
      %2901 = vmatmul.mubr.f32.gmra.mrb[0].mxu0 %v2711
      %v2902 = vpop.f32.mrb[0].mxu0
      %v2903 = vadd.f32 0.0, %v2902
      %v2904 = vpop.f32.mrb[0].mxu0
      %2905 = vmatprep.mubr.f32.mxu0 0.0
      %2906 = vmatmul.mubr.f32.gmra.mrb[0].mxu0 %v2714
      %v2907 = vpop.f32.mrb[0].mxu0
      %v2908 = vadd.f32 0.0, %v2907
      %v2909 = vpop.f32.mrb[0].mxu0
      %2910 = vmatprep.mubr.f32.mxu0 0.0
      %2911 = vmatmul.mubr.f32.gmra.mrb[0].mxu0 %v2717
      %v2912 = vpop.f32.mrb[0].mxu0
      %v2913 = vadd.f32 0.0, %v2912
      %v2914 = vpop.f32.mrb[0].mxu0
      %2915 = vmatprep.mubr.f32.mxu0 0.0
      %2916 = vmatmul.mubr.f32.gmra.mrb[0].mxu0 %v2720
      %v2917 = vpop.f32.mrb[0].mxu0
      %v2918 = vadd.f32 0.0, %v2917
      %v2919 = vpop.f32.mrb[0].mxu0
      %2920 = vmatprep.mubr.f32.mxu0 0.0
      %2921 = vmatmul.mubr.f32.gmra.mrb[0].mxu0 %v2723
      %v2922 = vpop.f32.mrb[0].mxu0
      %v2923 = vadd.f32 0.0, %v2922
      %v2924 = vpop.f32.mrb[0].mxu0
      %2925 = vmatprep.mubr.f32.mxu0 0.0
      %2926 = vmatmul.mubr.f32.gmra.mrb[0].mxu0 %v2726
      %v2927 = vpop.f32.mrb[0].mxu0
      %v2928 = vadd.f32 0.0, %v2927
      %v2929 = vpop.f32.mrb[0].mxu0
      %2930 = vmatprep.mubr.f32.mxu0 0.0
      %2931 = vmatmul.mubr.f32.gmra.mrb[0].mxu0 %v2729
      %v2932 = vpop.f32.mrb[0].mxu0
      %v2933 = vadd.f32 0.0, %v2932
      %v2934 = vpop.f32.mrb[0].mxu0
      %2935 = vmatprep.mubr.f32.mxu0 0.0
      %2936 = vmatmul.mubr.f32.gmra.mrb[0].mxu0 %v2732
      %v2937 = vpop.f32.mrb[0].mxu0
      %v2938 = vadd.f32 0.0, %v2937
      %v2939 = vpop.f32.mrb[0].mxu0
      %2940 = vmatprep.mubr.f32.mxu0 0.0
      %2941 = vmatmul.mubr.f32.gmra.mrb[0].mxu0 %v2735
      %v2942 = vpop.f32.mrb[0].mxu0
      %v2943 = vadd.f32 0.0, %v2942
      %v2944 = vpop.f32.mrb[0].mxu0
      %2945 = vmatprep.mubr.f32.mxu0 0.0
      %2946 = vmatmul.mubr.f32.gmra.mrb[0].mxu0 %v2738
      %v2947 = vpop.f32.mrb[0].mxu0
      %v2948 = vadd.f32 0.0, %v2947
      %v2949 = vpop.f32.mrb[0].mxu0
      %2950 = vmatprep.mubr.f32.mxu0 0.0
      %2951 = vmatmul.mubr.f32.gmra.mrb[0].mxu0 %v2741
      %v2952 = vpop.f32.mrb[0].mxu0
      %v2953 = vadd.f32 0.0, %v2952
      %v2954 = vpop.f32.mrb[0].mxu0
      %2955 = vmatprep.mubr.f32.mxu0 0.0
      %2956 = vmatmul.mubr.f32.gmra.mrb[0].mxu0 %v2744
      %v2957 = vpop.f32.mrb[0].mxu0
      %v2958 = vadd.f32 0.0, %v2957
      %v2959 = vpop.f32.mrb[0].mxu0
      %2960 = vmatprep.mubr.f32.mxu0 0.0
      %2961 = vmatmul.mubr.f32.gmra.mrb[0].mxu0 %v2747
      %v2962 = vpop.f32.mrb[0].mxu0
      %v2963 = vadd.f32 0.0, %v2962
      %v2964 = vpop.f32.mrb[0].mxu0
      %2965 = vmatprep.mubr.f32.mxu0 0.0
      %2966 = vmatmul.mubr.f32.gmra.mrb[0].mxu0 %v2750
      %v2967 = vpop.f32.mrb[0].mxu0
      %v2968 = vadd.f32 0.0, %v2967
      %v2969 = vpop.f32.mrb[0].mxu0
      %2970 = vmatprep.mubr.f32.mxu0 0.0
      %2971 = vmatmul.mubr.f32.gmra.mrb[0].mxu0 %v2753
      %v2972 = vpop.f32.mrb[0].mxu0
      %v2973 = vadd.f32 0.0, %v2972
      %v2974 = vpop.f32.mrb[0].mxu0
      %2975 = vmatprep.mubr.f32.mxu0 0.0
      %2976 = vmatmul.mubr.f32.gmra.mrb[0].mxu0 %v2756
      %v2977 = vpop.f32.mrb[0].mxu0
      %v2978 = vadd.f32 0.0, %v2977
      %v2979 = vpop.f32.mrb[0].mxu0
      %2980 = vmatprep.mubr.f32.mxu0 0.0
      %2981 = vmatmul.mubr.f32.gmra.mrb[0].mxu0 %v2759
      %v2982 = vpop.f32.mrb[0].mxu0
      %v2983 = vadd.f32 0.0, %v2982
      %v2984 = vpop.f32.mrb[0].mxu0
      %2985 = vmatprep.mubr.f32.mxu0 0.0
      %2986 = vmatmul.mubr.f32.gmra.mrb[0].mxu0 %v2762
      %v2987 = vpop.f32.mrb[0].mxu0
      %v2988 = vadd.f32 0.0, %v2987
      %v2989 = vpop.f32.mrb[0].mxu0
      %2990 = vdwg.mxu0
      %v2991 = vld [vmem:[#allocation3] sm:$0xff]
      %v2992 = vld [vmem:[#allocation3 + $0x8] sm:$0xff]
      %v2993 = vld [vmem:[#allocation3 + $0x10] sm:$0xff]
      %v2994 = vld [vmem:[#allocation3 + $0x18] sm:$0xff]
      %v2995 = vld [vmem:[#allocation3 + $0x20] sm:$0xff]
      %v2996 = vld [vmem:[#allocation3 + $0x28] sm:$0xff]
      %v2997 = vld [vmem:[#allocation3 + $0x30] sm:$0xff]
      %v2998 = vld [vmem:[#allocation3 + $0x38] sm:$0xff]
      %v2999 = vld [vmem:[#allocation3 + $0x40] sm:$0xff]
      %v3000 = vld [vmem:[#allocation3 + $0x48] sm:$0xff]
      %v3001 = vld [vmem:[#allocation3 + $0x50] sm:$0xff]
      %v3002 = vld [vmem:[#allocation3 + $0x58] sm:$0xff]
      %v3003 = vld [vmem:[#allocation3 + $0x60] sm:$0xff]
      %v3004 = vld [vmem:[#allocation3 + $0x68] sm:$0xff]
      %v3005 = vld [vmem:[#allocation3 + $0x70] sm:$0xff]
      %v3006 = vld [vmem:[#allocation3 + $0x78] sm:$0xff]
      %v3007 = vld [vmem:[#allocation3 + $0x80] sm:$0xff]
      %v3008 = vld [vmem:[#allocation3 + $0x88] sm:$0xff]
      %v3009 = vld [vmem:[#allocation3 + $0x90] sm:$0xff]
      %v3010 = vld [vmem:[#allocation3 + $0x98] sm:$0xff]
      %v3011 = vld [vmem:[#allocation3 + $0xa0] sm:$0xff]
      %v3012 = vld [vmem:[#allocation3 + $0xa8] sm:$0xff]
      %v3013 = vld [vmem:[#allocation3 + $0xb0] sm:$0xff]
      %v3014 = vld [vmem:[#allocation3 + $0xb8] sm:$0xff]
      %v3015 = vld [vmem:[#allocation3 + $0xc0] sm:$0xff]
      %v3016 = vld [vmem:[#allocation3 + $0xc8] sm:$0xff]
      %v3017 = vld [vmem:[#allocation3 + $0xd0] sm:$0xff]
      %v3018 = vld [vmem:[#allocation3 + $0xd8] sm:$0xff]
      %v3019 = vld [vmem:[#allocation3 + $0xe0] sm:$0xff]
      %v3020 = vld [vmem:[#allocation3 + $0xe8] sm:$0xff]
      %v3021 = vld [vmem:[#allocation3 + $0xf0] sm:$0xff]
      %v3022 = vld [vmem:[#allocation3 + $0xf8] sm:$0xff]
      %v3023 = vadd.f32 %v2991, %v2833
      %v3024 = vadd.f32 %v2992, %v2838
      %v3025 = vadd.f32 %v2993, %v2843
      %v3026 = vadd.f32 %v2994, %v2848
      %v3027 = vadd.f32 %v2995, %v2853
      %v3028 = vadd.f32 %v2996, %v2858
      %v3029 = vadd.f32 %v2997, %v2863
      %v3030 = vadd.f32 %v2998, %v2868
      %v3031 = vadd.f32 %v2999, %v2873
      %v3032 = vadd.f32 %v3000, %v2878
      %v3033 = vadd.f32 %v3001, %v2883
      %v3034 = vadd.f32 %v3002, %v2888
      %v3035 = vadd.f32 %v3003, %v2893
      %v3036 = vadd.f32 %v3004, %v2898
      %v3037 = vadd.f32 %v3005, %v2903
      %v3038 = vadd.f32 %v3006, %v2908
      %v3039 = vadd.f32 %v3007, %v2913
      %v3040 = vadd.f32 %v3008, %v2918
      %v3041 = vadd.f32 %v3009, %v2923
      %v3042 = vadd.f32 %v3010, %v2928
      %v3043 = vadd.f32 %v3011, %v2933
      %v3044 = vadd.f32 %v3012, %v2938
      %v3045 = vadd.f32 %v3013, %v2943
      %v3046 = vadd.f32 %v3014, %v2948
      %v3047 = vadd.f32 %v3015, %v2953
      %v3048 = vadd.f32 %v3016, %v2958
      %v3049 = vadd.f32 %v3017, %v2963
      %v3050 = vadd.f32 %v3018, %v2968
      %v3051 = vadd.f32 %v3019, %v2973
      %v3052 = vadd.f32 %v3020, %v2978
      %v3053 = vadd.f32 %v3021, %v2983
      %v3054 = vadd.f32 %v3022, %v2988
      %3055 = vst.msk [vmem:[#allocation3] sm:$0xff] %vm463, %v3023
      %3056 = vst.msk [vmem:[#allocation3 + $0x8] sm:$0xff] %vm463, %v3024
      %3057 = vst.msk [vmem:[#allocation3 + $0x10] sm:$0xff] %vm463, %v3025
      %3058 = vst.msk [vmem:[#allocation3 + $0x18] sm:$0xff] %vm463, %v3026
      %3059 = vst.msk [vmem:[#allocation3 + $0x20] sm:$0xff] %vm463, %v3027
      %3060 = vst.msk [vmem:[#allocation3 + $0x28] sm:$0xff] %vm463, %v3028
      %3061 = vst.msk [vmem:[#allocation3 + $0x30] sm:$0xff] %vm463, %v3029
      %3062 = vst.msk [vmem:[#allocation3 + $0x38] sm:$0xff] %vm463, %v3030
      %3063 = vst.msk [vmem:[#allocation3 + $0x40] sm:$0xff] %vm463, %v3031
      %3064 = vst.msk [vmem:[#allocation3 + $0x48] sm:$0xff] %vm463, %v3032
      %3065 = vst.msk [vmem:[#allocation3 + $0x50] sm:$0xff] %vm463, %v3033
      %3066 = vst.msk [vmem:[#allocation3 + $0x58] sm:$0xff] %vm463, %v3034
      %3067 = vst.msk [vmem:[#allocation3 + $0x60] sm:$0xff] %vm463, %v3035
      %3068 = vst.msk [vmem:[#allocation3 + $0x68] sm:$0xff] %vm463, %v3036
      %3069 = vst.msk [vmem:[#allocation3 + $0x70] sm:$0xff] %vm463, %v3037
      %3070 = vst.msk [vmem:[#allocation3 + $0x78] sm:$0xff] %vm463, %v3038
      %3071 = vst.msk [vmem:[#allocation3 + $0x80] sm:$0xff] %vm463, %v3039
      %3072 = vst.msk [vmem:[#allocation3 + $0x88] sm:$0xff] %vm463, %v3040
      %3073 = vst.msk [vmem:[#allocation3 + $0x90] sm:$0xff] %vm463, %v3041
      %3074 = vst.msk [vmem:[#allocation3 + $0x98] sm:$0xff] %vm463, %v3042
      %3075 = vst.msk [vmem:[#allocation3 + $0xa0] sm:$0xff] %vm463, %v3043
      %3076 = vst.msk [vmem:[#allocation3 + $0xa8] sm:$0xff] %vm463, %v3044
      %3077 = vst.msk [vmem:[#allocation3 + $0xb0] sm:$0xff] %vm463, %v3045
      %3078 = vst.msk [vmem:[#allocation3 + $0xb8] sm:$0xff] %vm463, %v3046
      %3079 = vst.msk [vmem:[#allocation3 + $0xc0] sm:$0xff] %vm463, %v3047
      %3080 = vst.msk [vmem:[#allocation3 + $0xc8] sm:$0xff] %vm463, %v3048
      %3081 = vst.msk [vmem:[#allocation3 + $0xd0] sm:$0xff] %vm463, %v3049
      %3082 = vst.msk [vmem:[#allocation3 + $0xd8] sm:$0xff] %vm463, %v3050
      %3083 = vst.msk [vmem:[#allocation3 + $0xe0] sm:$0xff] %vm463, %v3051
      %3084 = vst.msk [vmem:[#allocation3 + $0xe8] sm:$0xff] %vm463, %v3052
      %3085 = vst.msk [vmem:[#allocation3 + $0xf0] sm:$0xff] %vm463, %v3053
      %3086 = vst.msk [vmem:[#allocation3 + $0xf8] sm:$0xff] %vm463, %v3054
      %v3087 = vld [vmem:[#allocation4] sm:$0xff]
      %v3088 = vld [vmem:[#allocation4 + $0x8] sm:$0xff]
      %v3089 = vld [vmem:[#allocation4 + $0x10] sm:$0xff]
      %v3090 = vld [vmem:[#allocation4 + $0x18] sm:$0xff]
      %v3091 = vld [vmem:[#allocation4 + $0x20] sm:$0xff]
      %v3092 = vld [vmem:[#allocation4 + $0x28] sm:$0xff]
      %v3093 = vld [vmem:[#allocation4 + $0x30] sm:$0xff]
      %v3094 = vld [vmem:[#allocation4 + $0x38] sm:$0xff]
      %v3095 = vld [vmem:[#allocation4 + $0x40] sm:$0xff]
      %v3096 = vld [vmem:[#allocation4 + $0x48] sm:$0xff]
      %v3097 = vld [vmem:[#allocation4 + $0x50] sm:$0xff]
      %v3098 = vld [vmem:[#allocation4 + $0x58] sm:$0xff]
      %v3099 = vld [vmem:[#allocation4 + $0x60] sm:$0xff]
      %v3100 = vld [vmem:[#allocation4 + $0x68] sm:$0xff]
      %v3101 = vld [vmem:[#allocation4 + $0x70] sm:$0xff]
      %v3102 = vld [vmem:[#allocation4 + $0x78] sm:$0xff]
      %v3103 = vld [vmem:[#allocation4 + $0x80] sm:$0xff]
      %v3104 = vld [vmem:[#allocation4 + $0x88] sm:$0xff]
      %v3105 = vld [vmem:[#allocation4 + $0x90] sm:$0xff]
      %v3106 = vld [vmem:[#allocation4 + $0x98] sm:$0xff]
      %v3107 = vld [vmem:[#allocation4 + $0xa0] sm:$0xff]
      %v3108 = vld [vmem:[#allocation4 + $0xa8] sm:$0xff]
      %v3109 = vld [vmem:[#allocation4 + $0xb0] sm:$0xff]
      %v3110 = vld [vmem:[#allocation4 + $0xb8] sm:$0xff]
      %v3111 = vld [vmem:[#allocation4 + $0xc0] sm:$0xff]
      %v3112 = vld [vmem:[#allocation4 + $0xc8] sm:$0xff]
      %v3113 = vld [vmem:[#allocation4 + $0xd0] sm:$0xff]
      %v3114 = vld [vmem:[#allocation4 + $0xd8] sm:$0xff]
      %v3115 = vld [vmem:[#allocation4 + $0xe0] sm:$0xff]
      %v3116 = vld [vmem:[#allocation4 + $0xe8] sm:$0xff]
      %v3117 = vld [vmem:[#allocation4 + $0xf0] sm:$0xff]
      %v3118 = vld [vmem:[#allocation4 + $0xf8] sm:$0xff]
      %3151 = vrot.lane.b32.xlu0 %v2833, 124
      %v3152 = vpop.permute.xlu0 %3151
      %3153 = vrot.lane.b32.xlu0 %v2838, 124
      %v3154 = vpop.permute.xlu0 %3153
      %3155 = vrot.lane.b32.xlu0 %v2843, 124
      %v3156 = vpop.permute.xlu0 %3155
      %3157 = vrot.lane.b32.xlu0 %v2848, 124
      %v3158 = vpop.permute.xlu0 %3157
      %3159 = vrot.lane.b32.xlu0 %v2853, 124
      %v3160 = vpop.permute.xlu0 %3159
      %3161 = vrot.lane.b32.xlu0 %v2858, 124
      %v3162 = vpop.permute.xlu0 %3161
      %3163 = vrot.lane.b32.xlu0 %v2863, 124
      %v3164 = vpop.permute.xlu0 %3163
      %3165 = vrot.lane.b32.xlu0 %v2868, 124
      %v3166 = vpop.permute.xlu0 %3165
      %3167 = vrot.lane.b32.xlu0 %v2873, 124
      %v3168 = vpop.permute.xlu0 %3167
      %3169 = vrot.lane.b32.xlu0 %v2878, 124
      %v3170 = vpop.permute.xlu0 %3169
      %3171 = vrot.lane.b32.xlu0 %v2883, 124
      %v3172 = vpop.permute.xlu0 %3171
      %3173 = vrot.lane.b32.xlu0 %v2888, 124
      %v3174 = vpop.permute.xlu0 %3173
      %3175 = vrot.lane.b32.xlu0 %v2893, 124
      %v3176 = vpop.permute.xlu0 %3175
      %3177 = vrot.lane.b32.xlu0 %v2898, 124
      %v3178 = vpop.permute.xlu0 %3177
      %3179 = vrot.lane.b32.xlu0 %v2903, 124
      %v3180 = vpop.permute.xlu0 %3179
      %3181 = vrot.lane.b32.xlu0 %v2908, 124
      %v3182 = vpop.permute.xlu0 %3181
      %3183 = vrot.lane.b32.xlu0 %v2913, 124
      %v3184 = vpop.permute.xlu0 %3183
      %3185 = vrot.lane.b32.xlu0 %v2918, 124
      %v3186 = vpop.permute.xlu0 %3185
      %3187 = vrot.lane.b32.xlu0 %v2923, 124
      %v3188 = vpop.permute.xlu0 %3187
      %3189 = vrot.lane.b32.xlu0 %v2928, 124
      %v3190 = vpop.permute.xlu0 %3189
      %3191 = vrot.lane.b32.xlu0 %v2933, 124
      %v3192 = vpop.permute.xlu0 %3191
      %3193 = vrot.lane.b32.xlu0 %v2938, 124
      %v3194 = vpop.permute.xlu0 %3193
      %3195 = vrot.lane.b32.xlu0 %v2943, 124
      %v3196 = vpop.permute.xlu0 %3195
      %3197 = vrot.lane.b32.xlu0 %v2948, 124
      %v3198 = vpop.permute.xlu0 %3197
      %3199 = vrot.lane.b32.xlu0 %v2953, 124
      %v3200 = vpop.permute.xlu0 %3199
      %3201 = vrot.lane.b32.xlu0 %v2958, 124
      %v3202 = vpop.permute.xlu0 %3201
      %3203 = vrot.lane.b32.xlu0 %v2963, 124
      %v3204 = vpop.permute.xlu0 %3203
      %3205 = vrot.lane.b32.xlu0 %v2968, 124
      %v3206 = vpop.permute.xlu0 %3205
      %3207 = vrot.lane.b32.xlu0 %v2973, 124
      %v3208 = vpop.permute.xlu0 %3207
      %3209 = vrot.lane.b32.xlu0 %v2978, 124
      %v3210 = vpop.permute.xlu0 %3209
      %3211 = vrot.lane.b32.xlu0 %v2983, 124
      %v3212 = vpop.permute.xlu0 %3211
      %3213 = vrot.lane.b32.xlu0 %v2988, 124
      %v3214 = vpop.permute.xlu0 %3213
      %v3247 = vadd.f32 %v3087, %v3152
      %v3248 = vadd.f32 %v3088, %v3154
      %v3249 = vadd.f32 %v3089, %v3156
      %v3250 = vadd.f32 %v3090, %v3158
      %v3251 = vadd.f32 %v3091, %v3160
      %v3252 = vadd.f32 %v3092, %v3162
      %v3253 = vadd.f32 %v3093, %v3164
      %v3254 = vadd.f32 %v3094, %v3166
      %v3255 = vadd.f32 %v3095, %v3168
      %v3256 = vadd.f32 %v3096, %v3170
      %v3257 = vadd.f32 %v3097, %v3172
      %v3258 = vadd.f32 %v3098, %v3174
      %v3259 = vadd.f32 %v3099, %v3176
      %v3260 = vadd.f32 %v3100, %v3178
      %v3261 = vadd.f32 %v3101, %v3180
      %v3262 = vadd.f32 %v3102, %v3182
      %v3263 = vadd.f32 %v3103, %v3184
      %v3264 = vadd.f32 %v3104, %v3186
      %v3265 = vadd.f32 %v3105, %v3188
      %v3266 = vadd.f32 %v3106, %v3190
      %v3267 = vadd.f32 %v3107, %v3192
      %v3268 = vadd.f32 %v3108, %v3194
      %v3269 = vadd.f32 %v3109, %v3196
      %v3270 = vadd.f32 %v3110, %v3198
      %v3271 = vadd.f32 %v3111, %v3200
      %v3272 = vadd.f32 %v3112, %v3202
      %v3273 = vadd.f32 %v3113, %v3204
      %v3274 = vadd.f32 %v3114, %v3206
      %v3275 = vadd.f32 %v3115, %v3208
      %v3276 = vadd.f32 %v3116, %v3210
      %v3277 = vadd.f32 %v3117, %v3212
      %v3278 = vadd.f32 %v3118, %v3214
      %3279 = vst.msk [vmem:[#allocation4] sm:$0xff] %vm463, %v3247
      %3280 = vst.msk [vmem:[#allocation4 + $0x8] sm:$0xff] %vm463, %v3248
      %3281 = vst.msk [vmem:[#allocation4 + $0x10] sm:$0xff] %vm463, %v3249
      %3282 = vst.msk [vmem:[#allocation4 + $0x18] sm:$0xff] %vm463, %v3250
      %3283 = vst.msk [vmem:[#allocation4 + $0x20] sm:$0xff] %vm463, %v3251
      %3284 = vst.msk [vmem:[#allocation4 + $0x28] sm:$0xff] %vm463, %v3252
      %3285 = vst.msk [vmem:[#allocation4 + $0x30] sm:$0xff] %vm463, %v3253
      %3286 = vst.msk [vmem:[#allocation4 + $0x38] sm:$0xff] %vm463, %v3254
      %3287 = vst.msk [vmem:[#allocation4 + $0x40] sm:$0xff] %vm463, %v3255
      %3288 = vst.msk [vmem:[#allocation4 + $0x48] sm:$0xff] %vm463, %v3256
      %3289 = vst.msk [vmem:[#allocation4 + $0x50] sm:$0xff] %vm463, %v3257
      %3290 = vst.msk [vmem:[#allocation4 + $0x58] sm:$0xff] %vm463, %v3258
      %3291 = vst.msk [vmem:[#allocation4 + $0x60] sm:$0xff] %vm463, %v3259
      %3292 = vst.msk [vmem:[#allocation4 + $0x68] sm:$0xff] %vm463, %v3260
      %3293 = vst.msk [vmem:[#allocation4 + $0x70] sm:$0xff] %vm463, %v3261
      %3294 = vst.msk [vmem:[#allocation4 + $0x78] sm:$0xff] %vm463, %v3262
      %3295 = vst.msk [vmem:[#allocation4 + $0x80] sm:$0xff] %vm463, %v3263
      %3296 = vst.msk [vmem:[#allocation4 + $0x88] sm:$0xff] %vm463, %v3264
      %3297 = vst.msk [vmem:[#allocation4 + $0x90] sm:$0xff] %vm463, %v3265
      %3298 = vst.msk [vmem:[#allocation4 + $0x98] sm:$0xff] %vm463, %v3266
      %3299 = vst.msk [vmem:[#allocation4 + $0xa0] sm:$0xff] %vm463, %v3267
      %3300 = vst.msk [vmem:[#allocation4 + $0xa8] sm:$0xff] %vm463, %v3268
      %3301 = vst.msk [vmem:[#allocation4 + $0xb0] sm:$0xff] %vm463, %v3269
      %3302 = vst.msk [vmem:[#allocation4 + $0xb8] sm:$0xff] %vm463, %v3270
      %3303 = vst.msk [vmem:[#allocation4 + $0xc0] sm:$0xff] %vm463, %v3271
      %3304 = vst.msk [vmem:[#allocation4 + $0xc8] sm:$0xff] %vm463, %v3272
      %3305 = vst.msk [vmem:[#allocation4 + $0xd0] sm:$0xff] %vm463, %v3273
      %3306 = vst.msk [vmem:[#allocation4 + $0xd8] sm:$0xff] %vm463, %v3274
      %3307 = vst.msk [vmem:[#allocation4 + $0xe0] sm:$0xff] %vm463, %v3275
      %3308 = vst.msk [vmem:[#allocation4 + $0xe8] sm:$0xff] %vm463, %v3276
      %3309 = vst.msk [vmem:[#allocation4 + $0xf0] sm:$0xff] %vm463, %v3277
      %3310 = vst.msk [vmem:[#allocation4 + $0xf8] sm:$0xff] %vm463, %v3278
      %v3311 = vld [vmem:[%s462 + $0x2] sm:$0xff]
      %v3312 = vld [vmem:[%s462 + $0xa] sm:$0xff]
      %v3313 = vld [vmem:[%s462 + $0x1a] sm:$0xff]
      %v3314 = vld [vmem:[%s462 + $0x22] sm:$0xff]
      %v3315 = vld [vmem:[%s462 + $0x32] sm:$0xff]
      %v3316 = vld [vmem:[%s462 + $0x3a] sm:$0xff]
      %v3317 = vld [vmem:[%s462 + $0x4a] sm:$0xff]
      %v3318 = vld [vmem:[%s462 + $0x52] sm:$0xff]
      %v3319 = vld [vmem:[%s462 + $0x62] sm:$0xff]
      %v3320 = vld [vmem:[%s462 + $0x6a] sm:$0xff]
      %v3321 = vld [vmem:[%s462 + $0x7a] sm:$0xff]
      %v3322 = vld [vmem:[%s462 + $0x82] sm:$0xff]
      %v3323 = vld [vmem:[%s462 + $0x92] sm:$0xff]
      %v3324 = vld [vmem:[%s462 + $0x9a] sm:$0xff]
      %v3325 = vld [vmem:[%s462 + $0xaa] sm:$0xff]
      %v3326 = vld [vmem:[%s462 + $0xb2] sm:$0xff]
      %v3327 = vld [vmem:[%s462 + $0xc2] sm:$0xff]
      %v3328 = vld [vmem:[%s462 + $0xca] sm:$0xff]
      %v3329 = vld [vmem:[%s462 + $0xda] sm:$0xff]
      %v3330 = vld [vmem:[%s462 + $0xe2] sm:$0xff]
      %v3331 = vld [vmem:[%s462 + $0xf2] sm:$0xff]
      %v3332 = vld [vmem:[%s462 + $0xfa] sm:$0xff]
      %v3333 = vld [vmem:[%s462 + $0x10a] sm:$0xff]
      %v3334 = vld [vmem:[%s462 + $0x112] sm:$0xff]
      %v3335 = vld [vmem:[%s462 + $0x122] sm:$0xff]
      %v3336 = vld [vmem:[%s462 + $0x12a] sm:$0xff]
      %v3337 = vld [vmem:[%s462 + $0x13a] sm:$0xff]
      %v3338 = vld [vmem:[%s462 + $0x142] sm:$0xff]
      %v3339 = vld [vmem:[%s462 + $0x152] sm:$0xff]
      %v3340 = vld [vmem:[%s462 + $0x15a] sm:$0xff]
      %v3341 = vld [vmem:[%s462 + $0x16a] sm:$0xff]
      %v3342 = vld [vmem:[%s462 + $0x172] sm:$0xff]
      %v3343 = vld [vmem:[%s3] sm:$0xf]
      %3345 = vrot.lane.b32.xlu0 %v3343, 88
      %v3346 = vpop.permute.xlu0 %3345
      %v3348 = vsel %vm463, %v3311, 0
      %v3351 = vsel %vm463, %v3312, 0
      %v3354 = vsel %vm463, %v3313, 0
      %v3357 = vsel %vm463, %v3314, 0
      %v3360 = vsel %vm463, %v3315, 0
      %v3363 = vsel %vm463, %v3316, 0
      %v3366 = vsel %vm463, %v3317, 0
      %v3369 = vsel %vm463, %v3318, 0
      %v3372 = vsel %vm463, %v3319, 0
      %v3375 = vsel %vm463, %v3320, 0
      %v3378 = vsel %vm463, %v3321, 0
      %v3381 = vsel %vm463, %v3322, 0
      %v3384 = vsel %vm463, %v3323, 0
      %v3387 = vsel %vm463, %v3324, 0
      %v3390 = vsel %vm463, %v3325, 0
      %v3393 = vsel %vm463, %v3326, 0
      %v3396 = vsel %vm463, %v3327, 0
      %v3399 = vsel %vm463, %v3328, 0
      %v3402 = vsel %vm463, %v3329, 0
      %v3405 = vsel %vm463, %v3330, 0
      %v3408 = vsel %vm463, %v3331, 0
      %v3411 = vsel %vm463, %v3332, 0
      %v3414 = vsel %vm463, %v3333, 0
      %v3417 = vsel %vm463, %v3334, 0
      %v3420 = vsel %vm463, %v3335, 0
      %v3423 = vsel %vm463, %v3336, 0
      %v3426 = vsel %vm463, %v3337, 0
      %v3429 = vsel %vm463, %v3338, 0
      %v3432 = vsel %vm463, %v3339, 0
      %v3435 = vsel %vm463, %v3340, 0
      %v3438 = vsel %vm463, %v3341, 0
      %v3441 = vsel %vm463, %v3342, 0
      %v3443 = vsel %vm646, %v3346, 0
      %3445 = vmatprep.subr.mxu0 0.0
      %3446 = vmatpush1.msra.mxu0 %v3443
      %3447 = vmatprep.subr.mxu0 0.0
      %3448 = vmatpush1.msra.mxu0 0.0
      %3449 = vmatprep.subr.mxu0 0.0
      %3450 = vmatpush1.msra.mxu0 0.0
      %3451 = vmatprep.subr.mxu0 0.0
      %3452 = vmatpush1.msra.mxu0 0.0
      %3453 = vmatprep.subr.mxu0 0.0
      %3454 = vmatpush1.msra.mxu0 0.0
      %3455 = vmatprep.subr.mxu0 0.0
      %3456 = vmatpush1.msra.mxu0 0.0
      %3457 = vmatprep.subr.mxu0 0.0
      %3458 = vmatpush1.msra.mxu0 0.0
      %3459 = vmatprep.subr.mxu0 0.0
      %3460 = vmatpush1.msra.mxu0 0.0
      %3461 = vmatprep.subr.mxu0 0.0
      %3462 = vmatpush1.msra.mxu0 0.0
      %3463 = vmatprep.subr.mxu0 0.0
      %3464 = vmatpush1.msra.mxu0 0.0
      %3465 = vmatprep.subr.mxu0 0.0
      %3466 = vmatpush1.msra.mxu0 0.0
      %3467 = vmatprep.subr.mxu0 0.0
      %3468 = vmatpush1.msra.mxu0 0.0
      %3469 = vmatprep.subr.mxu0 0.0
      %3470 = vmatpush1.msra.mxu0 0.0
      %3471 = vmatprep.subr.mxu0 0.0
      %3472 = vmatpush1.msra.mxu0 0.0
      %3473 = vmatprep.subr.mxu0 0.0
      %3474 = vmatpush1.msra.mxu0 0.0
      %3475 = vmatprep.subr.mxu0 0.0
      %3476 = vmatpush1.msra.mxu0 0.0
      %3477 = vmatprep.subr.mxu0 0.0
      %3478 = vmatpush1.msra.mxu0 0.0
      %3479 = vmatprep.subr.mxu0 0.0
      %3480 = vmatpush1.msra.mxu0 0.0
      %3481 = vmatprep.subr.mxu0 0.0
      %3482 = vmatpush1.msra.mxu0 0.0
      %3483 = vmatprep.subr.mxu0 0.0
      %3484 = vmatpush1.msra.mxu0 0.0
      %3485 = vmatprep.subr.mxu0 0.0
      %3486 = vmatpush1.msra.mxu0 0.0
      %3487 = vmatprep.subr.mxu0 0.0
      %3488 = vmatpush1.msra.mxu0 0.0
      %3489 = vmatprep.subr.mxu0 0.0
      %3490 = vmatpush1.msra.mxu0 0.0
      %3491 = vmatprep.subr.mxu0 0.0
      %3492 = vmatpush1.msra.mxu0 0.0
      %3493 = vmatprep.subr.mxu0 0.0
      %3494 = vmatpush1.msra.mxu0 0.0
      %3495 = vmatprep.subr.mxu0 0.0
      %3496 = vmatpush1.msra.mxu0 0.0
      %3497 = vmatprep.subr.mxu0 0.0
      %3498 = vmatpush1.msra.mxu0 0.0
      %3499 = vmatprep.subr.mxu0 0.0
      %3500 = vmatpush1.msra.mxu0 0.0
      %3501 = vmatprep.subr.mxu0 0.0
      %3502 = vmatpush1.msra.mxu0 0.0
      %3503 = vmatprep.subr.mxu0 0.0
      %3504 = vmatpush1.msra.mxu0 0.0
      %3505 = vmatprep.subr.mxu0 0.0
      %3506 = vmatpush1.msra.mxu0 0.0
      %3507 = vmatprep.subr.mxu0 0.0
      %3508 = vmatpush1.msra.mxu0 0.0
      %3509 = vmatprep.mubr.f32.mxu0 0.0
      %3510 = vmatmul.mubr.f32.gmra.mrb[0].mxu0 %v3348
      %v3511 = vpop.f32.mrb[0].mxu0
      %v3512 = vadd.f32 0.0, %v3511
      %v3513 = vpop.f32.mrb[0].mxu0
      %3514 = vmatprep.mubr.f32.mxu0 0.0
      %3515 = vmatmul.mubr.f32.gmra.mrb[0].mxu0 %v3351
      %v3516 = vpop.f32.mrb[0].mxu0
      %v3517 = vadd.f32 0.0, %v3516
      %v3518 = vpop.f32.mrb[0].mxu0
      %3519 = vmatprep.mubr.f32.mxu0 0.0
      %3520 = vmatmul.mubr.f32.gmra.mrb[0].mxu0 %v3354
      %v3521 = vpop.f32.mrb[0].mxu0
      %v3522 = vadd.f32 0.0, %v3521
      %v3523 = vpop.f32.mrb[0].mxu0
      %3524 = vmatprep.mubr.f32.mxu0 0.0
      %3525 = vmatmul.mubr.f32.gmra.mrb[0].mxu0 %v3357
      %v3526 = vpop.f32.mrb[0].mxu0
      %v3527 = vadd.f32 0.0, %v3526
      %v3528 = vpop.f32.mrb[0].mxu0
      %3529 = vmatprep.mubr.f32.mxu0 0.0
      %3530 = vmatmul.mubr.f32.gmra.mrb[0].mxu0 %v3360
      %v3531 = vpop.f32.mrb[0].mxu0
      %v3532 = vadd.f32 0.0, %v3531
      %v3533 = vpop.f32.mrb[0].mxu0
      %3534 = vmatprep.mubr.f32.mxu0 0.0
      %3535 = vmatmul.mubr.f32.gmra.mrb[0].mxu0 %v3363
      %v3536 = vpop.f32.mrb[0].mxu0
      %v3537 = vadd.f32 0.0, %v3536
      %v3538 = vpop.f32.mrb[0].mxu0
      %3539 = vmatprep.mubr.f32.mxu0 0.0
      %3540 = vmatmul.mubr.f32.gmra.mrb[0].mxu0 %v3366
      %v3541 = vpop.f32.mrb[0].mxu0
      %v3542 = vadd.f32 0.0, %v3541
      %v3543 = vpop.f32.mrb[0].mxu0
      %3544 = vmatprep.mubr.f32.mxu0 0.0
      %3545 = vmatmul.mubr.f32.gmra.mrb[0].mxu0 %v3369
      %v3546 = vpop.f32.mrb[0].mxu0
      %v3547 = vadd.f32 0.0, %v3546
      %v3548 = vpop.f32.mrb[0].mxu0
      %3549 = vmatprep.mubr.f32.mxu0 0.0
      %3550 = vmatmul.mubr.f32.gmra.mrb[0].mxu0 %v3372
      %v3551 = vpop.f32.mrb[0].mxu0
      %v3552 = vadd.f32 0.0, %v3551
      %v3553 = vpop.f32.mrb[0].mxu0
      %3554 = vmatprep.mubr.f32.mxu0 0.0
      %3555 = vmatmul.mubr.f32.gmra.mrb[0].mxu0 %v3375
      %v3556 = vpop.f32.mrb[0].mxu0
      %v3557 = vadd.f32 0.0, %v3556
      %v3558 = vpop.f32.mrb[0].mxu0
      %3559 = vmatprep.mubr.f32.mxu0 0.0
      %3560 = vmatmul.mubr.f32.gmra.mrb[0].mxu0 %v3378
      %v3561 = vpop.f32.mrb[0].mxu0
      %v3562 = vadd.f32 0.0, %v3561
      %v3563 = vpop.f32.mrb[0].mxu0
      %3564 = vmatprep.mubr.f32.mxu0 0.0
      %3565 = vmatmul.mubr.f32.gmra.mrb[0].mxu0 %v3381
      %v3566 = vpop.f32.mrb[0].mxu0
      %v3567 = vadd.f32 0.0, %v3566
      %v3568 = vpop.f32.mrb[0].mxu0
      %3569 = vmatprep.mubr.f32.mxu0 0.0
      %3570 = vmatmul.mubr.f32.gmra.mrb[0].mxu0 %v3384
      %v3571 = vpop.f32.mrb[0].mxu0
      %v3572 = vadd.f32 0.0, %v3571
      %v3573 = vpop.f32.mrb[0].mxu0
      %3574 = vmatprep.mubr.f32.mxu0 0.0
      %3575 = vmatmul.mubr.f32.gmra.mrb[0].mxu0 %v3387
      %v3576 = vpop.f32.mrb[0].mxu0
      %v3577 = vadd.f32 0.0, %v3576
      %v3578 = vpop.f32.mrb[0].mxu0
      %3579 = vmatprep.mubr.f32.mxu0 0.0
      %3580 = vmatmul.mubr.f32.gmra.mrb[0].mxu0 %v3390
      %v3581 = vpop.f32.mrb[0].mxu0
      %v3582 = vadd.f32 0.0, %v3581
      %v3583 = vpop.f32.mrb[0].mxu0
      %3584 = vmatprep.mubr.f32.mxu0 0.0
      %3585 = vmatmul.mubr.f32.gmra.mrb[0].mxu0 %v3393
      %v3586 = vpop.f32.mrb[0].mxu0
      %v3587 = vadd.f32 0.0, %v3586
      %v3588 = vpop.f32.mrb[0].mxu0
      %3589 = vmatprep.mubr.f32.mxu0 0.0
      %3590 = vmatmul.mubr.f32.gmra.mrb[0].mxu0 %v3396
      %v3591 = vpop.f32.mrb[0].mxu0
      %v3592 = vadd.f32 0.0, %v3591
      %v3593 = vpop.f32.mrb[0].mxu0
      %3594 = vmatprep.mubr.f32.mxu0 0.0
      %3595 = vmatmul.mubr.f32.gmra.mrb[0].mxu0 %v3399
      %v3596 = vpop.f32.mrb[0].mxu0
      %v3597 = vadd.f32 0.0, %v3596
      %v3598 = vpop.f32.mrb[0].mxu0
      %3599 = vmatprep.mubr.f32.mxu0 0.0
      %3600 = vmatmul.mubr.f32.gmra.mrb[0].mxu0 %v3402
      %v3601 = vpop.f32.mrb[0].mxu0
      %v3602 = vadd.f32 0.0, %v3601
      %v3603 = vpop.f32.mrb[0].mxu0
      %3604 = vmatprep.mubr.f32.mxu0 0.0
      %3605 = vmatmul.mubr.f32.gmra.mrb[0].mxu0 %v3405
      %v3606 = vpop.f32.mrb[0].mxu0
      %v3607 = vadd.f32 0.0, %v3606
      %v3608 = vpop.f32.mrb[0].mxu0
      %3609 = vmatprep.mubr.f32.mxu0 0.0
      %3610 = vmatmul.mubr.f32.gmra.mrb[0].mxu0 %v3408
      %v3611 = vpop.f32.mrb[0].mxu0
      %v3612 = vadd.f32 0.0, %v3611
      %v3613 = vpop.f32.mrb[0].mxu0
      %3614 = vmatprep.mubr.f32.mxu0 0.0
      %3615 = vmatmul.mubr.f32.gmra.mrb[0].mxu0 %v3411
      %v3616 = vpop.f32.mrb[0].mxu0
      %v3617 = vadd.f32 0.0, %v3616
      %v3618 = vpop.f32.mrb[0].mxu0
      %3619 = vmatprep.mubr.f32.mxu0 0.0
      %3620 = vmatmul.mubr.f32.gmra.mrb[0].mxu0 %v3414
      %v3621 = vpop.f32.mrb[0].mxu0
      %v3622 = vadd.f32 0.0, %v3621
      %v3623 = vpop.f32.mrb[0].mxu0
      %3624 = vmatprep.mubr.f32.mxu0 0.0
      %3625 = vmatmul.mubr.f32.gmra.mrb[0].mxu0 %v3417
      %v3626 = vpop.f32.mrb[0].mxu0
      %v3627 = vadd.f32 0.0, %v3626
      %v3628 = vpop.f32.mrb[0].mxu0
      %3629 = vmatprep.mubr.f32.mxu0 0.0
      %3630 = vmatmul.mubr.f32.gmra.mrb[0].mxu0 %v3420
      %v3631 = vpop.f32.mrb[0].mxu0
      %v3632 = vadd.f32 0.0, %v3631
      %v3633 = vpop.f32.mrb[0].mxu0
      %3634 = vmatprep.mubr.f32.mxu0 0.0
      %3635 = vmatmul.mubr.f32.gmra.mrb[0].mxu0 %v3423
      %v3636 = vpop.f32.mrb[0].mxu0
      %v3637 = vadd.f32 0.0, %v3636
      %v3638 = vpop.f32.mrb[0].mxu0
      %3639 = vmatprep.mubr.f32.mxu0 0.0
      %3640 = vmatmul.mubr.f32.gmra.mrb[0].mxu0 %v3426
      %v3641 = vpop.f32.mrb[0].mxu0
      %v3642 = vadd.f32 0.0, %v3641
      %v3643 = vpop.f32.mrb[0].mxu0
      %3644 = vmatprep.mubr.f32.mxu0 0.0
      %3645 = vmatmul.mubr.f32.gmra.mrb[0].mxu0 %v3429
      %v3646 = vpop.f32.mrb[0].mxu0
      %v3647 = vadd.f32 0.0, %v3646
      %v3648 = vpop.f32.mrb[0].mxu0
      %3649 = vmatprep.mubr.f32.mxu0 0.0
      %3650 = vmatmul.mubr.f32.gmra.mrb[0].mxu0 %v3432
      %v3651 = vpop.f32.mrb[0].mxu0
      %v3652 = vadd.f32 0.0, %v3651
      %v3653 = vpop.f32.mrb[0].mxu0
      %3654 = vmatprep.mubr.f32.mxu0 0.0
      %3655 = vmatmul.mubr.f32.gmra.mrb[0].mxu0 %v3435
      %v3656 = vpop.f32.mrb[0].mxu0
      %v3657 = vadd.f32 0.0, %v3656
      %v3658 = vpop.f32.mrb[0].mxu0
      %3659 = vmatprep.mubr.f32.mxu0 0.0
      %3660 = vmatmul.mubr.f32.gmra.mrb[0].mxu0 %v3438
      %v3661 = vpop.f32.mrb[0].mxu0
      %v3662 = vadd.f32 0.0, %v3661
      %v3663 = vpop.f32.mrb[0].mxu0
      %3664 = vmatprep.mubr.f32.mxu0 0.0
      %3665 = vmatmul.mubr.f32.gmra.mrb[0].mxu0 %v3441
      %v3666 = vpop.f32.mrb[0].mxu0
      %v3667 = vadd.f32 0.0, %v3666
      %v3668 = vpop.f32.mrb[0].mxu0
      %3669 = vdwg.mxu0
      %v3670 = vld [vmem:[#allocation3] sm:$0xff]
      %v3671 = vld [vmem:[#allocation3 + $0x8] sm:$0xff]
      %v3672 = vld [vmem:[#allocation3 + $0x10] sm:$0xff]
      %v3673 = vld [vmem:[#allocation3 + $0x18] sm:$0xff]
      %v3674 = vld [vmem:[#allocation3 + $0x20] sm:$0xff]
      %v3675 = vld [vmem:[#allocation3 + $0x28] sm:$0xff]
      %v3676 = vld [vmem:[#allocation3 + $0x30] sm:$0xff]
      %v3677 = vld [vmem:[#allocation3 + $0x38] sm:$0xff]
      %v3678 = vld [vmem:[#allocation3 + $0x40] sm:$0xff]
      %v3679 = vld [vmem:[#allocation3 + $0x48] sm:$0xff]
      %v3680 = vld [vmem:[#allocation3 + $0x50] sm:$0xff]
      %v3681 = vld [vmem:[#allocation3 + $0x58] sm:$0xff]
      %v3682 = vld [vmem:[#allocation3 + $0x60] sm:$0xff]
      %v3683 = vld [vmem:[#allocation3 + $0x68] sm:$0xff]
      %v3684 = vld [vmem:[#allocation3 + $0x70] sm:$0xff]
      %v3685 = vld [vmem:[#allocation3 + $0x78] sm:$0xff]
      %v3686 = vld [vmem:[#allocation3 + $0x80] sm:$0xff]
      %v3687 = vld [vmem:[#allocation3 + $0x88] sm:$0xff]
      %v3688 = vld [vmem:[#allocation3 + $0x90] sm:$0xff]
      %v3689 = vld [vmem:[#allocation3 + $0x98] sm:$0xff]
      %v3690 = vld [vmem:[#allocation3 + $0xa0] sm:$0xff]
      %v3691 = vld [vmem:[#allocation3 + $0xa8] sm:$0xff]
      %v3692 = vld [vmem:[#allocation3 + $0xb0] sm:$0xff]
      %v3693 = vld [vmem:[#allocation3 + $0xb8] sm:$0xff]
      %v3694 = vld [vmem:[#allocation3 + $0xc0] sm:$0xff]
      %v3695 = vld [vmem:[#allocation3 + $0xc8] sm:$0xff]
      %v3696 = vld [vmem:[#allocation3 + $0xd0] sm:$0xff]
      %v3697 = vld [vmem:[#allocation3 + $0xd8] sm:$0xff]
      %v3698 = vld [vmem:[#allocation3 + $0xe0] sm:$0xff]
      %v3699 = vld [vmem:[#allocation3 + $0xe8] sm:$0xff]
      %v3700 = vld [vmem:[#allocation3 + $0xf0] sm:$0xff]
      %v3701 = vld [vmem:[#allocation3 + $0xf8] sm:$0xff]
      %3734 = vrot.lane.b32.xlu0 %v3512, 4
      %v3735 = vpop.permute.xlu0 %3734
      %3736 = vrot.lane.b32.xlu0 %v3517, 4
      %v3737 = vpop.permute.xlu0 %3736
      %3738 = vrot.lane.b32.xlu0 %v3522, 4
      %v3739 = vpop.permute.xlu0 %3738
      %3740 = vrot.lane.b32.xlu0 %v3527, 4
      %v3741 = vpop.permute.xlu0 %3740
      %3742 = vrot.lane.b32.xlu0 %v3532, 4
      %v3743 = vpop.permute.xlu0 %3742
      %3744 = vrot.lane.b32.xlu0 %v3537, 4
      %v3745 = vpop.permute.xlu0 %3744
      %3746 = vrot.lane.b32.xlu0 %v3542, 4
      %v3747 = vpop.permute.xlu0 %3746
      %3748 = vrot.lane.b32.xlu0 %v3547, 4
      %v3749 = vpop.permute.xlu0 %3748
      %3750 = vrot.lane.b32.xlu0 %v3552, 4
      %v3751 = vpop.permute.xlu0 %3750
      %3752 = vrot.lane.b32.xlu0 %v3557, 4
      %v3753 = vpop.permute.xlu0 %3752
      %3754 = vrot.lane.b32.xlu0 %v3562, 4
      %v3755 = vpop.permute.xlu0 %3754
      %3756 = vrot.lane.b32.xlu0 %v3567, 4
      %v3757 = vpop.permute.xlu0 %3756
      %3758 = vrot.lane.b32.xlu0 %v3572, 4
      %v3759 = vpop.permute.xlu0 %3758
      %3760 = vrot.lane.b32.xlu0 %v3577, 4
      %v3761 = vpop.permute.xlu0 %3760
      %3762 = vrot.lane.b32.xlu0 %v3582, 4
      %v3763 = vpop.permute.xlu0 %3762
      %3764 = vrot.lane.b32.xlu0 %v3587, 4
      %v3765 = vpop.permute.xlu0 %3764
      %3766 = vrot.lane.b32.xlu0 %v3592, 4
      %v3767 = vpop.permute.xlu0 %3766
      %3768 = vrot.lane.b32.xlu0 %v3597, 4
      %v3769 = vpop.permute.xlu0 %3768
      %3770 = vrot.lane.b32.xlu0 %v3602, 4
      %v3771 = vpop.permute.xlu0 %3770
      %3772 = vrot.lane.b32.xlu0 %v3607, 4
      %v3773 = vpop.permute.xlu0 %3772
      %3774 = vrot.lane.b32.xlu0 %v3612, 4
      %v3775 = vpop.permute.xlu0 %3774
      %3776 = vrot.lane.b32.xlu0 %v3617, 4
      %v3777 = vpop.permute.xlu0 %3776
      %3778 = vrot.lane.b32.xlu0 %v3622, 4
      %v3779 = vpop.permute.xlu0 %3778
      %3780 = vrot.lane.b32.xlu0 %v3627, 4
      %v3781 = vpop.permute.xlu0 %3780
      %3782 = vrot.lane.b32.xlu0 %v3632, 4
      %v3783 = vpop.permute.xlu0 %3782
      %3784 = vrot.lane.b32.xlu0 %v3637, 4
      %v3785 = vpop.permute.xlu0 %3784
      %3786 = vrot.lane.b32.xlu0 %v3642, 4
      %v3787 = vpop.permute.xlu0 %3786
      %3788 = vrot.lane.b32.xlu0 %v3647, 4
      %v3789 = vpop.permute.xlu0 %3788
      %3790 = vrot.lane.b32.xlu0 %v3652, 4
      %v3791 = vpop.permute.xlu0 %3790
      %3792 = vrot.lane.b32.xlu0 %v3657, 4
      %v3793 = vpop.permute.xlu0 %3792
      %3794 = vrot.lane.b32.xlu0 %v3662, 4
      %v3795 = vpop.permute.xlu0 %3794
      %3796 = vrot.lane.b32.xlu0 %v3667, 4
      %v3797 = vpop.permute.xlu0 %3796
      %v3830 = vadd.f32 %v3670, %v3735
      %v3831 = vadd.f32 %v3671, %v3737
      %v3832 = vadd.f32 %v3672, %v3739
      %v3833 = vadd.f32 %v3673, %v3741
      %v3834 = vadd.f32 %v3674, %v3743
      %v3835 = vadd.f32 %v3675, %v3745
      %v3836 = vadd.f32 %v3676, %v3747
      %v3837 = vadd.f32 %v3677, %v3749
      %v3838 = vadd.f32 %v3678, %v3751
      %v3839 = vadd.f32 %v3679, %v3753
      %v3840 = vadd.f32 %v3680, %v3755
      %v3841 = vadd.f32 %v3681, %v3757
      %v3842 = vadd.f32 %v3682, %v3759
      %v3843 = vadd.f32 %v3683, %v3761
      %v3844 = vadd.f32 %v3684, %v3763
      %v3845 = vadd.f32 %v3685, %v3765
      %v3846 = vadd.f32 %v3686, %v3767
      %v3847 = vadd.f32 %v3687, %v3769
      %v3848 = vadd.f32 %v3688, %v3771
      %v3849 = vadd.f32 %v3689, %v3773
      %v3850 = vadd.f32 %v3690, %v3775
      %v3851 = vadd.f32 %v3691, %v3777
      %v3852 = vadd.f32 %v3692, %v3779
      %v3853 = vadd.f32 %v3693, %v3781
      %v3854 = vadd.f32 %v3694, %v3783
      %v3855 = vadd.f32 %v3695, %v3785
      %v3856 = vadd.f32 %v3696, %v3787
      %v3857 = vadd.f32 %v3697, %v3789
      %v3858 = vadd.f32 %v3698, %v3791
      %v3859 = vadd.f32 %v3699, %v3793
      %v3860 = vadd.f32 %v3700, %v3795
      %v3861 = vadd.f32 %v3701, %v3797
      %3862 = vst.msk [vmem:[#allocation3] sm:$0xff] %vm2599, %v3830
      %3863 = vst.msk [vmem:[#allocation3 + $0x8] sm:$0xff] %vm2599, %v3831
      %3864 = vst.msk [vmem:[#allocation3 + $0x10] sm:$0xff] %vm2599, %v3832
      %3865 = vst.msk [vmem:[#allocation3 + $0x18] sm:$0xff] %vm2599, %v3833
      %3866 = vst.msk [vmem:[#allocation3 + $0x20] sm:$0xff] %vm2599, %v3834
      %3867 = vst.msk [vmem:[#allocation3 + $0x28] sm:$0xff] %vm2599, %v3835
      %3868 = vst.msk [vmem:[#allocation3 + $0x30] sm:$0xff] %vm2599, %v3836
      %3869 = vst.msk [vmem:[#allocation3 + $0x38] sm:$0xff] %vm2599, %v3837
      %3870 = vst.msk [vmem:[#allocation3 + $0x40] sm:$0xff] %vm2599, %v3838
      %3871 = vst.msk [vmem:[#allocation3 + $0x48] sm:$0xff] %vm2599, %v3839
      %3872 = vst.msk [vmem:[#allocation3 + $0x50] sm:$0xff] %vm2599, %v3840
      %3873 = vst.msk [vmem:[#allocation3 + $0x58] sm:$0xff] %vm2599, %v3841
      %3874 = vst.msk [vmem:[#allocation3 + $0x60] sm:$0xff] %vm2599, %v3842
      %3875 = vst.msk [vmem:[#allocation3 + $0x68] sm:$0xff] %vm2599, %v3843
      %3876 = vst.msk [vmem:[#allocation3 + $0x70] sm:$0xff] %vm2599, %v3844
      %3877 = vst.msk [vmem:[#allocation3 + $0x78] sm:$0xff] %vm2599, %v3845
      %3878 = vst.msk [vmem:[#allocation3 + $0x80] sm:$0xff] %vm2599, %v3846
      %3879 = vst.msk [vmem:[#allocation3 + $0x88] sm:$0xff] %vm2599, %v3847
      %3880 = vst.msk [vmem:[#allocation3 + $0x90] sm:$0xff] %vm2599, %v3848
      %3881 = vst.msk [vmem:[#allocation3 + $0x98] sm:$0xff] %vm2599, %v3849
      %3882 = vst.msk [vmem:[#allocation3 + $0xa0] sm:$0xff] %vm2599, %v3850
      %3883 = vst.msk [vmem:[#allocation3 + $0xa8] sm:$0xff] %vm2599, %v3851
      %3884 = vst.msk [vmem:[#allocation3 + $0xb0] sm:$0xff] %vm2599, %v3852
      %3885 = vst.msk [vmem:[#allocation3 + $0xb8] sm:$0xff] %vm2599, %v3853
      %3886 = vst.msk [vmem:[#allocation3 + $0xc0] sm:$0xff] %vm2599, %v3854
      %3887 = vst.msk [vmem:[#allocation3 + $0xc8] sm:$0xff] %vm2599, %v3855
      %3888 = vst.msk [vmem:[#allocation3 + $0xd0] sm:$0xff] %vm2599, %v3856
      %3889 = vst.msk [vmem:[#allocation3 + $0xd8] sm:$0xff] %vm2599, %v3857
      %3890 = vst.msk [vmem:[#allocation3 + $0xe0] sm:$0xff] %vm2599, %v3858
      %3891 = vst.msk [vmem:[#allocation3 + $0xe8] sm:$0xff] %vm2599, %v3859
      %3892 = vst.msk [vmem:[#allocation3 + $0xf0] sm:$0xff] %vm2599, %v3860
      %3893 = vst.msk [vmem:[#allocation3 + $0xf8] sm:$0xff] %vm2599, %v3861
      %v3894 = vld [vmem:[#allocation4] sm:$0xff]
      %v3895 = vld [vmem:[#allocation4 + $0x8] sm:$0xff]
      %v3896 = vld [vmem:[#allocation4 + $0x10] sm:$0xff]
      %v3897 = vld [vmem:[#allocation4 + $0x18] sm:$0xff]
      %v3898 = vld [vmem:[#allocation4 + $0x20] sm:$0xff]
      %v3899 = vld [vmem:[#allocation4 + $0x28] sm:$0xff]
      %v3900 = vld [vmem:[#allocation4 + $0x30] sm:$0xff]
      %v3901 = vld [vmem:[#allocation4 + $0x38] sm:$0xff]
      %v3902 = vld [vmem:[#allocation4 + $0x40] sm:$0xff]
      %v3903 = vld [vmem:[#allocation4 + $0x48] sm:$0xff]
      %v3904 = vld [vmem:[#allocation4 + $0x50] sm:$0xff]
      %v3905 = vld [vmem:[#allocation4 + $0x58] sm:$0xff]
      %v3906 = vld [vmem:[#allocation4 + $0x60] sm:$0xff]
      %v3907 = vld [vmem:[#allocation4 + $0x68] sm:$0xff]
      %v3908 = vld [vmem:[#allocation4 + $0x70] sm:$0xff]
      %v3909 = vld [vmem:[#allocation4 + $0x78] sm:$0xff]
      %v3910 = vld [vmem:[#allocation4 + $0x80] sm:$0xff]
      %v3911 = vld [vmem:[#allocation4 + $0x88] sm:$0xff]
      %v3912 = vld [vmem:[#allocation4 + $0x90] sm:$0xff]
      %v3913 = vld [vmem:[#allocation4 + $0x98] sm:$0xff]
      %v3914 = vld [vmem:[#allocation4 + $0xa0] sm:$0xff]
      %v3915 = vld [vmem:[#allocation4 + $0xa8] sm:$0xff]
      %v3916 = vld [vmem:[#allocation4 + $0xb0] sm:$0xff]
      %v3917 = vld [vmem:[#allocation4 + $0xb8] sm:$0xff]
      %v3918 = vld [vmem:[#allocation4 + $0xc0] sm:$0xff]
      %v3919 = vld [vmem:[#allocation4 + $0xc8] sm:$0xff]
      %v3920 = vld [vmem:[#allocation4 + $0xd0] sm:$0xff]
      %v3921 = vld [vmem:[#allocation4 + $0xd8] sm:$0xff]
      %v3922 = vld [vmem:[#allocation4 + $0xe0] sm:$0xff]
      %v3923 = vld [vmem:[#allocation4 + $0xe8] sm:$0xff]
      %v3924 = vld [vmem:[#allocation4 + $0xf0] sm:$0xff]
      %v3925 = vld [vmem:[#allocation4 + $0xf8] sm:$0xff]
      %v3926 = vadd.f32 %v3894, %v3512
      %v3927 = vadd.f32 %v3895, %v3517
      %v3928 = vadd.f32 %v3896, %v3522
      %v3929 = vadd.f32 %v3897, %v3527
      %v3930 = vadd.f32 %v3898, %v3532
      %v3931 = vadd.f32 %v3899, %v3537
      %v3932 = vadd.f32 %v3900, %v3542
      %v3933 = vadd.f32 %v3901, %v3547
      %v3934 = vadd.f32 %v3902, %v3552
      %v3935 = vadd.f32 %v3903, %v3557
      %v3936 = vadd.f32 %v3904, %v3562
      %v3937 = vadd.f32 %v3905, %v3567
      %v3938 = vadd.f32 %v3906, %v3572
      %v3939 = vadd.f32 %v3907, %v3577
      %v3940 = vadd.f32 %v3908, %v3582
      %v3941 = vadd.f32 %v3909, %v3587
      %v3942 = vadd.f32 %v3910, %v3592
      %v3943 = vadd.f32 %v3911, %v3597
      %v3944 = vadd.f32 %v3912, %v3602
      %v3945 = vadd.f32 %v3913, %v3607
      %v3946 = vadd.f32 %v3914, %v3612
      %v3947 = vadd.f32 %v3915, %v3617
      %v3948 = vadd.f32 %v3916, %v3622
      %v3949 = vadd.f32 %v3917, %v3627
      %v3950 = vadd.f32 %v3918, %v3632
      %v3951 = vadd.f32 %v3919, %v3637
      %v3952 = vadd.f32 %v3920, %v3642
      %v3953 = vadd.f32 %v3921, %v3647
      %v3954 = vadd.f32 %v3922, %v3652
      %v3955 = vadd.f32 %v3923, %v3657
      %v3956 = vadd.f32 %v3924, %v3662
      %v3957 = vadd.f32 %v3925, %v3667
      %3958 = vst.msk [vmem:[#allocation4] sm:$0xff] %vm2599, %v3926
      %3959 = vst.msk [vmem:[#allocation4 + $0x8] sm:$0xff] %vm2599, %v3927
      %3960 = vst.msk [vmem:[#allocation4 + $0x10] sm:$0xff] %vm2599, %v3928
      %3961 = vst.msk [vmem:[#allocation4 + $0x18] sm:$0xff] %vm2599, %v3929
      %3962 = vst.msk [vmem:[#allocation4 + $0x20] sm:$0xff] %vm2599, %v3930
      %3963 = vst.msk [vmem:[#allocation4 + $0x28] sm:$0xff] %vm2599, %v3931
      %3964 = vst.msk [vmem:[#allocation4 + $0x30] sm:$0xff] %vm2599, %v3932
      %3965 = vst.msk [vmem:[#allocation4 + $0x38] sm:$0xff] %vm2599, %v3933
      %3966 = vst.msk [vmem:[#allocation4 + $0x40] sm:$0xff] %vm2599, %v3934
      %3967 = vst.msk [vmem:[#allocation4 + $0x48] sm:$0xff] %vm2599, %v3935
      %3968 = vst.msk [vmem:[#allocation4 + $0x50] sm:$0xff] %vm2599, %v3936
      %3969 = vst.msk [vmem:[#allocation4 + $0x58] sm:$0xff] %vm2599, %v3937
      %3970 = vst.msk [vmem:[#allocation4 + $0x60] sm:$0xff] %vm2599, %v3938
      %3971 = vst.msk [vmem:[#allocation4 + $0x68] sm:$0xff] %vm2599, %v3939
      %3972 = vst.msk [vmem:[#allocation4 + $0x70] sm:$0xff] %vm2599, %v3940
      %3973 = vst.msk [vmem:[#allocation4 + $0x78] sm:$0xff] %vm2599, %v3941
      %3974 = vst.msk [vmem:[#allocation4 + $0x80] sm:$0xff] %vm2599, %v3942
      %3975 = vst.msk [vmem:[#allocation4 + $0x88] sm:$0xff] %vm2599, %v3943
      %3976 = vst.msk [vmem:[#allocation4 + $0x90] sm:$0xff] %vm2599, %v3944
      %3977 = vst.msk [vmem:[#allocation4 + $0x98] sm:$0xff] %vm2599, %v3945
      %3978 = vst.msk [vmem:[#allocation4 + $0xa0] sm:$0xff] %vm2599, %v3946
      %3979 = vst.msk [vmem:[#allocation4 + $0xa8] sm:$0xff] %vm2599, %v3947
      %3980 = vst.msk [vmem:[#allocation4 + $0xb0] sm:$0xff] %vm2599, %v3948
      %3981 = vst.msk [vmem:[#allocation4 + $0xb8] sm:$0xff] %vm2599, %v3949
      %3982 = vst.msk [vmem:[#allocation4 + $0xc0] sm:$0xff] %vm2599, %v3950
      %3983 = vst.msk [vmem:[#allocation4 + $0xc8] sm:$0xff] %vm2599, %v3951
      %3984 = vst.msk [vmem:[#allocation4 + $0xd0] sm:$0xff] %vm2599, %v3952
      %3985 = vst.msk [vmem:[#allocation4 + $0xd8] sm:$0xff] %vm2599, %v3953
      %3986 = vst.msk [vmem:[#allocation4 + $0xe0] sm:$0xff] %vm2599, %v3954
      %3987 = vst.msk [vmem:[#allocation4 + $0xe8] sm:$0xff] %vm2599, %v3955
      %3988 = vst.msk [vmem:[#allocation4 + $0xf0] sm:$0xff] %vm2599, %v3956
      %3989 = vst.msk [vmem:[#allocation4 + $0xf8] sm:$0xff] %vm2599, %v3957
      %s3990 = scalar_lea.vmem [#allocation2], 48
      %v3991 = vld [vmem:[%s3990] sm:$0xff]
      %v3992 = vld [vmem:[%s3990 + $0x8] sm:$0xff]
      %v3993 = vld [vmem:[%s3990 + $0x18] sm:$0xff]
      %v3994 = vld [vmem:[%s3990 + $0x20] sm:$0xff]
      %v3995 = vld [vmem:[%s3990 + $0x30] sm:$0xff]
      %v3996 = vld [vmem:[%s3990 + $0x38] sm:$0xff]
      %v3997 = vld [vmem:[%s3990 + $0x48] sm:$0xff]
      %v3998 = vld [vmem:[%s3990 + $0x50] sm:$0xff]
      %v3999 = vld [vmem:[%s3990 + $0x60] sm:$0xff]
      %v4000 = vld [vmem:[%s3990 + $0x68] sm:$0xff]
      %v4001 = vld [vmem:[%s3990 + $0x78] sm:$0xff]
      %v4002 = vld [vmem:[%s3990 + $0x80] sm:$0xff]
      %v4003 = vld [vmem:[%s3990 + $0x90] sm:$0xff]
      %v4004 = vld [vmem:[%s3990 + $0x98] sm:$0xff]
      %v4005 = vld [vmem:[%s3990 + $0xa8] sm:$0xff]
      %v4006 = vld [vmem:[%s3990 + $0xb0] sm:$0xff]
      %v4007 = vld [vmem:[%s3990 + $0xc0] sm:$0xff]
      %v4008 = vld [vmem:[%s3990 + $0xc8] sm:$0xff]
      %v4009 = vld [vmem:[%s3990 + $0xd8] sm:$0xff]
      %v4010 = vld [vmem:[%s3990 + $0xe0] sm:$0xff]
      %v4011 = vld [vmem:[%s3990 + $0xf0] sm:$0xff]
      %v4012 = vld [vmem:[%s3990 + $0xf8] sm:$0xff]
      %v4013 = vld [vmem:[%s3990 + $0x108] sm:$0xff]
      %v4014 = vld [vmem:[%s3990 + $0x110] sm:$0xff]
      %v4015 = vld [vmem:[%s3990 + $0x120] sm:$0xff]
      %v4016 = vld [vmem:[%s3990 + $0x128] sm:$0xff]
      %v4017 = vld [vmem:[%s3990 + $0x138] sm:$0xff]
      %v4018 = vld [vmem:[%s3990 + $0x140] sm:$0xff]
      %v4019 = vld [vmem:[%s3990 + $0x150] sm:$0xff]
      %v4020 = vld [vmem:[%s3990 + $0x158] sm:$0xff]
      %v4021 = vld [vmem:[%s3990 + $0x168] sm:$0xff]
      %v4022 = vld [vmem:[%s3990 + $0x170] sm:$0xff]
      %v4023 = vld [vmem:[%s3] sm:$0xf]
      %4025 = vrot.lane.b32.xlu0 %v4023, 80
      %v4026 = vpop.permute.xlu0 %4025
      %v4028 = vsel %vm463, %v3991, 0
      %v4031 = vsel %vm463, %v3992, 0
      %v4034 = vsel %vm463, %v3993, 0
      %v4037 = vsel %vm463, %v3994, 0
      %v4040 = vsel %vm463, %v3995, 0
      %v4043 = vsel %vm463, %v3996, 0
      %v4046 = vsel %vm463, %v3997, 0
      %v4049 = vsel %vm463, %v3998, 0
      %v4052 = vsel %vm463, %v3999, 0
      %v4055 = vsel %vm463, %v4000, 0
      %v4058 = vsel %vm463, %v4001, 0
      %v4061 = vsel %vm463, %v4002, 0
      %v4064 = vsel %vm463, %v4003, 0
      %v4067 = vsel %vm463, %v4004, 0
      %v4070 = vsel %vm463, %v4005, 0
      %v4073 = vsel %vm463, %v4006, 0
      %v4076 = vsel %vm463, %v4007, 0
      %v4079 = vsel %vm463, %v4008, 0
      %v4082 = vsel %vm463, %v4009, 0
      %v4085 = vsel %vm463, %v4010, 0
      %v4088 = vsel %vm463, %v4011, 0
      %v4091 = vsel %vm463, %v4012, 0
      %v4094 = vsel %vm463, %v4013, 0
      %v4097 = vsel %vm463, %v4014, 0
      %v4100 = vsel %vm463, %v4015, 0
      %v4103 = vsel %vm463, %v4016, 0
      %v4106 = vsel %vm463, %v4017, 0
      %v4109 = vsel %vm463, %v4018, 0
      %v4112 = vsel %vm463, %v4019, 0
      %v4115 = vsel %vm463, %v4020, 0
      %v4118 = vsel %vm463, %v4021, 0
      %v4121 = vsel %vm463, %v4022, 0
      %v4123 = vsel %vm646, %v4026, 0
      %4125 = vmatprep.subr.mxu0 0.0
      %4126 = vmatpush1.msra.mxu0 %v4123
      %4127 = vmatprep.subr.mxu0 0.0
      %4128 = vmatpush1.msra.mxu0 0.0
      %4129 = vmatprep.subr.mxu0 0.0
      %4130 = vmatpush1.msra.mxu0 0.0
      %4131 = vmatprep.subr.mxu0 0.0
      %4132 = vmatpush1.msra.mxu0 0.0
      %4133 = vmatprep.subr.mxu0 0.0
      %4134 = vmatpush1.msra.mxu0 0.0
      %4135 = vmatprep.subr.mxu0 0.0
      %4136 = vmatpush1.msra.mxu0 0.0
      %4137 = vmatprep.subr.mxu0 0.0
      %4138 = vmatpush1.msra.mxu0 0.0
      %4139 = vmatprep.subr.mxu0 0.0
      %4140 = vmatpush1.msra.mxu0 0.0
      %4141 = vmatprep.subr.mxu0 0.0
      %4142 = vmatpush1.msra.mxu0 0.0
      %4143 = vmatprep.subr.mxu0 0.0
      %4144 = vmatpush1.msra.mxu0 0.0
      %4145 = vmatprep.subr.mxu0 0.0
      %4146 = vmatpush1.msra.mxu0 0.0
      %4147 = vmatprep.subr.mxu0 0.0
      %4148 = vmatpush1.msra.mxu0 0.0
      %4149 = vmatprep.subr.mxu0 0.0
      %4150 = vmatpush1.msra.mxu0 0.0
      %4151 = vmatprep.subr.mxu0 0.0
      %4152 = vmatpush1.msra.mxu0 0.0
      %4153 = vmatprep.subr.mxu0 0.0
      %4154 = vmatpush1.msra.mxu0 0.0
      %4155 = vmatprep.subr.mxu0 0.0
      %4156 = vmatpush1.msra.mxu0 0.0
      %4157 = vmatprep.subr.mxu0 0.0
      %4158 = vmatpush1.msra.mxu0 0.0
      %4159 = vmatprep.subr.mxu0 0.0
      %4160 = vmatpush1.msra.mxu0 0.0
      %4161 = vmatprep.subr.mxu0 0.0
      %4162 = vmatpush1.msra.mxu0 0.0
      %4163 = vmatprep.subr.mxu0 0.0
      %4164 = vmatpush1.msra.mxu0 0.0
      %4165 = vmatprep.subr.mxu0 0.0
      %4166 = vmatpush1.msra.mxu0 0.0
      %4167 = vmatprep.subr.mxu0 0.0
      %4168 = vmatpush1.msra.mxu0 0.0
      %4169 = vmatprep.subr.mxu0 0.0
      %4170 = vmatpush1.msra.mxu0 0.0
      %4171 = vmatprep.subr.mxu0 0.0
      %4172 = vmatpush1.msra.mxu0 0.0
      %4173 = vmatprep.subr.mxu0 0.0
      %4174 = vmatpush1.msra.mxu0 0.0
      %4175 = vmatprep.subr.mxu0 0.0
      %4176 = vmatpush1.msra.mxu0 0.0
      %4177 = vmatprep.subr.mxu0 0.0
      %4178 = vmatpush1.msra.mxu0 0.0
      %4179 = vmatprep.subr.mxu0 0.0
      %4180 = vmatpush1.msra.mxu0 0.0
      %4181 = vmatprep.subr.mxu0 0.0
      %4182 = vmatpush1.msra.mxu0 0.0
      %4183 = vmatprep.subr.mxu0 0.0
      %4184 = vmatpush1.msra.mxu0 0.0
      %4185 = vmatprep.subr.mxu0 0.0
      %4186 = vmatpush1.msra.mxu0 0.0
      %4187 = vmatprep.subr.mxu0 0.0
      %4188 = vmatpush1.msra.mxu0 0.0
      %4189 = vmatprep.mubr.f32.mxu0 0.0
      %4190 = vmatmul.mubr.f32.gmra.mrb[0].mxu0 %v4028
      %v4191 = vpop.f32.mrb[0].mxu0
      %v4192 = vadd.f32 0.0, %v4191
      %v4193 = vpop.f32.mrb[0].mxu0
      %4194 = vmatprep.mubr.f32.mxu0 0.0
      %4195 = vmatmul.mubr.f32.gmra.mrb[0].mxu0 %v4031
      %v4196 = vpop.f32.mrb[0].mxu0
      %v4197 = vadd.f32 0.0, %v4196
      %v4198 = vpop.f32.mrb[0].mxu0
      %4199 = vmatprep.mubr.f32.mxu0 0.0
      %4200 = vmatmul.mubr.f32.gmra.mrb[0].mxu0 %v4034
      %v4201 = vpop.f32.mrb[0].mxu0
      %v4202 = vadd.f32 0.0, %v4201
      %v4203 = vpop.f32.mrb[0].mxu0
      %4204 = vmatprep.mubr.f32.mxu0 0.0
      %4205 = vmatmul.mubr.f32.gmra.mrb[0].mxu0 %v4037
      %v4206 = vpop.f32.mrb[0].mxu0
      %v4207 = vadd.f32 0.0, %v4206
      %v4208 = vpop.f32.mrb[0].mxu0
      %4209 = vmatprep.mubr.f32.mxu0 0.0
      %4210 = vmatmul.mubr.f32.gmra.mrb[0].mxu0 %v4040
      %v4211 = vpop.f32.mrb[0].mxu0
      %v4212 = vadd.f32 0.0, %v4211
      %v4213 = vpop.f32.mrb[0].mxu0
      %4214 = vmatprep.mubr.f32.mxu0 0.0
      %4215 = vmatmul.mubr.f32.gmra.mrb[0].mxu0 %v4043
      %v4216 = vpop.f32.mrb[0].mxu0
      %v4217 = vadd.f32 0.0, %v4216
      %v4218 = vpop.f32.mrb[0].mxu0
      %4219 = vmatprep.mubr.f32.mxu0 0.0
      %4220 = vmatmul.mubr.f32.gmra.mrb[0].mxu0 %v4046
      %v4221 = vpop.f32.mrb[0].mxu0
      %v4222 = vadd.f32 0.0, %v4221
      %v4223 = vpop.f32.mrb[0].mxu0
      %4224 = vmatprep.mubr.f32.mxu0 0.0
      %4225 = vmatmul.mubr.f32.gmra.mrb[0].mxu0 %v4049
      %v4226 = vpop.f32.mrb[0].mxu0
      %v4227 = vadd.f32 0.0, %v4226
      %v4228 = vpop.f32.mrb[0].mxu0
      %4229 = vmatprep.mubr.f32.mxu0 0.0
      %4230 = vmatmul.mubr.f32.gmra.mrb[0].mxu0 %v4052
      %v4231 = vpop.f32.mrb[0].mxu0
      %v4232 = vadd.f32 0.0, %v4231
      %v4233 = vpop.f32.mrb[0].mxu0
      %4234 = vmatprep.mubr.f32.mxu0 0.0
      %4235 = vmatmul.mubr.f32.gmra.mrb[0].mxu0 %v4055
      %v4236 = vpop.f32.mrb[0].mxu0
      %v4237 = vadd.f32 0.0, %v4236
      %v4238 = vpop.f32.mrb[0].mxu0
      %4239 = vmatprep.mubr.f32.mxu0 0.0
      %4240 = vmatmul.mubr.f32.gmra.mrb[0].mxu0 %v4058
      %v4241 = vpop.f32.mrb[0].mxu0
      %v4242 = vadd.f32 0.0, %v4241
      %v4243 = vpop.f32.mrb[0].mxu0
      %4244 = vmatprep.mubr.f32.mxu0 0.0
      %4245 = vmatmul.mubr.f32.gmra.mrb[0].mxu0 %v4061
      %v4246 = vpop.f32.mrb[0].mxu0
      %v4247 = vadd.f32 0.0, %v4246
      %v4248 = vpop.f32.mrb[0].mxu0
      %4249 = vmatprep.mubr.f32.mxu0 0.0
      %4250 = vmatmul.mubr.f32.gmra.mrb[0].mxu0 %v4064
      %v4251 = vpop.f32.mrb[0].mxu0
      %v4252 = vadd.f32 0.0, %v4251
      %v4253 = vpop.f32.mrb[0].mxu0
      %4254 = vmatprep.mubr.f32.mxu0 0.0
      %4255 = vmatmul.mubr.f32.gmra.mrb[0].mxu0 %v4067
      %v4256 = vpop.f32.mrb[0].mxu0
      %v4257 = vadd.f32 0.0, %v4256
      %v4258 = vpop.f32.mrb[0].mxu0
      %4259 = vmatprep.mubr.f32.mxu0 0.0
      %4260 = vmatmul.mubr.f32.gmra.mrb[0].mxu0 %v4070
      %v4261 = vpop.f32.mrb[0].mxu0
      %v4262 = vadd.f32 0.0, %v4261
      %v4263 = vpop.f32.mrb[0].mxu0
      %4264 = vmatprep.mubr.f32.mxu0 0.0
      %4265 = vmatmul.mubr.f32.gmra.mrb[0].mxu0 %v4073
      %v4266 = vpop.f32.mrb[0].mxu0
      %v4267 = vadd.f32 0.0, %v4266
      %v4268 = vpop.f32.mrb[0].mxu0
      %4269 = vmatprep.mubr.f32.mxu0 0.0
      %4270 = vmatmul.mubr.f32.gmra.mrb[0].mxu0 %v4076
      %v4271 = vpop.f32.mrb[0].mxu0
      %v4272 = vadd.f32 0.0, %v4271
      %v4273 = vpop.f32.mrb[0].mxu0
      %4274 = vmatprep.mubr.f32.mxu0 0.0
      %4275 = vmatmul.mubr.f32.gmra.mrb[0].mxu0 %v4079
      %v4276 = vpop.f32.mrb[0].mxu0
      %v4277 = vadd.f32 0.0, %v4276
      %v4278 = vpop.f32.mrb[0].mxu0
      %4279 = vmatprep.mubr.f32.mxu0 0.0
      %4280 = vmatmul.mubr.f32.gmra.mrb[0].mxu0 %v4082
      %v4281 = vpop.f32.mrb[0].mxu0
      %v4282 = vadd.f32 0.0, %v4281
      %v4283 = vpop.f32.mrb[0].mxu0
      %4284 = vmatprep.mubr.f32.mxu0 0.0
      %4285 = vmatmul.mubr.f32.gmra.mrb[0].mxu0 %v4085
      %v4286 = vpop.f32.mrb[0].mxu0
      %v4287 = vadd.f32 0.0, %v4286
      %v4288 = vpop.f32.mrb[0].mxu0
      %4289 = vmatprep.mubr.f32.mxu0 0.0
      %4290 = vmatmul.mubr.f32.gmra.mrb[0].mxu0 %v4088
      %v4291 = vpop.f32.mrb[0].mxu0
      %v4292 = vadd.f32 0.0, %v4291
      %v4293 = vpop.f32.mrb[0].mxu0
      %4294 = vmatprep.mubr.f32.mxu0 0.0
      %4295 = vmatmul.mubr.f32.gmra.mrb[0].mxu0 %v4091
      %v4296 = vpop.f32.mrb[0].mxu0
      %v4297 = vadd.f32 0.0, %v4296
      %v4298 = vpop.f32.mrb[0].mxu0
      %4299 = vmatprep.mubr.f32.mxu0 0.0
      %4300 = vmatmul.mubr.f32.gmra.mrb[0].mxu0 %v4094
      %v4301 = vpop.f32.mrb[0].mxu0
      %v4302 = vadd.f32 0.0, %v4301
      %v4303 = vpop.f32.mrb[0].mxu0
      %4304 = vmatprep.mubr.f32.mxu0 0.0
      %4305 = vmatmul.mubr.f32.gmra.mrb[0].mxu0 %v4097
      %v4306 = vpop.f32.mrb[0].mxu0
      %v4307 = vadd.f32 0.0, %v4306
      %v4308 = vpop.f32.mrb[0].mxu0
      %4309 = vmatprep.mubr.f32.mxu0 0.0
      %4310 = vmatmul.mubr.f32.gmra.mrb[0].mxu0 %v4100
      %v4311 = vpop.f32.mrb[0].mxu0
      %v4312 = vadd.f32 0.0, %v4311
      %v4313 = vpop.f32.mrb[0].mxu0
      %4314 = vmatprep.mubr.f32.mxu0 0.0
      %4315 = vmatmul.mubr.f32.gmra.mrb[0].mxu0 %v4103
      %v4316 = vpop.f32.mrb[0].mxu0
      %v4317 = vadd.f32 0.0, %v4316
      %v4318 = vpop.f32.mrb[0].mxu0
      %4319 = vmatprep.mubr.f32.mxu0 0.0
      %4320 = vmatmul.mubr.f32.gmra.mrb[0].mxu0 %v4106
      %v4321 = vpop.f32.mrb[0].mxu0
      %v4322 = vadd.f32 0.0, %v4321
      %v4323 = vpop.f32.mrb[0].mxu0
      %4324 = vmatprep.mubr.f32.mxu0 0.0
      %4325 = vmatmul.mubr.f32.gmra.mrb[0].mxu0 %v4109
      %v4326 = vpop.f32.mrb[0].mxu0
      %v4327 = vadd.f32 0.0, %v4326
      %v4328 = vpop.f32.mrb[0].mxu0
      %4329 = vmatprep.mubr.f32.mxu0 0.0
      %4330 = vmatmul.mubr.f32.gmra.mrb[0].mxu0 %v4112
      %v4331 = vpop.f32.mrb[0].mxu0
      %v4332 = vadd.f32 0.0, %v4331
      %v4333 = vpop.f32.mrb[0].mxu0
      %4334 = vmatprep.mubr.f32.mxu0 0.0
      %4335 = vmatmul.mubr.f32.gmra.mrb[0].mxu0 %v4115
      %v4336 = vpop.f32.mrb[0].mxu0
      %v4337 = vadd.f32 0.0, %v4336
      %v4338 = vpop.f32.mrb[0].mxu0
      %4339 = vmatprep.mubr.f32.mxu0 0.0
      %4340 = vmatmul.mubr.f32.gmra.mrb[0].mxu0 %v4118
      %v4341 = vpop.f32.mrb[0].mxu0
      %v4342 = vadd.f32 0.0, %v4341
      %v4343 = vpop.f32.mrb[0].mxu0
      %4344 = vmatprep.mubr.f32.mxu0 0.0
      %4345 = vmatmul.mubr.f32.gmra.mrb[0].mxu0 %v4121
      %v4346 = vpop.f32.mrb[0].mxu0
      %v4347 = vadd.f32 0.0, %v4346
      %v4348 = vpop.f32.mrb[0].mxu0
      %4349 = vdwg.mxu0
      %v4350 = vld [vmem:[#allocation4] sm:$0xff]
      %v4351 = vld [vmem:[#allocation4 + $0x8] sm:$0xff]
      %v4352 = vld [vmem:[#allocation4 + $0x10] sm:$0xff]
      %v4353 = vld [vmem:[#allocation4 + $0x18] sm:$0xff]
      %v4354 = vld [vmem:[#allocation4 + $0x20] sm:$0xff]
      %v4355 = vld [vmem:[#allocation4 + $0x28] sm:$0xff]
      %v4356 = vld [vmem:[#allocation4 + $0x30] sm:$0xff]
      %v4357 = vld [vmem:[#allocation4 + $0x38] sm:$0xff]
      %v4358 = vld [vmem:[#allocation4 + $0x40] sm:$0xff]
      %v4359 = vld [vmem:[#allocation4 + $0x48] sm:$0xff]
      %v4360 = vld [vmem:[#allocation4 + $0x50] sm:$0xff]
      %v4361 = vld [vmem:[#allocation4 + $0x58] sm:$0xff]
      %v4362 = vld [vmem:[#allocation4 + $0x60] sm:$0xff]
      %v4363 = vld [vmem:[#allocation4 + $0x68] sm:$0xff]
      %v4364 = vld [vmem:[#allocation4 + $0x70] sm:$0xff]
      %v4365 = vld [vmem:[#allocation4 + $0x78] sm:$0xff]
      %v4366 = vld [vmem:[#allocation4 + $0x80] sm:$0xff]
      %v4367 = vld [vmem:[#allocation4 + $0x88] sm:$0xff]
      %v4368 = vld [vmem:[#allocation4 + $0x90] sm:$0xff]
      %v4369 = vld [vmem:[#allocation4 + $0x98] sm:$0xff]
      %v4370 = vld [vmem:[#allocation4 + $0xa0] sm:$0xff]
      %v4371 = vld [vmem:[#allocation4 + $0xa8] sm:$0xff]
      %v4372 = vld [vmem:[#allocation4 + $0xb0] sm:$0xff]
      %v4373 = vld [vmem:[#allocation4 + $0xb8] sm:$0xff]
      %v4374 = vld [vmem:[#allocation4 + $0xc0] sm:$0xff]
      %v4375 = vld [vmem:[#allocation4 + $0xc8] sm:$0xff]
      %v4376 = vld [vmem:[#allocation4 + $0xd0] sm:$0xff]
      %v4377 = vld [vmem:[#allocation4 + $0xd8] sm:$0xff]
      %v4378 = vld [vmem:[#allocation4 + $0xe0] sm:$0xff]
      %v4379 = vld [vmem:[#allocation4 + $0xe8] sm:$0xff]
      %v4380 = vld [vmem:[#allocation4 + $0xf0] sm:$0xff]
      %v4381 = vld [vmem:[#allocation4 + $0xf8] sm:$0xff]
      %v4382 = vadd.f32 %v4350, %v4192
      %v4383 = vadd.f32 %v4351, %v4197
      %v4384 = vadd.f32 %v4352, %v4202
      %v4385 = vadd.f32 %v4353, %v4207
      %v4386 = vadd.f32 %v4354, %v4212
      %v4387 = vadd.f32 %v4355, %v4217
      %v4388 = vadd.f32 %v4356, %v4222
      %v4389 = vadd.f32 %v4357, %v4227
      %v4390 = vadd.f32 %v4358, %v4232
      %v4391 = vadd.f32 %v4359, %v4237
      %v4392 = vadd.f32 %v4360, %v4242
      %v4393 = vadd.f32 %v4361, %v4247
      %v4394 = vadd.f32 %v4362, %v4252
      %v4395 = vadd.f32 %v4363, %v4257
      %v4396 = vadd.f32 %v4364, %v4262
      %v4397 = vadd.f32 %v4365, %v4267
      %v4398 = vadd.f32 %v4366, %v4272
      %v4399 = vadd.f32 %v4367, %v4277
      %v4400 = vadd.f32 %v4368, %v4282
      %v4401 = vadd.f32 %v4369, %v4287
      %v4402 = vadd.f32 %v4370, %v4292
      %v4403 = vadd.f32 %v4371, %v4297
      %v4404 = vadd.f32 %v4372, %v4302
      %v4405 = vadd.f32 %v4373, %v4307
      %v4406 = vadd.f32 %v4374, %v4312
      %v4407 = vadd.f32 %v4375, %v4317
      %v4408 = vadd.f32 %v4376, %v4322
      %v4409 = vadd.f32 %v4377, %v4327
      %v4410 = vadd.f32 %v4378, %v4332
      %v4411 = vadd.f32 %v4379, %v4337
      %v4412 = vadd.f32 %v4380, %v4342
      %v4413 = vadd.f32 %v4381, %v4347
      %4414 = vst.msk [vmem:[#allocation4] sm:$0xff] %vm463, %v4382
      %4415 = vst.msk [vmem:[#allocation4 + $0x8] sm:$0xff] %vm463, %v4383
      %4416 = vst.msk [vmem:[#allocation4 + $0x10] sm:$0xff] %vm463, %v4384
      %4417 = vst.msk [vmem:[#allocation4 + $0x18] sm:$0xff] %vm463, %v4385
      %4418 = vst.msk [vmem:[#allocation4 + $0x20] sm:$0xff] %vm463, %v4386
      %4419 = vst.msk [vmem:[#allocation4 + $0x28] sm:$0xff] %vm463, %v4387
      %4420 = vst.msk [vmem:[#allocation4 + $0x30] sm:$0xff] %vm463, %v4388
      %4421 = vst.msk [vmem:[#allocation4 + $0x38] sm:$0xff] %vm463, %v4389
      %4422 = vst.msk [vmem:[#allocation4 + $0x40] sm:$0xff] %vm463, %v4390
      %4423 = vst.msk [vmem:[#allocation4 + $0x48] sm:$0xff] %vm463, %v4391
      %4424 = vst.msk [vmem:[#allocation4 + $0x50] sm:$0xff] %vm463, %v4392
      %4425 = vst.msk [vmem:[#allocation4 + $0x58] sm:$0xff] %vm463, %v4393
      %4426 = vst.msk [vmem:[#allocation4 + $0x60] sm:$0xff] %vm463, %v4394
      %4427 = vst.msk [vmem:[#allocation4 + $0x68] sm:$0xff] %vm463, %v4395
      %4428 = vst.msk [vmem:[#allocation4 + $0x70] sm:$0xff] %vm463, %v4396
      %4429 = vst.msk [vmem:[#allocation4 + $0x78] sm:$0xff] %vm463, %v4397
      %4430 = vst.msk [vmem:[#allocation4 + $0x80] sm:$0xff] %vm463, %v4398
      %4431 = vst.msk [vmem:[#allocation4 + $0x88] sm:$0xff] %vm463, %v4399
      %4432 = vst.msk [vmem:[#allocation4 + $0x90] sm:$0xff] %vm463, %v4400
      %4433 = vst.msk [vmem:[#allocation4 + $0x98] sm:$0xff] %vm463, %v4401
      %4434 = vst.msk [vmem:[#allocation4 + $0xa0] sm:$0xff] %vm463, %v4402
      %4435 = vst.msk [vmem:[#allocation4 + $0xa8] sm:$0xff] %vm463, %v4403
      %4436 = vst.msk [vmem:[#allocation4 + $0xb0] sm:$0xff] %vm463, %v4404
      %4437 = vst.msk [vmem:[#allocation4 + $0xb8] sm:$0xff] %vm463, %v4405
      %4438 = vst.msk [vmem:[#allocation4 + $0xc0] sm:$0xff] %vm463, %v4406
      %4439 = vst.msk [vmem:[#allocation4 + $0xc8] sm:$0xff] %vm463, %v4407
      %4440 = vst.msk [vmem:[#allocation4 + $0xd0] sm:$0xff] %vm463, %v4408
      %4441 = vst.msk [vmem:[#allocation4 + $0xd8] sm:$0xff] %vm463, %v4409
      %4442 = vst.msk [vmem:[#allocation4 + $0xe0] sm:$0xff] %vm463, %v4410
      %4443 = vst.msk [vmem:[#allocation4 + $0xe8] sm:$0xff] %vm463, %v4411
      %4444 = vst.msk [vmem:[#allocation4 + $0xf0] sm:$0xff] %vm463, %v4412
      %4445 = vst.msk [vmem:[#allocation4 + $0xf8] sm:$0xff] %vm463, %v4413
      %v4446 = vld [vmem:[%s3990 + $0x1] sm:$0xff]
      %v4447 = vld [vmem:[%s3990 + $0x9] sm:$0xff]
      %v4448 = vld [vmem:[%s3990 + $0x19] sm:$0xff]
      %v4449 = vld [vmem:[%s3990 + $0x21] sm:$0xff]
      %v4450 = vld [vmem:[%s3990 + $0x31] sm:$0xff]
      %v4451 = vld [vmem:[%s3990 + $0x39] sm:$0xff]
      %v4452 = vld [vmem:[%s3990 + $0x49] sm:$0xff]
      %v4453 = vld [vmem:[%s3990 + $0x51] sm:$0xff]
      %v4454 = vld [vmem:[%s3990 + $0x61] sm:$0xff]
      %v4455 = vld [vmem:[%s3990 + $0x69] sm:$0xff]
      %v4456 = vld [vmem:[%s3990 + $0x79] sm:$0xff]
      %v4457 = vld [vmem:[%s3990 + $0x81] sm:$0xff]
      %v4458 = vld [vmem:[%s3990 + $0x91] sm:$0xff]
      %v4459 = vld [vmem:[%s3990 + $0x99] sm:$0xff]
      %v4460 = vld [vmem:[%s3990 + $0xa9] sm:$0xff]
      %v4461 = vld [vmem:[%s3990 + $0xb1] sm:$0xff]
      %v4462 = vld [vmem:[%s3990 + $0xc1] sm:$0xff]
      %v4463 = vld [vmem:[%s3990 + $0xc9] sm:$0xff]
      %v4464 = vld [vmem:[%s3990 + $0xd9] sm:$0xff]
      %v4465 = vld [vmem:[%s3990 + $0xe1] sm:$0xff]
      %v4466 = vld [vmem:[%s3990 + $0xf1] sm:$0xff]
      %v4467 = vld [vmem:[%s3990 + $0xf9] sm:$0xff]
      %v4468 = vld [vmem:[%s3990 + $0x109] sm:$0xff]
      %v4469 = vld [vmem:[%s3990 + $0x111] sm:$0xff]
      %v4470 = vld [vmem:[%s3990 + $0x121] sm:$0xff]
      %v4471 = vld [vmem:[%s3990 + $0x129] sm:$0xff]
      %v4472 = vld [vmem:[%s3990 + $0x139] sm:$0xff]
      %v4473 = vld [vmem:[%s3990 + $0x141] sm:$0xff]
      %v4474 = vld [vmem:[%s3990 + $0x151] sm:$0xff]
      %v4475 = vld [vmem:[%s3990 + $0x159] sm:$0xff]
      %v4476 = vld [vmem:[%s3990 + $0x169] sm:$0xff]
      %v4477 = vld [vmem:[%s3990 + $0x171] sm:$0xff]
      %v4478 = vld [vmem:[%s3] sm:$0xf]
      %4480 = vrot.lane.b32.xlu0 %v4478, 76
      %v4481 = vpop.permute.xlu0 %4480
      %v4483 = vsel %vm463, %v4446, 0
      %v4486 = vsel %vm463, %v4447, 0
      %v4489 = vsel %vm463, %v4448, 0
      %v4492 = vsel %vm463, %v4449, 0
      %v4495 = vsel %vm463, %v4450, 0
      %v4498 = vsel %vm463, %v4451, 0
      %v4501 = vsel %vm463, %v4452, 0
      %v4504 = vsel %vm463, %v4453, 0
      %v4507 = vsel %vm463, %v4454, 0
      %v4510 = vsel %vm463, %v4455, 0
      %v4513 = vsel %vm463, %v4456, 0
      %v4516 = vsel %vm463, %v4457, 0
      %v4519 = vsel %vm463, %v4458, 0
      %v4522 = vsel %vm463, %v4459, 0
      %v4525 = vsel %vm463, %v4460, 0
      %v4528 = vsel %vm463, %v4461, 0
      %v4531 = vsel %vm463, %v4462, 0
      %v4534 = vsel %vm463, %v4463, 0
      %v4537 = vsel %vm463, %v4464, 0
      %v4540 = vsel %vm463, %v4465, 0
      %v4543 = vsel %vm463, %v4466, 0
      %v4546 = vsel %vm463, %v4467, 0
      %v4549 = vsel %vm463, %v4468, 0
      %v4552 = vsel %vm463, %v4469, 0
      %v4555 = vsel %vm463, %v4470, 0
      %v4558 = vsel %vm463, %v4471, 0
      %v4561 = vsel %vm463, %v4472, 0
      %v4564 = vsel %vm463, %v4473, 0
      %v4567 = vsel %vm463, %v4474, 0
      %v4570 = vsel %vm463, %v4475, 0
      %v4573 = vsel %vm463, %v4476, 0
      %v4576 = vsel %vm463, %v4477, 0
      %v4578 = vsel %vm646, %v4481, 0
      %4580 = vmatprep.subr.mxu0 0.0
      %4581 = vmatpush1.msra.mxu0 %v4578
      %4582 = vmatprep.subr.mxu0 0.0
      %4583 = vmatpush1.msra.mxu0 0.0
      %4584 = vmatprep.subr.mxu0 0.0
      %4585 = vmatpush1.msra.mxu0 0.0
      %4586 = vmatprep.subr.mxu0 0.0
      %4587 = vmatpush1.msra.mxu0 0.0
      %4588 = vmatprep.subr.mxu0 0.0
      %4589 = vmatpush1.msra.mxu0 0.0
      %4590 = vmatprep.subr.mxu0 0.0
      %4591 = vmatpush1.msra.mxu0 0.0
      %4592 = vmatprep.subr.mxu0 0.0
      %4593 = vmatpush1.msra.mxu0 0.0
      %4594 = vmatprep.subr.mxu0 0.0
      %4595 = vmatpush1.msra.mxu0 0.0
      %4596 = vmatprep.subr.mxu0 0.0
      %4597 = vmatpush1.msra.mxu0 0.0
      %4598 = vmatprep.subr.mxu0 0.0
      %4599 = vmatpush1.msra.mxu0 0.0
      %4600 = vmatprep.subr.mxu0 0.0
      %4601 = vmatpush1.msra.mxu0 0.0
      %4602 = vmatprep.subr.mxu0 0.0
      %4603 = vmatpush1.msra.mxu0 0.0
      %4604 = vmatprep.subr.mxu0 0.0
      %4605 = vmatpush1.msra.mxu0 0.0
      %4606 = vmatprep.subr.mxu0 0.0
      %4607 = vmatpush1.msra.mxu0 0.0
      %4608 = vmatprep.subr.mxu0 0.0
      %4609 = vmatpush1.msra.mxu0 0.0
      %4610 = vmatprep.subr.mxu0 0.0
      %4611 = vmatpush1.msra.mxu0 0.0
      %4612 = vmatprep.subr.mxu0 0.0
      %4613 = vmatpush1.msra.mxu0 0.0
      %4614 = vmatprep.subr.mxu0 0.0
      %4615 = vmatpush1.msra.mxu0 0.0
      %4616 = vmatprep.subr.mxu0 0.0
      %4617 = vmatpush1.msra.mxu0 0.0
      %4618 = vmatprep.subr.mxu0 0.0
      %4619 = vmatpush1.msra.mxu0 0.0
      %4620 = vmatprep.subr.mxu0 0.0
      %4621 = vmatpush1.msra.mxu0 0.0
      %4622 = vmatprep.subr.mxu0 0.0
      %4623 = vmatpush1.msra.mxu0 0.0
      %4624 = vmatprep.subr.mxu0 0.0
      %4625 = vmatpush1.msra.mxu0 0.0
      %4626 = vmatprep.subr.mxu0 0.0
      %4627 = vmatpush1.msra.mxu0 0.0
      %4628 = vmatprep.subr.mxu0 0.0
      %4629 = vmatpush1.msra.mxu0 0.0
      %4630 = vmatprep.subr.mxu0 0.0
      %4631 = vmatpush1.msra.mxu0 0.0
      %4632 = vmatprep.subr.mxu0 0.0
      %4633 = vmatpush1.msra.mxu0 0.0
      %4634 = vmatprep.subr.mxu0 0.0
      %4635 = vmatpush1.msra.mxu0 0.0
      %4636 = vmatprep.subr.mxu0 0.0
      %4637 = vmatpush1.msra.mxu0 0.0
      %4638 = vmatprep.subr.mxu0 0.0
      %4639 = vmatpush1.msra.mxu0 0.0
      %4640 = vmatprep.subr.mxu0 0.0
      %4641 = vmatpush1.msra.mxu0 0.0
      %4642 = vmatprep.subr.mxu0 0.0
      %4643 = vmatpush1.msra.mxu0 0.0
      %4644 = vmatprep.mubr.f32.mxu0 0.0
      %4645 = vmatmul.mubr.f32.gmra.mrb[0].mxu0 %v4483
      %v4646 = vpop.f32.mrb[0].mxu0
      %v4647 = vadd.f32 0.0, %v4646
      %v4648 = vpop.f32.mrb[0].mxu0
      %4649 = vmatprep.mubr.f32.mxu0 0.0
      %4650 = vmatmul.mubr.f32.gmra.mrb[0].mxu0 %v4486
      %v4651 = vpop.f32.mrb[0].mxu0
      %v4652 = vadd.f32 0.0, %v4651
      %v4653 = vpop.f32.mrb[0].mxu0
      %4654 = vmatprep.mubr.f32.mxu0 0.0
      %4655 = vmatmul.mubr.f32.gmra.mrb[0].mxu0 %v4489
      %v4656 = vpop.f32.mrb[0].mxu0
      %v4657 = vadd.f32 0.0, %v4656
      %v4658 = vpop.f32.mrb[0].mxu0
      %4659 = vmatprep.mubr.f32.mxu0 0.0
      %4660 = vmatmul.mubr.f32.gmra.mrb[0].mxu0 %v4492
      %v4661 = vpop.f32.mrb[0].mxu0
      %v4662 = vadd.f32 0.0, %v4661
      %v4663 = vpop.f32.mrb[0].mxu0
      %4664 = vmatprep.mubr.f32.mxu0 0.0
      %4665 = vmatmul.mubr.f32.gmra.mrb[0].mxu0 %v4495
      %v4666 = vpop.f32.mrb[0].mxu0
      %v4667 = vadd.f32 0.0, %v4666
      %v4668 = vpop.f32.mrb[0].mxu0
      %4669 = vmatprep.mubr.f32.mxu0 0.0
      %4670 = vmatmul.mubr.f32.gmra.mrb[0].mxu0 %v4498
      %v4671 = vpop.f32.mrb[0].mxu0
      %v4672 = vadd.f32 0.0, %v4671
      %v4673 = vpop.f32.mrb[0].mxu0
      %4674 = vmatprep.mubr.f32.mxu0 0.0
      %4675 = vmatmul.mubr.f32.gmra.mrb[0].mxu0 %v4501
      %v4676 = vpop.f32.mrb[0].mxu0
      %v4677 = vadd.f32 0.0, %v4676
      %v4678 = vpop.f32.mrb[0].mxu0
      %4679 = vmatprep.mubr.f32.mxu0 0.0
      %4680 = vmatmul.mubr.f32.gmra.mrb[0].mxu0 %v4504
      %v4681 = vpop.f32.mrb[0].mxu0
      %v4682 = vadd.f32 0.0, %v4681
      %v4683 = vpop.f32.mrb[0].mxu0
      %4684 = vmatprep.mubr.f32.mxu0 0.0
      %4685 = vmatmul.mubr.f32.gmra.mrb[0].mxu0 %v4507
      %v4686 = vpop.f32.mrb[0].mxu0
      %v4687 = vadd.f32 0.0, %v4686
      %v4688 = vpop.f32.mrb[0].mxu0
      %4689 = vmatprep.mubr.f32.mxu0 0.0
      %4690 = vmatmul.mubr.f32.gmra.mrb[0].mxu0 %v4510
      %v4691 = vpop.f32.mrb[0].mxu0
      %v4692 = vadd.f32 0.0, %v4691
      %v4693 = vpop.f32.mrb[0].mxu0
      %4694 = vmatprep.mubr.f32.mxu0 0.0
      %4695 = vmatmul.mubr.f32.gmra.mrb[0].mxu0 %v4513
      %v4696 = vpop.f32.mrb[0].mxu0
      %v4697 = vadd.f32 0.0, %v4696
      %v4698 = vpop.f32.mrb[0].mxu0
      %4699 = vmatprep.mubr.f32.mxu0 0.0
      %4700 = vmatmul.mubr.f32.gmra.mrb[0].mxu0 %v4516
      %v4701 = vpop.f32.mrb[0].mxu0
      %v4702 = vadd.f32 0.0, %v4701
      %v4703 = vpop.f32.mrb[0].mxu0
      %4704 = vmatprep.mubr.f32.mxu0 0.0
      %4705 = vmatmul.mubr.f32.gmra.mrb[0].mxu0 %v4519
      %v4706 = vpop.f32.mrb[0].mxu0
      %v4707 = vadd.f32 0.0, %v4706
      %v4708 = vpop.f32.mrb[0].mxu0
      %4709 = vmatprep.mubr.f32.mxu0 0.0
      %4710 = vmatmul.mubr.f32.gmra.mrb[0].mxu0 %v4522
      %v4711 = vpop.f32.mrb[0].mxu0
      %v4712 = vadd.f32 0.0, %v4711
      %v4713 = vpop.f32.mrb[0].mxu0
      %4714 = vmatprep.mubr.f32.mxu0 0.0
      %4715 = vmatmul.mubr.f32.gmra.mrb[0].mxu0 %v4525
      %v4716 = vpop.f32.mrb[0].mxu0
      %v4717 = vadd.f32 0.0, %v4716
      %v4718 = vpop.f32.mrb[0].mxu0
      %4719 = vmatprep.mubr.f32.mxu0 0.0
      %4720 = vmatmul.mubr.f32.gmra.mrb[0].mxu0 %v4528
      %v4721 = vpop.f32.mrb[0].mxu0
      %v4722 = vadd.f32 0.0, %v4721
      %v4723 = vpop.f32.mrb[0].mxu0
      %4724 = vmatprep.mubr.f32.mxu0 0.0
      %4725 = vmatmul.mubr.f32.gmra.mrb[0].mxu0 %v4531
      %v4726 = vpop.f32.mrb[0].mxu0
      %v4727 = vadd.f32 0.0, %v4726
      %v4728 = vpop.f32.mrb[0].mxu0
      %4729 = vmatprep.mubr.f32.mxu0 0.0
      %4730 = vmatmul.mubr.f32.gmra.mrb[0].mxu0 %v4534
      %v4731 = vpop.f32.mrb[0].mxu0
      %v4732 = vadd.f32 0.0, %v4731
      %v4733 = vpop.f32.mrb[0].mxu0
      %4734 = vmatprep.mubr.f32.mxu0 0.0
      %4735 = vmatmul.mubr.f32.gmra.mrb[0].mxu0 %v4537
      %v4736 = vpop.f32.mrb[0].mxu0
      %v4737 = vadd.f32 0.0, %v4736
      %v4738 = vpop.f32.mrb[0].mxu0
      %4739 = vmatprep.mubr.f32.mxu0 0.0
      %4740 = vmatmul.mubr.f32.gmra.mrb[0].mxu0 %v4540
      %v4741 = vpop.f32.mrb[0].mxu0
      %v4742 = vadd.f32 0.0, %v4741
      %v4743 = vpop.f32.mrb[0].mxu0
      %4744 = vmatprep.mubr.f32.mxu0 0.0
      %4745 = vmatmul.mubr.f32.gmra.mrb[0].mxu0 %v4543
      %v4746 = vpop.f32.mrb[0].mxu0
      %v4747 = vadd.f32 0.0, %v4746
      %v4748 = vpop.f32.mrb[0].mxu0
      %4749 = vmatprep.mubr.f32.mxu0 0.0
      %4750 = vmatmul.mubr.f32.gmra.mrb[0].mxu0 %v4546
      %v4751 = vpop.f32.mrb[0].mxu0
      %v4752 = vadd.f32 0.0, %v4751
      %v4753 = vpop.f32.mrb[0].mxu0
      %4754 = vmatprep.mubr.f32.mxu0 0.0
      %4755 = vmatmul.mubr.f32.gmra.mrb[0].mxu0 %v4549
      %v4756 = vpop.f32.mrb[0].mxu0
      %v4757 = vadd.f32 0.0, %v4756
      %v4758 = vpop.f32.mrb[0].mxu0
      %4759 = vmatprep.mubr.f32.mxu0 0.0
      %4760 = vmatmul.mubr.f32.gmra.mrb[0].mxu0 %v4552
      %v4761 = vpop.f32.mrb[0].mxu0
      %v4762 = vadd.f32 0.0, %v4761
      %v4763 = vpop.f32.mrb[0].mxu0
      %4764 = vmatprep.mubr.f32.mxu0 0.0
      %4765 = vmatmul.mubr.f32.gmra.mrb[0].mxu0 %v4555
      %v4766 = vpop.f32.mrb[0].mxu0
      %v4767 = vadd.f32 0.0, %v4766
      %v4768 = vpop.f32.mrb[0].mxu0
      %4769 = vmatprep.mubr.f32.mxu0 0.0
      %4770 = vmatmul.mubr.f32.gmra.mrb[0].mxu0 %v4558
      %v4771 = vpop.f32.mrb[0].mxu0
      %v4772 = vadd.f32 0.0, %v4771
      %v4773 = vpop.f32.mrb[0].mxu0
      %4774 = vmatprep.mubr.f32.mxu0 0.0
      %4775 = vmatmul.mubr.f32.gmra.mrb[0].mxu0 %v4561
      %v4776 = vpop.f32.mrb[0].mxu0
      %v4777 = vadd.f32 0.0, %v4776
      %v4778 = vpop.f32.mrb[0].mxu0
      %4779 = vmatprep.mubr.f32.mxu0 0.0
      %4780 = vmatmul.mubr.f32.gmra.mrb[0].mxu0 %v4564
      %v4781 = vpop.f32.mrb[0].mxu0
      %v4782 = vadd.f32 0.0, %v4781
      %v4783 = vpop.f32.mrb[0].mxu0
      %4784 = vmatprep.mubr.f32.mxu0 0.0
      %4785 = vmatmul.mubr.f32.gmra.mrb[0].mxu0 %v4567
      %v4786 = vpop.f32.mrb[0].mxu0
      %v4787 = vadd.f32 0.0, %v4786
      %v4788 = vpop.f32.mrb[0].mxu0
      %4789 = vmatprep.mubr.f32.mxu0 0.0
      %4790 = vmatmul.mubr.f32.gmra.mrb[0].mxu0 %v4570
      %v4791 = vpop.f32.mrb[0].mxu0
      %v4792 = vadd.f32 0.0, %v4791
      %v4793 = vpop.f32.mrb[0].mxu0
      %4794 = vmatprep.mubr.f32.mxu0 0.0
      %4795 = vmatmul.mubr.f32.gmra.mrb[0].mxu0 %v4573
      %v4796 = vpop.f32.mrb[0].mxu0
      %v4797 = vadd.f32 0.0, %v4796
      %v4798 = vpop.f32.mrb[0].mxu0
      %4799 = vmatprep.mubr.f32.mxu0 0.0
      %4800 = vmatmul.mubr.f32.gmra.mrb[0].mxu0 %v4576
      %v4801 = vpop.f32.mrb[0].mxu0
      %v4802 = vadd.f32 0.0, %v4801
      %v4803 = vpop.f32.mrb[0].mxu0
      %4804 = vdwg.mxu0
      %v4805 = vld [vmem:[#allocation4] sm:$0xff]
      %v4806 = vld [vmem:[#allocation4 + $0x8] sm:$0xff]
      %v4807 = vld [vmem:[#allocation4 + $0x10] sm:$0xff]
      %v4808 = vld [vmem:[#allocation4 + $0x18] sm:$0xff]
      %v4809 = vld [vmem:[#allocation4 + $0x20] sm:$0xff]
      %v4810 = vld [vmem:[#allocation4 + $0x28] sm:$0xff]
      %v4811 = vld [vmem:[#allocation4 + $0x30] sm:$0xff]
      %v4812 = vld [vmem:[#allocation4 + $0x38] sm:$0xff]
      %v4813 = vld [vmem:[#allocation4 + $0x40] sm:$0xff]
      %v4814 = vld [vmem:[#allocation4 + $0x48] sm:$0xff]
      %v4815 = vld [vmem:[#allocation4 + $0x50] sm:$0xff]
      %v4816 = vld [vmem:[#allocation4 + $0x58] sm:$0xff]
      %v4817 = vld [vmem:[#allocation4 + $0x60] sm:$0xff]
      %v4818 = vld [vmem:[#allocation4 + $0x68] sm:$0xff]
      %v4819 = vld [vmem:[#allocation4 + $0x70] sm:$0xff]
      %v4820 = vld [vmem:[#allocation4 + $0x78] sm:$0xff]
      %v4821 = vld [vmem:[#allocation4 + $0x80] sm:$0xff]
      %v4822 = vld [vmem:[#allocation4 + $0x88] sm:$0xff]
      %v4823 = vld [vmem:[#allocation4 + $0x90] sm:$0xff]
      %v4824 = vld [vmem:[#allocation4 + $0x98] sm:$0xff]
      %v4825 = vld [vmem:[#allocation4 + $0xa0] sm:$0xff]
      %v4826 = vld [vmem:[#allocation4 + $0xa8] sm:$0xff]
      %v4827 = vld [vmem:[#allocation4 + $0xb0] sm:$0xff]
      %v4828 = vld [vmem:[#allocation4 + $0xb8] sm:$0xff]
      %v4829 = vld [vmem:[#allocation4 + $0xc0] sm:$0xff]
      %v4830 = vld [vmem:[#allocation4 + $0xc8] sm:$0xff]
      %v4831 = vld [vmem:[#allocation4 + $0xd0] sm:$0xff]
      %v4832 = vld [vmem:[#allocation4 + $0xd8] sm:$0xff]
      %v4833 = vld [vmem:[#allocation4 + $0xe0] sm:$0xff]
      %v4834 = vld [vmem:[#allocation4 + $0xe8] sm:$0xff]
      %v4835 = vld [vmem:[#allocation4 + $0xf0] sm:$0xff]
      %v4836 = vld [vmem:[#allocation4 + $0xf8] sm:$0xff]
      %v4837 = vadd.f32 %v4805, %v4647
      %v4838 = vadd.f32 %v4806, %v4652
      %v4839 = vadd.f32 %v4807, %v4657
      %v4840 = vadd.f32 %v4808, %v4662
      %v4841 = vadd.f32 %v4809, %v4667
      %v4842 = vadd.f32 %v4810, %v4672
      %v4843 = vadd.f32 %v4811, %v4677
      %v4844 = vadd.f32 %v4812, %v4682
      %v4845 = vadd.f32 %v4813, %v4687
      %v4846 = vadd.f32 %v4814, %v4692
      %v4847 = vadd.f32 %v4815, %v4697
      %v4848 = vadd.f32 %v4816, %v4702
      %v4849 = vadd.f32 %v4817, %v4707
      %v4850 = vadd.f32 %v4818, %v4712
      %v4851 = vadd.f32 %v4819, %v4717
      %v4852 = vadd.f32 %v4820, %v4722
      %v4853 = vadd.f32 %v4821, %v4727
      %v4854 = vadd.f32 %v4822, %v4732
      %v4855 = vadd.f32 %v4823, %v4737
      %v4856 = vadd.f32 %v4824, %v4742
      %v4857 = vadd.f32 %v4825, %v4747
      %v4858 = vadd.f32 %v4826, %v4752
      %v4859 = vadd.f32 %v4827, %v4757
      %v4860 = vadd.f32 %v4828, %v4762
      %v4861 = vadd.f32 %v4829, %v4767
      %v4862 = vadd.f32 %v4830, %v4772
      %v4863 = vadd.f32 %v4831, %v4777
      %v4864 = vadd.f32 %v4832, %v4782
      %v4865 = vadd.f32 %v4833, %v4787
      %v4866 = vadd.f32 %v4834, %v4792
      %v4867 = vadd.f32 %v4835, %v4797
      %v4868 = vadd.f32 %v4836, %v4802
      %4869 = vst.msk [vmem:[#allocation4] sm:$0xff] %vm912, %v4837
      %4870 = vst.msk [vmem:[#allocation4 + $0x8] sm:$0xff] %vm912, %v4838
      %4871 = vst.msk [vmem:[#allocation4 + $0x10] sm:$0xff] %vm912, %v4839
      %4872 = vst.msk [vmem:[#allocation4 + $0x18] sm:$0xff] %vm912, %v4840
      %4873 = vst.msk [vmem:[#allocation4 + $0x20] sm:$0xff] %vm912, %v4841
      %4874 = vst.msk [vmem:[#allocation4 + $0x28] sm:$0xff] %vm912, %v4842
      %4875 = vst.msk [vmem:[#allocation4 + $0x30] sm:$0xff] %vm912, %v4843
      %4876 = vst.msk [vmem:[#allocation4 + $0x38] sm:$0xff] %vm912, %v4844
      %4877 = vst.msk [vmem:[#allocation4 + $0x40] sm:$0xff] %vm912, %v4845
      %4878 = vst.msk [vmem:[#allocation4 + $0x48] sm:$0xff] %vm912, %v4846
      %4879 = vst.msk [vmem:[#allocation4 + $0x50] sm:$0xff] %vm912, %v4847
      %4880 = vst.msk [vmem:[#allocation4 + $0x58] sm:$0xff] %vm912, %v4848
      %4881 = vst.msk [vmem:[#allocation4 + $0x60] sm:$0xff] %vm912, %v4849
      %4882 = vst.msk [vmem:[#allocation4 + $0x68] sm:$0xff] %vm912, %v4850
      %4883 = vst.msk [vmem:[#allocation4 + $0x70] sm:$0xff] %vm912, %v4851
      %4884 = vst.msk [vmem:[#allocation4 + $0x78] sm:$0xff] %vm912, %v4852
      %4885 = vst.msk [vmem:[#allocation4 + $0x80] sm:$0xff] %vm912, %v4853
      %4886 = vst.msk [vmem:[#allocation4 + $0x88] sm:$0xff] %vm912, %v4854
      %4887 = vst.msk [vmem:[#allocation4 + $0x90] sm:$0xff] %vm912, %v4855
      %4888 = vst.msk [vmem:[#allocation4 + $0x98] sm:$0xff] %vm912, %v4856
      %4889 = vst.msk [vmem:[#allocation4 + $0xa0] sm:$0xff] %vm912, %v4857
      %4890 = vst.msk [vmem:[#allocation4 + $0xa8] sm:$0xff] %vm912, %v4858
      %4891 = vst.msk [vmem:[#allocation4 + $0xb0] sm:$0xff] %vm912, %v4859
      %4892 = vst.msk [vmem:[#allocation4 + $0xb8] sm:$0xff] %vm912, %v4860
      %4893 = vst.msk [vmem:[#allocation4 + $0xc0] sm:$0xff] %vm912, %v4861
      %4894 = vst.msk [vmem:[#allocation4 + $0xc8] sm:$0xff] %vm912, %v4862
      %4895 = vst.msk [vmem:[#allocation4 + $0xd0] sm:$0xff] %vm912, %v4863
      %4896 = vst.msk [vmem:[#allocation4 + $0xd8] sm:$0xff] %vm912, %v4864
      %4897 = vst.msk [vmem:[#allocation4 + $0xe0] sm:$0xff] %vm912, %v4865
      %4898 = vst.msk [vmem:[#allocation4 + $0xe8] sm:$0xff] %vm912, %v4866
      %4899 = vst.msk [vmem:[#allocation4 + $0xf0] sm:$0xff] %vm912, %v4867
      %4900 = vst.msk [vmem:[#allocation4 + $0xf8] sm:$0xff] %vm912, %v4868
      %v4901 = vld [vmem:[%s3990 + $0x2] sm:$0xff]
      %v4902 = vld [vmem:[%s3990 + $0xa] sm:$0xff]
      %v4903 = vld [vmem:[%s3990 + $0x1a] sm:$0xff]
      %v4904 = vld [vmem:[%s3990 + $0x22] sm:$0xff]
      %v4905 = vld [vmem:[%s3990 + $0x32] sm:$0xff]
      %v4906 = vld [vmem:[%s3990 + $0x3a] sm:$0xff]
      %v4907 = vld [vmem:[%s3990 + $0x4a] sm:$0xff]
      %v4908 = vld [vmem:[%s3990 + $0x52] sm:$0xff]
      %v4909 = vld [vmem:[%s3990 + $0x62] sm:$0xff]
      %v4910 = vld [vmem:[%s3990 + $0x6a] sm:$0xff]
      %v4911 = vld [vmem:[%s3990 + $0x7a] sm:$0xff]
      %v4912 = vld [vmem:[%s3990 + $0x82] sm:$0xff]
      %v4913 = vld [vmem:[%s3990 + $0x92] sm:$0xff]
      %v4914 = vld [vmem:[%s3990 + $0x9a] sm:$0xff]
      %v4915 = vld [vmem:[%s3990 + $0xaa] sm:$0xff]
      %v4916 = vld [vmem:[%s3990 + $0xb2] sm:$0xff]
      %v4917 = vld [vmem:[%s3990 + $0xc2] sm:$0xff]
      %v4918 = vld [vmem:[%s3990 + $0xca] sm:$0xff]
      %v4919 = vld [vmem:[%s3990 + $0xda] sm:$0xff]
      %v4920 = vld [vmem:[%s3990 + $0xe2] sm:$0xff]
      %v4921 = vld [vmem:[%s3990 + $0xf2] sm:$0xff]
      %v4922 = vld [vmem:[%s3990 + $0xfa] sm:$0xff]
      %v4923 = vld [vmem:[%s3990 + $0x10a] sm:$0xff]
      %v4924 = vld [vmem:[%s3990 + $0x112] sm:$0xff]
      %v4925 = vld [vmem:[%s3990 + $0x122] sm:$0xff]
      %v4926 = vld [vmem:[%s3990 + $0x12a] sm:$0xff]
      %v4927 = vld [vmem:[%s3990 + $0x13a] sm:$0xff]
      %v4928 = vld [vmem:[%s3990 + $0x142] sm:$0xff]
      %v4929 = vld [vmem:[%s3990 + $0x152] sm:$0xff]
      %v4930 = vld [vmem:[%s3990 + $0x15a] sm:$0xff]
      %v4931 = vld [vmem:[%s3990 + $0x16a] sm:$0xff]
      %v4932 = vld [vmem:[%s3990 + $0x172] sm:$0xff]
      %v4933 = vld [vmem:[%s3] sm:$0xf]
      %4935 = vrot.lane.b32.xlu0 %v4933, 68
      %v4936 = vpop.permute.xlu0 %4935
      %v4938 = vsel %vm463, %v4901, 0
      %v4941 = vsel %vm463, %v4902, 0
      %v4944 = vsel %vm463, %v4903, 0
      %v4947 = vsel %vm463, %v4904, 0
      %v4950 = vsel %vm463, %v4905, 0
      %v4953 = vsel %vm463, %v4906, 0
      %v4956 = vsel %vm463, %v4907, 0
      %v4959 = vsel %vm463, %v4908, 0
      %v4962 = vsel %vm463, %v4909, 0
      %v4965 = vsel %vm463, %v4910, 0
      %v4968 = vsel %vm463, %v4911, 0
      %v4971 = vsel %vm463, %v4912, 0
      %v4974 = vsel %vm463, %v4913, 0
      %v4977 = vsel %vm463, %v4914, 0
      %v4980 = vsel %vm463, %v4915, 0
      %v4983 = vsel %vm463, %v4916, 0
      %v4986 = vsel %vm463, %v4917, 0
      %v4989 = vsel %vm463, %v4918, 0
      %v4992 = vsel %vm463, %v4919, 0
      %v4995 = vsel %vm463, %v4920, 0
      %v4998 = vsel %vm463, %v4921, 0
      %v5001 = vsel %vm463, %v4922, 0
      %v5004 = vsel %vm463, %v4923, 0
      %v5007 = vsel %vm463, %v4924, 0
      %v5010 = vsel %vm463, %v4925, 0
      %v5013 = vsel %vm463, %v4926, 0
      %v5016 = vsel %vm463, %v4927, 0
      %v5019 = vsel %vm463, %v4928, 0
      %v5022 = vsel %vm463, %v4929, 0
      %v5025 = vsel %vm463, %v4930, 0
      %v5028 = vsel %vm463, %v4931, 0
      %v5031 = vsel %vm463, %v4932, 0
      %v5033 = vsel %vm646, %v4936, 0
      %5035 = vmatprep.subr.mxu0 0.0
      %5036 = vmatpush1.msra.mxu0 %v5033
      %5037 = vmatprep.subr.mxu0 0.0
      %5038 = vmatpush1.msra.mxu0 0.0
      %5039 = vmatprep.subr.mxu0 0.0
      %5040 = vmatpush1.msra.mxu0 0.0
      %5041 = vmatprep.subr.mxu0 0.0
      %5042 = vmatpush1.msra.mxu0 0.0
      %5043 = vmatprep.subr.mxu0 0.0
      %5044 = vmatpush1.msra.mxu0 0.0
      %5045 = vmatprep.subr.mxu0 0.0
      %5046 = vmatpush1.msra.mxu0 0.0
      %5047 = vmatprep.subr.mxu0 0.0
      %5048 = vmatpush1.msra.mxu0 0.0
      %5049 = vmatprep.subr.mxu0 0.0
      %5050 = vmatpush1.msra.mxu0 0.0
      %5051 = vmatprep.subr.mxu0 0.0
      %5052 = vmatpush1.msra.mxu0 0.0
      %5053 = vmatprep.subr.mxu0 0.0
      %5054 = vmatpush1.msra.mxu0 0.0
      %5055 = vmatprep.subr.mxu0 0.0
      %5056 = vmatpush1.msra.mxu0 0.0
      %5057 = vmatprep.subr.mxu0 0.0
      %5058 = vmatpush1.msra.mxu0 0.0
      %5059 = vmatprep.subr.mxu0 0.0
      %5060 = vmatpush1.msra.mxu0 0.0
      %5061 = vmatprep.subr.mxu0 0.0
      %5062 = vmatpush1.msra.mxu0 0.0
      %5063 = vmatprep.subr.mxu0 0.0
      %5064 = vmatpush1.msra.mxu0 0.0
      %5065 = vmatprep.subr.mxu0 0.0
      %5066 = vmatpush1.msra.mxu0 0.0
      %5067 = vmatprep.subr.mxu0 0.0
      %5068 = vmatpush1.msra.mxu0 0.0
      %5069 = vmatprep.subr.mxu0 0.0
      %5070 = vmatpush1.msra.mxu0 0.0
      %5071 = vmatprep.subr.mxu0 0.0
      %5072 = vmatpush1.msra.mxu0 0.0
      %5073 = vmatprep.subr.mxu0 0.0
      %5074 = vmatpush1.msra.mxu0 0.0
      %5075 = vmatprep.subr.mxu0 0.0
      %5076 = vmatpush1.msra.mxu0 0.0
      %5077 = vmatprep.subr.mxu0 0.0
      %5078 = vmatpush1.msra.mxu0 0.0
      %5079 = vmatprep.subr.mxu0 0.0
      %5080 = vmatpush1.msra.mxu0 0.0
      %5081 = vmatprep.subr.mxu0 0.0
      %5082 = vmatpush1.msra.mxu0 0.0
      %5083 = vmatprep.subr.mxu0 0.0
      %5084 = vmatpush1.msra.mxu0 0.0
      %5085 = vmatprep.subr.mxu0 0.0
      %5086 = vmatpush1.msra.mxu0 0.0
      %5087 = vmatprep.subr.mxu0 0.0
      %5088 = vmatpush1.msra.mxu0 0.0
      %5089 = vmatprep.subr.mxu0 0.0
      %5090 = vmatpush1.msra.mxu0 0.0
      %5091 = vmatprep.subr.mxu0 0.0
      %5092 = vmatpush1.msra.mxu0 0.0
      %5093 = vmatprep.subr.mxu0 0.0
      %5094 = vmatpush1.msra.mxu0 0.0
      %5095 = vmatprep.subr.mxu0 0.0
      %5096 = vmatpush1.msra.mxu0 0.0
      %5097 = vmatprep.subr.mxu0 0.0
      %5098 = vmatpush1.msra.mxu0 0.0
      %5099 = vmatprep.mubr.f32.mxu0 0.0
      %5100 = vmatmul.mubr.f32.gmra.mrb[0].mxu0 %v4938
      %v5101 = vpop.f32.mrb[0].mxu0
      %v5102 = vadd.f32 0.0, %v5101
      %v5103 = vpop.f32.mrb[0].mxu0
      %5104 = vmatprep.mubr.f32.mxu0 0.0
      %5105 = vmatmul.mubr.f32.gmra.mrb[0].mxu0 %v4941
      %v5106 = vpop.f32.mrb[0].mxu0
      %v5107 = vadd.f32 0.0, %v5106
      %v5108 = vpop.f32.mrb[0].mxu0
      %5109 = vmatprep.mubr.f32.mxu0 0.0
      %5110 = vmatmul.mubr.f32.gmra.mrb[0].mxu0 %v4944
      %v5111 = vpop.f32.mrb[0].mxu0
      %v5112 = vadd.f32 0.0, %v5111
      %v5113 = vpop.f32.mrb[0].mxu0
      %5114 = vmatprep.mubr.f32.mxu0 0.0
      %5115 = vmatmul.mubr.f32.gmra.mrb[0].mxu0 %v4947
      %v5116 = vpop.f32.mrb[0].mxu0
      %v5117 = vadd.f32 0.0, %v5116
      %v5118 = vpop.f32.mrb[0].mxu0
      %5119 = vmatprep.mubr.f32.mxu0 0.0
      %5120 = vmatmul.mubr.f32.gmra.mrb[0].mxu0 %v4950
      %v5121 = vpop.f32.mrb[0].mxu0
      %v5122 = vadd.f32 0.0, %v5121
      %v5123 = vpop.f32.mrb[0].mxu0
      %5124 = vmatprep.mubr.f32.mxu0 0.0
      %5125 = vmatmul.mubr.f32.gmra.mrb[0].mxu0 %v4953
      %v5126 = vpop.f32.mrb[0].mxu0
      %v5127 = vadd.f32 0.0, %v5126
      %v5128 = vpop.f32.mrb[0].mxu0
      %5129 = vmatprep.mubr.f32.mxu0 0.0
      %5130 = vmatmul.mubr.f32.gmra.mrb[0].mxu0 %v4956
      %v5131 = vpop.f32.mrb[0].mxu0
      %v5132 = vadd.f32 0.0, %v5131
      %v5133 = vpop.f32.mrb[0].mxu0
      %5134 = vmatprep.mubr.f32.mxu0 0.0
      %5135 = vmatmul.mubr.f32.gmra.mrb[0].mxu0 %v4959
      %v5136 = vpop.f32.mrb[0].mxu0
      %v5137 = vadd.f32 0.0, %v5136
      %v5138 = vpop.f32.mrb[0].mxu0
      %5139 = vmatprep.mubr.f32.mxu0 0.0
      %5140 = vmatmul.mubr.f32.gmra.mrb[0].mxu0 %v4962
      %v5141 = vpop.f32.mrb[0].mxu0
      %v5142 = vadd.f32 0.0, %v5141
      %v5143 = vpop.f32.mrb[0].mxu0
      %5144 = vmatprep.mubr.f32.mxu0 0.0
      %5145 = vmatmul.mubr.f32.gmra.mrb[0].mxu0 %v4965
      %v5146 = vpop.f32.mrb[0].mxu0
      %v5147 = vadd.f32 0.0, %v5146
      %v5148 = vpop.f32.mrb[0].mxu0
      %5149 = vmatprep.mubr.f32.mxu0 0.0
      %5150 = vmatmul.mubr.f32.gmra.mrb[0].mxu0 %v4968
      %v5151 = vpop.f32.mrb[0].mxu0
      %v5152 = vadd.f32 0.0, %v5151
      %v5153 = vpop.f32.mrb[0].mxu0
      %5154 = vmatprep.mubr.f32.mxu0 0.0
      %5155 = vmatmul.mubr.f32.gmra.mrb[0].mxu0 %v4971
      %v5156 = vpop.f32.mrb[0].mxu0
      %v5157 = vadd.f32 0.0, %v5156
      %v5158 = vpop.f32.mrb[0].mxu0
      %5159 = vmatprep.mubr.f32.mxu0 0.0
      %5160 = vmatmul.mubr.f32.gmra.mrb[0].mxu0 %v4974
      %v5161 = vpop.f32.mrb[0].mxu0
      %v5162 = vadd.f32 0.0, %v5161
      %v5163 = vpop.f32.mrb[0].mxu0
      %5164 = vmatprep.mubr.f32.mxu0 0.0
      %5165 = vmatmul.mubr.f32.gmra.mrb[0].mxu0 %v4977
      %v5166 = vpop.f32.mrb[0].mxu0
      %v5167 = vadd.f32 0.0, %v5166
      %v5168 = vpop.f32.mrb[0].mxu0
      %5169 = vmatprep.mubr.f32.mxu0 0.0
      %5170 = vmatmul.mubr.f32.gmra.mrb[0].mxu0 %v4980
      %v5171 = vpop.f32.mrb[0].mxu0
      %v5172 = vadd.f32 0.0, %v5171
      %v5173 = vpop.f32.mrb[0].mxu0
      %5174 = vmatprep.mubr.f32.mxu0 0.0
      %5175 = vmatmul.mubr.f32.gmra.mrb[0].mxu0 %v4983
      %v5176 = vpop.f32.mrb[0].mxu0
      %v5177 = vadd.f32 0.0, %v5176
      %v5178 = vpop.f32.mrb[0].mxu0
      %5179 = vmatprep.mubr.f32.mxu0 0.0
      %5180 = vmatmul.mubr.f32.gmra.mrb[0].mxu0 %v4986
      %v5181 = vpop.f32.mrb[0].mxu0
      %v5182 = vadd.f32 0.0, %v5181
      %v5183 = vpop.f32.mrb[0].mxu0
      %5184 = vmatprep.mubr.f32.mxu0 0.0
      %5185 = vmatmul.mubr.f32.gmra.mrb[0].mxu0 %v4989
      %v5186 = vpop.f32.mrb[0].mxu0
      %v5187 = vadd.f32 0.0, %v5186
      %v5188 = vpop.f32.mrb[0].mxu0
      %5189 = vmatprep.mubr.f32.mxu0 0.0
      %5190 = vmatmul.mubr.f32.gmra.mrb[0].mxu0 %v4992
      %v5191 = vpop.f32.mrb[0].mxu0
      %v5192 = vadd.f32 0.0, %v5191
      %v5193 = vpop.f32.mrb[0].mxu0
      %5194 = vmatprep.mubr.f32.mxu0 0.0
      %5195 = vmatmul.mubr.f32.gmra.mrb[0].mxu0 %v4995
      %v5196 = vpop.f32.mrb[0].mxu0
      %v5197 = vadd.f32 0.0, %v5196
      %v5198 = vpop.f32.mrb[0].mxu0
      %5199 = vmatprep.mubr.f32.mxu0 0.0
      %5200 = vmatmul.mubr.f32.gmra.mrb[0].mxu0 %v4998
      %v5201 = vpop.f32.mrb[0].mxu0
      %v5202 = vadd.f32 0.0, %v5201
      %v5203 = vpop.f32.mrb[0].mxu0
      %5204 = vmatprep.mubr.f32.mxu0 0.0
      %5205 = vmatmul.mubr.f32.gmra.mrb[0].mxu0 %v5001
      %v5206 = vpop.f32.mrb[0].mxu0
      %v5207 = vadd.f32 0.0, %v5206
      %v5208 = vpop.f32.mrb[0].mxu0
      %5209 = vmatprep.mubr.f32.mxu0 0.0
      %5210 = vmatmul.mubr.f32.gmra.mrb[0].mxu0 %v5004
      %v5211 = vpop.f32.mrb[0].mxu0
      %v5212 = vadd.f32 0.0, %v5211
      %v5213 = vpop.f32.mrb[0].mxu0
      %5214 = vmatprep.mubr.f32.mxu0 0.0
      %5215 = vmatmul.mubr.f32.gmra.mrb[0].mxu0 %v5007
      %v5216 = vpop.f32.mrb[0].mxu0
      %v5217 = vadd.f32 0.0, %v5216
      %v5218 = vpop.f32.mrb[0].mxu0
      %5219 = vmatprep.mubr.f32.mxu0 0.0
      %5220 = vmatmul.mubr.f32.gmra.mrb[0].mxu0 %v5010
      %v5221 = vpop.f32.mrb[0].mxu0
      %v5222 = vadd.f32 0.0, %v5221
      %v5223 = vpop.f32.mrb[0].mxu0
      %5224 = vmatprep.mubr.f32.mxu0 0.0
      %5225 = vmatmul.mubr.f32.gmra.mrb[0].mxu0 %v5013
      %v5226 = vpop.f32.mrb[0].mxu0
      %v5227 = vadd.f32 0.0, %v5226
      %v5228 = vpop.f32.mrb[0].mxu0
      %5229 = vmatprep.mubr.f32.mxu0 0.0
      %5230 = vmatmul.mubr.f32.gmra.mrb[0].mxu0 %v5016
      %v5231 = vpop.f32.mrb[0].mxu0
      %v5232 = vadd.f32 0.0, %v5231
      %v5233 = vpop.f32.mrb[0].mxu0
      %5234 = vmatprep.mubr.f32.mxu0 0.0
      %5235 = vmatmul.mubr.f32.gmra.mrb[0].mxu0 %v5019
      %v5236 = vpop.f32.mrb[0].mxu0
      %v5237 = vadd.f32 0.0, %v5236
      %v5238 = vpop.f32.mrb[0].mxu0
      %5239 = vmatprep.mubr.f32.mxu0 0.0
      %5240 = vmatmul.mubr.f32.gmra.mrb[0].mxu0 %v5022
      %v5241 = vpop.f32.mrb[0].mxu0
      %v5242 = vadd.f32 0.0, %v5241
      %v5243 = vpop.f32.mrb[0].mxu0
      %5244 = vmatprep.mubr.f32.mxu0 0.0
      %5245 = vmatmul.mubr.f32.gmra.mrb[0].mxu0 %v5025
      %v5246 = vpop.f32.mrb[0].mxu0
      %v5247 = vadd.f32 0.0, %v5246
      %v5248 = vpop.f32.mrb[0].mxu0
      %5249 = vmatprep.mubr.f32.mxu0 0.0
      %5250 = vmatmul.mubr.f32.gmra.mrb[0].mxu0 %v5028
      %v5251 = vpop.f32.mrb[0].mxu0
      %v5252 = vadd.f32 0.0, %v5251
      %v5253 = vpop.f32.mrb[0].mxu0
      %5254 = vmatprep.mubr.f32.mxu0 0.0
      %5255 = vmatmul.mubr.f32.gmra.mrb[0].mxu0 %v5031
      %v5256 = vpop.f32.mrb[0].mxu0
      %v5257 = vadd.f32 0.0, %v5256
      %v5258 = vpop.f32.mrb[0].mxu0
      %5259 = vdwg.mxu0
      %v5260 = vld [vmem:[#allocation4] sm:$0xff]
      %v5261 = vld [vmem:[#allocation4 + $0x8] sm:$0xff]
      %v5262 = vld [vmem:[#allocation4 + $0x10] sm:$0xff]
      %v5263 = vld [vmem:[#allocation4 + $0x18] sm:$0xff]
      %v5264 = vld [vmem:[#allocation4 + $0x20] sm:$0xff]
      %v5265 = vld [vmem:[#allocation4 + $0x28] sm:$0xff]
      %v5266 = vld [vmem:[#allocation4 + $0x30] sm:$0xff]
      %v5267 = vld [vmem:[#allocation4 + $0x38] sm:$0xff]
      %v5268 = vld [vmem:[#allocation4 + $0x40] sm:$0xff]
      %v5269 = vld [vmem:[#allocation4 + $0x48] sm:$0xff]
      %v5270 = vld [vmem:[#allocation4 + $0x50] sm:$0xff]
      %v5271 = vld [vmem:[#allocation4 + $0x58] sm:$0xff]
      %v5272 = vld [vmem:[#allocation4 + $0x60] sm:$0xff]
      %v5273 = vld [vmem:[#allocation4 + $0x68] sm:$0xff]
      %v5274 = vld [vmem:[#allocation4 + $0x70] sm:$0xff]
      %v5275 = vld [vmem:[#allocation4 + $0x78] sm:$0xff]
      %v5276 = vld [vmem:[#allocation4 + $0x80] sm:$0xff]
      %v5277 = vld [vmem:[#allocation4 + $0x88] sm:$0xff]
      %v5278 = vld [vmem:[#allocation4 + $0x90] sm:$0xff]
      %v5279 = vld [vmem:[#allocation4 + $0x98] sm:$0xff]
      %v5280 = vld [vmem:[#allocation4 + $0xa0] sm:$0xff]
      %v5281 = vld [vmem:[#allocation4 + $0xa8] sm:$0xff]
      %v5282 = vld [vmem:[#allocation4 + $0xb0] sm:$0xff]
      %v5283 = vld [vmem:[#allocation4 + $0xb8] sm:$0xff]
      %v5284 = vld [vmem:[#allocation4 + $0xc0] sm:$0xff]
      %v5285 = vld [vmem:[#allocation4 + $0xc8] sm:$0xff]
      %v5286 = vld [vmem:[#allocation4 + $0xd0] sm:$0xff]
      %v5287 = vld [vmem:[#allocation4 + $0xd8] sm:$0xff]
      %v5288 = vld [vmem:[#allocation4 + $0xe0] sm:$0xff]
      %v5289 = vld [vmem:[#allocation4 + $0xe8] sm:$0xff]
      %v5290 = vld [vmem:[#allocation4 + $0xf0] sm:$0xff]
      %v5291 = vld [vmem:[#allocation4 + $0xf8] sm:$0xff]
      %5324 = vrot.lane.b32.xlu0 %v5102, 4
      %v5325 = vpop.permute.xlu0 %5324
      %5326 = vrot.lane.b32.xlu0 %v5107, 4
      %v5327 = vpop.permute.xlu0 %5326
      %5328 = vrot.lane.b32.xlu0 %v5112, 4
      %v5329 = vpop.permute.xlu0 %5328
      %5330 = vrot.lane.b32.xlu0 %v5117, 4
      %v5331 = vpop.permute.xlu0 %5330
      %5332 = vrot.lane.b32.xlu0 %v5122, 4
      %v5333 = vpop.permute.xlu0 %5332
      %5334 = vrot.lane.b32.xlu0 %v5127, 4
      %v5335 = vpop.permute.xlu0 %5334
      %5336 = vrot.lane.b32.xlu0 %v5132, 4
      %v5337 = vpop.permute.xlu0 %5336
      %5338 = vrot.lane.b32.xlu0 %v5137, 4
      %v5339 = vpop.permute.xlu0 %5338
      %5340 = vrot.lane.b32.xlu0 %v5142, 4
      %v5341 = vpop.permute.xlu0 %5340
      %5342 = vrot.lane.b32.xlu0 %v5147, 4
      %v5343 = vpop.permute.xlu0 %5342
      %5344 = vrot.lane.b32.xlu0 %v5152, 4
      %v5345 = vpop.permute.xlu0 %5344
      %5346 = vrot.lane.b32.xlu0 %v5157, 4
      %v5347 = vpop.permute.xlu0 %5346
      %5348 = vrot.lane.b32.xlu0 %v5162, 4
      %v5349 = vpop.permute.xlu0 %5348
      %5350 = vrot.lane.b32.xlu0 %v5167, 4
      %v5351 = vpop.permute.xlu0 %5350
      %5352 = vrot.lane.b32.xlu0 %v5172, 4
      %v5353 = vpop.permute.xlu0 %5352
      %5354 = vrot.lane.b32.xlu0 %v5177, 4
      %v5355 = vpop.permute.xlu0 %5354
      %5356 = vrot.lane.b32.xlu0 %v5182, 4
      %v5357 = vpop.permute.xlu0 %5356
      %5358 = vrot.lane.b32.xlu0 %v5187, 4
      %v5359 = vpop.permute.xlu0 %5358
      %5360 = vrot.lane.b32.xlu0 %v5192, 4
      %v5361 = vpop.permute.xlu0 %5360
      %5362 = vrot.lane.b32.xlu0 %v5197, 4
      %v5363 = vpop.permute.xlu0 %5362
      %5364 = vrot.lane.b32.xlu0 %v5202, 4
      %v5365 = vpop.permute.xlu0 %5364
      %5366 = vrot.lane.b32.xlu0 %v5207, 4
      %v5367 = vpop.permute.xlu0 %5366
      %5368 = vrot.lane.b32.xlu0 %v5212, 4
      %v5369 = vpop.permute.xlu0 %5368
      %5370 = vrot.lane.b32.xlu0 %v5217, 4
      %v5371 = vpop.permute.xlu0 %5370
      %5372 = vrot.lane.b32.xlu0 %v5222, 4
      %v5373 = vpop.permute.xlu0 %5372
      %5374 = vrot.lane.b32.xlu0 %v5227, 4
      %v5375 = vpop.permute.xlu0 %5374
      %5376 = vrot.lane.b32.xlu0 %v5232, 4
      %v5377 = vpop.permute.xlu0 %5376
      %5378 = vrot.lane.b32.xlu0 %v5237, 4
      %v5379 = vpop.permute.xlu0 %5378
      %5380 = vrot.lane.b32.xlu0 %v5242, 4
      %v5381 = vpop.permute.xlu0 %5380
      %5382 = vrot.lane.b32.xlu0 %v5247, 4
      %v5383 = vpop.permute.xlu0 %5382
      %5384 = vrot.lane.b32.xlu0 %v5252, 4
      %v5385 = vpop.permute.xlu0 %5384
      %5386 = vrot.lane.b32.xlu0 %v5257, 4
      %v5387 = vpop.permute.xlu0 %5386
      %v5420 = vadd.f32 %v5260, %v5325
      %v5421 = vadd.f32 %v5261, %v5327
      %v5422 = vadd.f32 %v5262, %v5329
      %v5423 = vadd.f32 %v5263, %v5331
      %v5424 = vadd.f32 %v5264, %v5333
      %v5425 = vadd.f32 %v5265, %v5335
      %v5426 = vadd.f32 %v5266, %v5337
      %v5427 = vadd.f32 %v5267, %v5339
      %v5428 = vadd.f32 %v5268, %v5341
      %v5429 = vadd.f32 %v5269, %v5343
      %v5430 = vadd.f32 %v5270, %v5345
      %v5431 = vadd.f32 %v5271, %v5347
      %v5432 = vadd.f32 %v5272, %v5349
      %v5433 = vadd.f32 %v5273, %v5351
      %v5434 = vadd.f32 %v5274, %v5353
      %v5435 = vadd.f32 %v5275, %v5355
      %v5436 = vadd.f32 %v5276, %v5357
      %v5437 = vadd.f32 %v5277, %v5359
      %v5438 = vadd.f32 %v5278, %v5361
      %v5439 = vadd.f32 %v5279, %v5363
      %v5440 = vadd.f32 %v5280, %v5365
      %v5441 = vadd.f32 %v5281, %v5367
      %v5442 = vadd.f32 %v5282, %v5369
      %v5443 = vadd.f32 %v5283, %v5371
      %v5444 = vadd.f32 %v5284, %v5373
      %v5445 = vadd.f32 %v5285, %v5375
      %v5446 = vadd.f32 %v5286, %v5377
      %v5447 = vadd.f32 %v5287, %v5379
      %v5448 = vadd.f32 %v5288, %v5381
      %v5449 = vadd.f32 %v5289, %v5383
      %v5450 = vadd.f32 %v5290, %v5385
      %v5451 = vadd.f32 %v5291, %v5387
      %5452 = vst.msk [vmem:[#allocation4] sm:$0xff] %vm2599, %v5420
      %5453 = vst.msk [vmem:[#allocation4 + $0x8] sm:$0xff] %vm2599, %v5421
      %5454 = vst.msk [vmem:[#allocation4 + $0x10] sm:$0xff] %vm2599, %v5422
      %5455 = vst.msk [vmem:[#allocation4 + $0x18] sm:$0xff] %vm2599, %v5423
      %5456 = vst.msk [vmem:[#allocation4 + $0x20] sm:$0xff] %vm2599, %v5424
      %5457 = vst.msk [vmem:[#allocation4 + $0x28] sm:$0xff] %vm2599, %v5425
      %5458 = vst.msk [vmem:[#allocation4 + $0x30] sm:$0xff] %vm2599, %v5426
      %5459 = vst.msk [vmem:[#allocation4 + $0x38] sm:$0xff] %vm2599, %v5427
      %5460 = vst.msk [vmem:[#allocation4 + $0x40] sm:$0xff] %vm2599, %v5428
      %5461 = vst.msk [vmem:[#allocation4 + $0x48] sm:$0xff] %vm2599, %v5429
      %5462 = vst.msk [vmem:[#allocation4 + $0x50] sm:$0xff] %vm2599, %v5430
      %5463 = vst.msk [vmem:[#allocation4 + $0x58] sm:$0xff] %vm2599, %v5431
      %5464 = vst.msk [vmem:[#allocation4 + $0x60] sm:$0xff] %vm2599, %v5432
      %5465 = vst.msk [vmem:[#allocation4 + $0x68] sm:$0xff] %vm2599, %v5433
      %5466 = vst.msk [vmem:[#allocation4 + $0x70] sm:$0xff] %vm2599, %v5434
      %5467 = vst.msk [vmem:[#allocation4 + $0x78] sm:$0xff] %vm2599, %v5435
      %5468 = vst.msk [vmem:[#allocation4 + $0x80] sm:$0xff] %vm2599, %v5436
      %5469 = vst.msk [vmem:[#allocation4 + $0x88] sm:$0xff] %vm2599, %v5437
      %5470 = vst.msk [vmem:[#allocation4 + $0x90] sm:$0xff] %vm2599, %v5438
      %5471 = vst.msk [vmem:[#allocation4 + $0x98] sm:$0xff] %vm2599, %v5439
      %5472 = vst.msk [vmem:[#allocation4 + $0xa0] sm:$0xff] %vm2599, %v5440
      %5473 = vst.msk [vmem:[#allocation4 + $0xa8] sm:$0xff] %vm2599, %v5441
      %5474 = vst.msk [vmem:[#allocation4 + $0xb0] sm:$0xff] %vm2599, %v5442
      %5475 = vst.msk [vmem:[#allocation4 + $0xb8] sm:$0xff] %vm2599, %v5443
      %5476 = vst.msk [vmem:[#allocation4 + $0xc0] sm:$0xff] %vm2599, %v5444
      %5477 = vst.msk [vmem:[#allocation4 + $0xc8] sm:$0xff] %vm2599, %v5445
      %5478 = vst.msk [vmem:[#allocation4 + $0xd0] sm:$0xff] %vm2599, %v5446
      %5479 = vst.msk [vmem:[#allocation4 + $0xd8] sm:$0xff] %vm2599, %v5447
      %5480 = vst.msk [vmem:[#allocation4 + $0xe0] sm:$0xff] %vm2599, %v5448
      %5481 = vst.msk [vmem:[#allocation4 + $0xe8] sm:$0xff] %vm2599, %v5449
      %5482 = vst.msk [vmem:[#allocation4 + $0xf0] sm:$0xff] %vm2599, %v5450
      %5483 = vst.msk [vmem:[#allocation4 + $0xf8] sm:$0xff] %vm2599, %v5451
      %v5484 = vld [vmem:[#allocation3] sm:$0xff]
      %v5485 = vld [vmem:[#allocation3 + $0x8] sm:$0xff]
      %v5486 = vld [vmem:[#allocation3 + $0x10] sm:$0xff]
      %v5487 = vld [vmem:[#allocation3 + $0x18] sm:$0xff]
      %v5488 = vld [vmem:[#allocation3 + $0x20] sm:$0xff]
      %v5489 = vld [vmem:[#allocation3 + $0x28] sm:$0xff]
      %v5490 = vld [vmem:[#allocation3 + $0x30] sm:$0xff]
      %v5491 = vld [vmem:[#allocation3 + $0x38] sm:$0xff]
      %v5492 = vld [vmem:[#allocation3 + $0x40] sm:$0xff]
      %v5493 = vld [vmem:[#allocation3 + $0x48] sm:$0xff]
      %v5494 = vld [vmem:[#allocation3 + $0x50] sm:$0xff]
      %v5495 = vld [vmem:[#allocation3 + $0x58] sm:$0xff]
      %v5496 = vld [vmem:[#allocation3 + $0x60] sm:$0xff]
      %v5497 = vld [vmem:[#allocation3 + $0x68] sm:$0xff]
      %v5498 = vld [vmem:[#allocation3 + $0x70] sm:$0xff]
      %v5499 = vld [vmem:[#allocation3 + $0x78] sm:$0xff]
      %v5500 = vld [vmem:[#allocation3 + $0x80] sm:$0xff]
      %v5501 = vld [vmem:[#allocation3 + $0x88] sm:$0xff]
      %v5502 = vld [vmem:[#allocation3 + $0x90] sm:$0xff]
      %v5503 = vld [vmem:[#allocation3 + $0x98] sm:$0xff]
      %v5504 = vld [vmem:[#allocation3 + $0xa0] sm:$0xff]
      %v5505 = vld [vmem:[#allocation3 + $0xa8] sm:$0xff]
      %v5506 = vld [vmem:[#allocation3 + $0xb0] sm:$0xff]
      %v5507 = vld [vmem:[#allocation3 + $0xb8] sm:$0xff]
      %v5508 = vld [vmem:[#allocation3 + $0xc0] sm:$0xff]
      %v5509 = vld [vmem:[#allocation3 + $0xc8] sm:$0xff]
      %v5510 = vld [vmem:[#allocation3 + $0xd0] sm:$0xff]
      %v5511 = vld [vmem:[#allocation3 + $0xd8] sm:$0xff]
      %v5512 = vld [vmem:[#allocation3 + $0xe0] sm:$0xff]
      %v5513 = vld [vmem:[#allocation3 + $0xe8] sm:$0xff]
      %v5514 = vld [vmem:[#allocation3 + $0xf0] sm:$0xff]
      %v5515 = vld [vmem:[#allocation3 + $0xf8] sm:$0xff]
      %5516 = vst.msk [vmem:[%s391] sm:$0xff] %vm912, %v5484
      %5517 = vst.msk [vmem:[%s391 + $0x8] sm:$0xff] %vm912, %v5485
      %5518 = vst.msk [vmem:[%s391 + $0x20] sm:$0xff] %vm912, %v5486
      %5519 = vst.msk [vmem:[%s391 + $0x28] sm:$0xff] %vm912, %v5487
      %5520 = vst.msk [vmem:[%s391 + $0x40] sm:$0xff] %vm912, %v5488
      %5521 = vst.msk [vmem:[%s391 + $0x48] sm:$0xff] %vm912, %v5489
      %5522 = vst.msk [vmem:[%s391 + $0x60] sm:$0xff] %vm912, %v5490
      %5523 = vst.msk [vmem:[%s391 + $0x68] sm:$0xff] %vm912, %v5491
      %5524 = vst.msk [vmem:[%s391 + $0x80] sm:$0xff] %vm912, %v5492
      %5525 = vst.msk [vmem:[%s391 + $0x88] sm:$0xff] %vm912, %v5493
      %5526 = vst.msk [vmem:[%s391 + $0xa0] sm:$0xff] %vm912, %v5494
      %5527 = vst.msk [vmem:[%s391 + $0xa8] sm:$0xff] %vm912, %v5495
      %5528 = vst.msk [vmem:[%s391 + $0xc0] sm:$0xff] %vm912, %v5496
      %5529 = vst.msk [vmem:[%s391 + $0xc8] sm:$0xff] %vm912, %v5497
      %5530 = vst.msk [vmem:[%s391 + $0xe0] sm:$0xff] %vm912, %v5498
      %5531 = vst.msk [vmem:[%s391 + $0xe8] sm:$0xff] %vm912, %v5499
      %5532 = vst.msk [vmem:[%s391 + $0x100] sm:$0xff] %vm912, %v5500
      %5533 = vst.msk [vmem:[%s391 + $0x108] sm:$0xff] %vm912, %v5501
      %5534 = vst.msk [vmem:[%s391 + $0x120] sm:$0xff] %vm912, %v5502
      %5535 = vst.msk [vmem:[%s391 + $0x128] sm:$0xff] %vm912, %v5503
      %5536 = vst.msk [vmem:[%s391 + $0x140] sm:$0xff] %vm912, %v5504
      %5537 = vst.msk [vmem:[%s391 + $0x148] sm:$0xff] %vm912, %v5505
      %5538 = vst.msk [vmem:[%s391 + $0x160] sm:$0xff] %vm912, %v5506
      %5539 = vst.msk [vmem:[%s391 + $0x168] sm:$0xff] %vm912, %v5507
      %5540 = vst.msk [vmem:[%s391 + $0x180] sm:$0xff] %vm912, %v5508
      %5541 = vst.msk [vmem:[%s391 + $0x188] sm:$0xff] %vm912, %v5509
      %5542 = vst.msk [vmem:[%s391 + $0x1a0] sm:$0xff] %vm912, %v5510
      %5543 = vst.msk [vmem:[%s391 + $0x1a8] sm:$0xff] %vm912, %v5511
      %5544 = vst.msk [vmem:[%s391 + $0x1c0] sm:$0xff] %vm912, %v5512
      %5545 = vst.msk [vmem:[%s391 + $0x1c8] sm:$0xff] %vm912, %v5513
      %5546 = vst.msk [vmem:[%s391 + $0x1e0] sm:$0xff] %vm912, %v5514
      %5547 = vst.msk [vmem:[%s391 + $0x1e8] sm:$0xff] %vm912, %v5515
      %v5548 = vld [vmem:[#allocation4] sm:$0xff]
      %v5549 = vld [vmem:[#allocation4 + $0x8] sm:$0xff]
      %v5550 = vld [vmem:[#allocation4 + $0x10] sm:$0xff]
      %v5551 = vld [vmem:[#allocation4 + $0x18] sm:$0xff]
      %v5552 = vld [vmem:[#allocation4 + $0x20] sm:$0xff]
      %v5553 = vld [vmem:[#allocation4 + $0x28] sm:$0xff]
      %v5554 = vld [vmem:[#allocation4 + $0x30] sm:$0xff]
      %v5555 = vld [vmem:[#allocation4 + $0x38] sm:$0xff]
      %v5556 = vld [vmem:[#allocation4 + $0x40] sm:$0xff]
      %v5557 = vld [vmem:[#allocation4 + $0x48] sm:$0xff]
      %v5558 = vld [vmem:[#allocation4 + $0x50] sm:$0xff]
      %v5559 = vld [vmem:[#allocation4 + $0x58] sm:$0xff]
      %v5560 = vld [vmem:[#allocation4 + $0x60] sm:$0xff]
      %v5561 = vld [vmem:[#allocation4 + $0x68] sm:$0xff]
      %v5562 = vld [vmem:[#allocation4 + $0x70] sm:$0xff]
      %v5563 = vld [vmem:[#allocation4 + $0x78] sm:$0xff]
      %v5564 = vld [vmem:[#allocation4 + $0x80] sm:$0xff]
      %v5565 = vld [vmem:[#allocation4 + $0x88] sm:$0xff]
      %v5566 = vld [vmem:[#allocation4 + $0x90] sm:$0xff]
      %v5567 = vld [vmem:[#allocation4 + $0x98] sm:$0xff]
      %v5568 = vld [vmem:[#allocation4 + $0xa0] sm:$0xff]
      %v5569 = vld [vmem:[#allocation4 + $0xa8] sm:$0xff]
      %v5570 = vld [vmem:[#allocation4 + $0xb0] sm:$0xff]
      %v5571 = vld [vmem:[#allocation4 + $0xb8] sm:$0xff]
      %v5572 = vld [vmem:[#allocation4 + $0xc0] sm:$0xff]
      %v5573 = vld [vmem:[#allocation4 + $0xc8] sm:$0xff]
      %v5574 = vld [vmem:[#allocation4 + $0xd0] sm:$0xff]
      %v5575 = vld [vmem:[#allocation4 + $0xd8] sm:$0xff]
      %v5576 = vld [vmem:[#allocation4 + $0xe0] sm:$0xff]
      %v5577 = vld [vmem:[#allocation4 + $0xe8] sm:$0xff]
      %v5578 = vld [vmem:[#allocation4 + $0xf0] sm:$0xff]
      %v5579 = vld [vmem:[#allocation4 + $0xf8] sm:$0xff]
      %s5580 = scalar_lea.vmem %s391, 16
      %5581 = vst.msk [vmem:[%s5580] sm:$0xff] %vm912, %v5548
      %5582 = vst.msk [vmem:[%s5580 + $0x8] sm:$0xff] %vm912, %v5549
      %5583 = vst.msk [vmem:[%s5580 + $0x20] sm:$0xff] %vm912, %v5550
      %5584 = vst.msk [vmem:[%s5580 + $0x28] sm:$0xff] %vm912, %v5551
      %5585 = vst.msk [vmem:[%s5580 + $0x40] sm:$0xff] %vm912, %v5552
      %5586 = vst.msk [vmem:[%s5580 + $0x48] sm:$0xff] %vm912, %v5553
      %5587 = vst.msk [vmem:[%s5580 + $0x60] sm:$0xff] %vm912, %v5554
      %5588 = vst.msk [vmem:[%s5580 + $0x68] sm:$0xff] %vm912, %v5555
      %5589 = vst.msk [vmem:[%s5580 + $0x80] sm:$0xff] %vm912, %v5556
      %5590 = vst.msk [vmem:[%s5580 + $0x88] sm:$0xff] %vm912, %v5557
      %5591 = vst.msk [vmem:[%s5580 + $0xa0] sm:$0xff] %vm912, %v5558
      %5592 = vst.msk [vmem:[%s5580 + $0xa8] sm:$0xff] %vm912, %v5559
      %5593 = vst.msk [vmem:[%s5580 + $0xc0] sm:$0xff] %vm912, %v5560
      %5594 = vst.msk [vmem:[%s5580 + $0xc8] sm:$0xff] %vm912, %v5561
      %5595 = vst.msk [vmem:[%s5580 + $0xe0] sm:$0xff] %vm912, %v5562
      %5596 = vst.msk [vmem:[%s5580 + $0xe8] sm:$0xff] %vm912, %v5563
      %5597 = vst.msk [vmem:[%s5580 + $0x100] sm:$0xff] %vm912, %v5564
      %5598 = vst.msk [vmem:[%s5580 + $0x108] sm:$0xff] %vm912, %v5565
      %5599 = vst.msk [vmem:[%s5580 + $0x120] sm:$0xff] %vm912, %v5566
      %5600 = vst.msk [vmem:[%s5580 + $0x128] sm:$0xff] %vm912, %v5567
      %5601 = vst.msk [vmem:[%s5580 + $0x140] sm:$0xff] %vm912, %v5568
      %5602 = vst.msk [vmem:[%s5580 + $0x148] sm:$0xff] %vm912, %v5569
      %5603 = vst.msk [vmem:[%s5580 + $0x160] sm:$0xff] %vm912, %v5570
      %5604 = vst.msk [vmem:[%s5580 + $0x168] sm:$0xff] %vm912, %v5571
      %5605 = vst.msk [vmem:[%s5580 + $0x180] sm:$0xff] %vm912, %v5572
      %5606 = vst.msk [vmem:[%s5580 + $0x188] sm:$0xff] %vm912, %v5573
      %5607 = vst.msk [vmem:[%s5580 + $0x1a0] sm:$0xff] %vm912, %v5574
      %5608 = vst.msk [vmem:[%s5580 + $0x1a8] sm:$0xff] %vm912, %v5575
      %5609 = vst.msk [vmem:[%s5580 + $0x1c0] sm:$0xff] %vm912, %v5576
      %5610 = vst.msk [vmem:[%s5580 + $0x1c8] sm:$0xff] %vm912, %v5577
      %5611 = vst.msk [vmem:[%s5580 + $0x1e0] sm:$0xff] %vm912, %v5578
      %5612 = vst.msk [vmem:[%s5580 + $0x1e8] sm:$0xff] %vm912, %v5579
      %s5613 = smul.u32 16, %s21
      %p5614 = scmp.lt.s32.totalorder %s20, 1
      %s5615 = scalar_select %p5614, %s20, 1
      %p5616 = scmp.lt.s32.totalorder %s5613, 15
      %s5617 = scalar_select %p5616, %s5613, 15
      %s5618 = smul.addr %s5617, 4
      %s5619 = smul.addr %s5615, 64
      %s5620 = sadd.s32 %s5618, %s5619
      %s5621 = smul.addr %s5620, 8
      %s5622 = scalar_lea.vmem %s5, %s5621
      // Predicated region
      $region45: #{tpu_custom_call.1} parent=39 // pred_check
        %p5623 = pneg %p190
      $region46: #{tpu_custom_call.1} parent=39 // pred_check_branch
        %5625 = sbr.rel (%p5623) target = $region48
      $region47: #{tpu_custom_call.1} parent=39 // pred_region
        %s5626 = smul.u32 16, %s21
      $region48: #{tpu_custom_call.1} parent=39 // pred_fallthru
        _
    $region40: #{tpu_custom_call.1} parent=5 // pred_fallthru
      _
    %p5627 = scmp.le.s32.totalorder 2, %s11
    // Predicated region
    $region49: #{tpu_custom_call.1} parent=5 // pred_check
      %p5628 = pneg %p5627
    $region50: #{tpu_custom_call.1} parent=5 // pred_check_branch
      %5630 = sbr.rel (%p5628) target = $region52
    $region51: #{tpu_custom_call.1} parent=5 // pred_region
      %s5631 = ssub.s32 %s11, 2
      // Predicated region
      $region53: #{tpu_custom_call.1} parent=51 // pred_check
        %p5632 = pneg %p196
      $region54: #{tpu_custom_call.1} parent=51 // pred_check_branch
        %5634 = sbr.rel (%p5632) target = $region56
      $region55: #{tpu_custom_call.1} parent=51 // pred_region
        %s5635 = smul.u32 16, %s23
        %p5636 = scmp.lt.s32.totalorder %s22, 1
        %s5637 = scalar_select %p5636, %s22, 1
        %p5638 = scmp.lt.s32.totalorder %s5635, 15
        %s5639 = scalar_select %p5638, %s5635, 15
        %s5640 = smul.addr %s5639, 4
        %s5641 = smul.addr %s5637, 64
        %s5642 = sadd.s32 %s5640, %s5641
        %s5643 = smul.addr %s5642, 8
        %s5644 = scalar_lea.vmem %s5, %s5643
      $region56: #{tpu_custom_call.1} parent=51 // pred_fallthru
        _
    $region52: #{tpu_custom_call.1} parent=5 // pred_fallthru
      _
  $region6: #{tpu_custom_call.1} parent=0 // loop_footer
    %s15 = sadd.s32 1, %s11
  $region7: #{tpu_custom_call.1} parent=0 // loop_footer_branch
    %10 = sbr.rel target = $region3
  $region8: #{tpu_custom_call.1} parent=0 // loop_exit
    _

</llo_original>
